<compile_context>
chip_gen: v7x
topology: tpu7x:2x2x1
jax: 0.10.0
libtpu: 0.0.40
codegen_flags: <defaults>
</compile_context>

<pallas_src>
import jax
import jax.numpy as jnp
from jax.experimental import pallas as pl
from jax.experimental.pallas import tpu as pltpu

GP = 128   # gate lane pitch: each gate occupies its own full 128-lane block
BP = 8     # batch rows padded to one full sublane tile
DP = 8     # layer-0 input features padded to 8 (one sublane tile of weight rows)


# ------------------------------ Pallas kernel ------------------------------ #

def grunet2_kernel(x_ref, h0_ref, w_ref, b_ref, out_ref, hN_ref, gi_ref):
    """Fused 2-layer GRU + fc/ReLU head; all operands VMEM-resident, no grid.

    x_ref : (T*BP, DP)      time-major input, batch/feature zero-padded
    h0_ref: (2, BP, GP)     zero-padded initial hidden state
    w_ref : (DP+3*GP, 4*GP) packed weight slab (see pack_params)
    b_ref : (8, 4*GP)       packed bias / fc slab
    out_ref: (B, 1)         fc output
    hN_ref: (2, BP, GP)     final hidden state (padded; aliased onto h0's buffer)
    gi_ref: (T*BP, 3*GP)    scratch: hoisted layer-1 input projection
    """
    TB, DP_ = x_ref.shape
    _, BP_, GP_ = h0_ref.shape
    T = TB // BP_
    B = out_ref.shape[0]
    G3, G4 = 3 * GP_, 4 * GP_

    # Static ref views into the packed slabs (zero-cost).
    wih1 = w_ref.at[0:DP_, 0:G3]                   # (DP, 3GP)  layer-1 W_ih^T, gate-padded
    whh1 = w_ref.at[DP_:DP_ + GP_, 0:G3]           # (GP, 3GP)  layer-1 W_hh^T
    wcat2 = w_ref.at[DP_ + GP_:DP_ + 3 * GP_, :]   # (2GP, 4GP) layer-2 fused [W_ih^T ; W_hh^T]

    # Biases: r/z hidden-bias already folded into row 0 / row 2 at pack time.
    bias1 = b_ref[0:1, 0:G3]                                   # layer-1 gi bias (used once)
    # Hoist the sublane broadcasts out of the unrolled loop (no per-step re-broadcast).
    bhn1 = jnp.broadcast_to(b_ref[1:2, 0:GP_], (BP_, GP_))     # layer-1 b_hn
    bias2 = jnp.broadcast_to(b_ref[2:3, :], (BP_, G4))         # layer-2 fused bias

    # Hoisted layer-1 input projection: one matmul covers all T timesteps.
    gi_ref[...] = (jnp.dot(x_ref[...], wih1[...],
                           preferred_element_type=jnp.float32) + bias1)

    def gru1_step(gi, h):
        gh = jnp.dot(h, whh1[...], preferred_element_type=jnp.float32)    # (BP, 3GP)
        r = jax.nn.sigmoid(gi[:, 0:GP_] + gh[:, 0:GP_])
        z = jax.nn.sigmoid(gi[:, GP_:2 * GP_] + gh[:, GP_:2 * GP_])
        n = jnp.tanh(gi[:, 2 * GP_:G3] + r * (gh[:, 2 * GP_:G3] + bhn1))
        return (1.0 - z) * n + z * h

    def gru2_step(x_in, h):
        # One fused matmul per step: blocks are [r | z | gi_n | gh_n].
        cat = jnp.concatenate([x_in, h], axis=1)                           # (BP, 2GP)
        g = jnp.dot(cat, wcat2[...], preferred_element_type=jnp.float32) + bias2
        r = jax.nn.sigmoid(g[:, 0:GP_])
        z = jax.nn.sigmoid(g[:, GP_:2 * GP_])
        n = jnp.tanh(g[:, 2 * GP_:G3] + r * g[:, G3:G4])
        return (1.0 - z) * n + z * h

    h1 = h0_ref[0]
    h2 = h0_ref[1]
    # Wavefront: tick t runs layer-1 step t and layer-2 step t-1.  Both read the
    # tick's starting h1, so the two chains in a tick are independent.
    for t in range(T + 1):                         # static -> fully unrolled
        h1_in = h1
        if t < T:
            h1 = gru1_step(gi_ref[t * BP_:(t + 1) * BP_, :], h1_in)
        if t >= 1:
            h2 = gru2_step(h1_in, h2)

    hN_ref[0] = h1                                 # full (8,128) lane-dense stores
    hN_ref[1] = h2

    # fc(relu(out[:, -1])) with output_dim == 1: lane reduction, no MXU on the tail.
    relu = jnp.maximum(h2, 0.0)
    acc = jnp.sum(relu * b_ref[3:4, 0:GP_], axis=1, keepdims=True)         # (BP, 1)
    out_ref[...] = acc[0:B, :] + b_ref[4:5, 0:1]


# ------------------------- parameter packing (once) ------------------------- #

def pack_params(params):
    """Pack GRU/fc weights into two DMA-friendly fp32 slabs (outside jit, once)."""
    g1, g2 = params["gru"]
    H = g1["w_hh"].shape[1]
    assert H <= GP and params["fc_w"].shape[0] == 1, "kernel specialized to H<=128, output_dim==1"

    wih1t, whh1t = g1["w_ih"].T, g1["w_hh"].T          # (D,3H), (H,3H)
    wih2t, whh2t = g2["w_ih"].T, g2["w_hh"].T          # (H,3H), (H,3H)
    D = wih1t.shape[0]
    assert D <= DP

    wslab = jnp.zeros((DP + 3 * GP, 4 * GP), jnp.float32)
    bslab = jnp.zeros((8, 4 * GP), jnp.float32)

    R1, R2 = DP, DP + GP                               # row offsets: W_hh1, layer-2 slab
    for gate in range(3):                              # PyTorch gate order: r, z, n
        col = gate * GP
        wslab = wslab.at[0:D, col:col + H].set(wih1t[:, gate * H:(gate + 1) * H])
        wslab = wslab.at[R1:R1 + H, col:col + H].set(whh1t[:, gate * H:(gate + 1) * H])
    # Layer-2 fused weight: 4 gate blocks r | z | n_input | n_hidden.
    wslab = wslab.at[R2:R2 + H, 0:H].set(wih2t[:, 0:H])
    wslab = wslab.at[R2 + GP:R2 + GP + H, 0:H].set(whh2t[:, 0:H])
    wslab = wslab.at[R2:R2 + H, GP:GP + H].set(wih2t[:, H:2 * H])
    wslab = wslab.at[R2 + GP:R2 + GP + H, GP:GP + H].set(whh2t[:, H:2 * H])
    wslab = wslab.at[R2:R2 + H, 2 * GP:2 * GP + H].set(wih2t[:, 2 * H:3 * H])
    wslab = wslab.at[R2 + GP:R2 + GP + H, 3 * GP:3 * GP + H].set(whh2t[:, 2 * H:3 * H])

    # Biases: fold b_hh into b_ih for r/z; keep b_hn separate (lives inside r*(...)).
    for gate in range(2):                              # r, z
        col = gate * GP
        sl = slice(gate * H, (gate + 1) * H)
        bslab = bslab.at[0, col:col + H].set(g1["b_ih"][sl] + g1["b_hh"][sl])
        bslab = bslab.at[2, col:col + H].set(g2["b_ih"][sl] + g2["b_hh"][sl])
    bslab = bslab.at[0, 2 * GP:2 * GP + H].set(g1["b_ih"][2 * H:3 * H])   # b_in (layer 1)
    bslab = bslab.at[1, 0:H].set(g1["b_hh"][2 * H:3 * H])                 # b_hn (layer 1)
    bslab = bslab.at[2, 2 * GP:2 * GP + H].set(g2["b_ih"][2 * H:3 * H])   # b_in (layer 2)
    bslab = bslab.at[2, 3 * GP:3 * GP + H].set(g2["b_hh"][2 * H:3 * H])   # b_hn (layer 2)
    bslab = bslab.at[3, 0:H].set(params["fc_w"][0, :])                    # fc weight row
    bslab = bslab.at[4, 0].set(params["fc_b"][0])                         # fc bias
    return wslab, bslab


# --------------------------------- wrapper ---------------------------------- #

@jax.jit
def grunet_forward(x, h, wslab, bslab):
    """x: (B, T, D) batch_first; h: (2, B, H).  Returns (out (B,1), h_new (2,B,H))."""
    B, T, D = x.shape
    L, _, H = h.shape
    assert L == 2, "fused wavefront kernel is specialized to n_layers == 2"

    # Trace-time glue: time-major + zero-pad batch/feature/hidden lanes.
    xt = jnp.transpose(x, (1, 0, 2))                            # (T, B, D)
    xt = jnp.pad(xt, ((0, 0), (0, BP - B), (0, DP - D)))
    x_flat = xt.reshape(T * BP, DP)
    h0p = jnp.pad(h, ((0, 0), (0, BP - B), (0, GP - H)))        # (2, BP, GP)

    vmem = pl.BlockSpec(memory_space=pltpu.MemorySpace.VMEM)
    out, hNp = pl.pallas_call(
        grunet2_kernel,
        out_shape=(jax.ShapeDtypeStruct((B, 1), jnp.float32),
                   jax.ShapeDtypeStruct((L, BP, GP), jnp.float32)),
        in_specs=[vmem, vmem, vmem, vmem],
        out_specs=(vmem, vmem),
        scratch_shapes=[pltpu.VMEM((T * BP, 3 * GP), jnp.float32)],
        input_output_aliases={1: 1},        # final hidden written over h0's buffer
    )(x_flat, h0p, wslab, bslab)
    return out, hNp[:, :B, :H]


# ------------------------- deterministic params ---------------------------- #

def init_params(key, input_dim, hidden_dim, output_dim, n_layers):
    k = 1.0 / jnp.sqrt(hidden_dim)
    params = {"gru": []}
    for l in range(n_layers):
        d_in = input_dim if l == 0 else hidden_dim
        key, k1, k2, k3, k4 = jax.random.split(key, 5)
        params["gru"].append({
            "w_ih": jax.random.uniform(k1, (3 * hidden_dim, d_in), jnp.float32, -k, k),
            "w_hh": jax.random.uniform(k2, (3 * hidden_dim, hidden_dim), jnp.float32, -k, k),
            "b_ih": jax.random.uniform(k3, (3 * hidden_dim,), jnp.float32, -k, k),
            "b_hh": jax.random.uniform(k4, (3 * hidden_dim,), jnp.float32, -k, k),
        })
    key, k5, k6 = jax.random.split(key, 3)
    kf = 1.0 / jnp.sqrt(hidden_dim)
    params["fc_w"] = jax.random.uniform(k5, (output_dim, hidden_dim), jnp.float32, -kf, kf)
    params["fc_b"] = jax.random.uniform(k6, (output_dim,), jnp.float32, -kf, kf)
    return params


# --------------------------- pure-JAX reference ----------------------------- #

def reference_forward(x, h, params):
    B, T, _ = x.shape
    layer_in = x
    h_finals = []
    for l, p in enumerate(params["gru"]):
        H = p["w_hh"].shape[1]
        hs = h[l]
        outs = []
        for t in range(T):
            xt = layer_in[:, t, :]
            gi = xt @ p["w_ih"].T + p["b_ih"]
            gh = hs @ p["w_hh"].T + p["b_hh"]
            r = jax.nn.sigmoid(gi[:, :H] + gh[:, :H])
            z = jax.nn.sigmoid(gi[:, H:2 * H] + gh[:, H:2 * H])
            n = jnp.tanh(gi[:, 2 * H:] + r * gh[:, 2 * H:])
            hs = (1.0 - z) * n + z * hs
            outs.append(hs)
        layer_in = jnp.stack(outs, axis=1)
        h_finals.append(hs)
    last = jnp.maximum(layer_in[:, -1], 0.0)
    out = last @ params["fc_w"].T + params["fc_b"]
    return out, jnp.stack(h_finals, axis=0)


# --------------------------------- main ------------------------------------ #

if __name__ == "__main__":
    input_dim, hidden_dim, output_dim, n_layers = 2, 20, 1, 2
    batch, seq = 2, 8

    key = jax.random.PRNGKey(0)
    key, kx, kh = jax.random.split(key, 3)
    params = init_params(key, input_dim, hidden_dim, output_dim, n_layers)
    wslab, bslab = pack_params(params)

    x = jax.random.normal(kx, (batch, seq, input_dim), jnp.float32)

    # Case 1: init_hidden() semantics (zeros), as in the original training script.
    h0 = jnp.zeros((n_layers, batch, hidden_dim), jnp.float32)
    out, h_new = grunet_forward(x, h0, wslab, bslab)
    out = jax.block_until_ready(out)
    h_new = jax.block_until_ready(h_new)
    out_ref, h_ref = reference_forward(x, h0, params)
    assert jnp.allclose(out, out_ref, atol=1e-4, rtol=1e-4), "fc output mismatch (h0=0)"
    assert jnp.allclose(h_new, h_ref, atol=1e-4, rtol=1e-4), "hidden state mismatch (h0=0)"

    # Case 2: arbitrary carried hidden state (exercises the h0 read path).
    h1 = jax.random.normal(kh, (n_layers, batch, hidden_dim), jnp.float32)
    out2, h_new2 = grunet_forward(x, h1, wslab, bslab)
    out2 = jax.block_until_ready(out2)
    h_new2 = jax.block_until_ready(h_new2)
    out_ref2, h_ref2 = reference_forward(x, h1, params)
    assert jnp.allclose(out2, out_ref2, atol=1e-4, rtol=1e-4), "fc output mismatch (h0!=0)"
    assert jnp.allclose(h_new2, h_ref2, atol=1e-4, rtol=1e-4), "hidden state mismatch (h0!=0)"

    print("KERNEL_OK")
</pallas_src>

<mosaic_0001>
module attributes {stable_mosaic.version = 11 : i64} {
  func.func @grunet2_kernel(%arg0: memref<64x8xf32, #tpu.memory_space<vmem>>, %arg1: memref<2x8x128xf32, #tpu.memory_space<vmem>>, %arg2: memref<392x512xf32, #tpu.memory_space<vmem>>, %arg3: memref<8x512xf32, #tpu.memory_space<vmem>>, %arg4: memref<2x1xf32, #tpu.memory_space<vmem>>, %arg5: memref<2x8x128xf32, #tpu.memory_space<vmem>>, %arg6: memref<64x384xf32, #tpu.memory_space<vmem>>) attributes {dimension_semantics = [], scalar_prefetch = 0 : i64, scratch_operands = 1 : i64, tpu.core_type = #tpu.core_type<tc>} {
    %c0 = arith.constant 0 : index
    %c0_0 = arith.constant 0 : index
    %0 = vector.load %arg3[%c0, %c0_0] : memref<8x512xf32, #tpu.memory_space<vmem>>, vector<1x384xf32>
    %c1 = arith.constant 1 : index
    %c0_1 = arith.constant 0 : index
    %1 = vector.load %arg3[%c1, %c0_1] : memref<8x512xf32, #tpu.memory_space<vmem>>, vector<1x128xf32>
    %2 = vector.shape_cast %1 : vector<1x128xf32> to vector<1x128xf32>
    %3 = vector.broadcast %2 : vector<1x128xf32> to vector<8x128xf32>
    %c2 = arith.constant 2 : index
    %c0_2 = arith.constant 0 : index
    %4 = vector.load %arg3[%c2, %c0_2] : memref<8x512xf32, #tpu.memory_space<vmem>>, vector<1x512xf32>
    %5 = vector.shape_cast %4 : vector<1x512xf32> to vector<1x512xf32>
    %6 = vector.broadcast %5 : vector<1x512xf32> to vector<8x512xf32>
    %c0_3 = arith.constant 0 : index
    %c0_4 = arith.constant 0 : index
    %7 = vector.load %arg0[%c0_3, %c0_4] : memref<64x8xf32, #tpu.memory_space<vmem>>, vector<64x8xf32>
    %c0_5 = arith.constant 0 : index
    %c0_6 = arith.constant 0 : index
    %8 = vector.load %arg2[%c0_5, %c0_6] : memref<392x512xf32, #tpu.memory_space<vmem>>, vector<8x384xf32>
    %cst = arith.constant dense<0.000000e+00> : vector<64x384xf32>
    %9 = tpu.matmul %7, %8, %cst {dimension_numbers = #tpu.dot_dimension_numbers<[1], [0], [0], [1], [0, 0, 1, 1], [], []>} : vector<64x8xf32>, vector<8x384xf32>, vector<64x384xf32> -> vector<64x384xf32>
    %10 = vector.broadcast %0 : vector<1x384xf32> to vector<64x384xf32>
    %11 = arith.addf %9, %10 : vector<64x384xf32>
    %c0_7 = arith.constant 0 : index
    %c0_8 = arith.constant 0 : index
    %12 = vector.load %arg6[%c0_7, %c0_8] : memref<64x384xf32, #tpu.memory_space<vmem>>, vector<64x384xf32>
    tpu.vector_store %arg6[%c0_7, %c0_8], %11 {strides = array<i32>} : memref<64x384xf32, #tpu.memory_space<vmem>>, vector<64x384xf32>,
    %c0_9 = arith.constant 0 : index
    %c0_10 = arith.constant 0 : index
    %c0_11 = arith.constant 0 : index
    %13 = vector.load %arg1[%c0_9, %c0_10, %c0_11] : memref<2x8x128xf32, #tpu.memory_space<vmem>>, vector<1x8x128xf32>
    %14 = vector.shape_cast %13 : vector<1x8x128xf32> to vector<8x128xf32>
    %c1_12 = arith.constant 1 : index
    %c0_13 = arith.constant 0 : index
    %c0_14 = arith.constant 0 : index
    %15 = vector.load %arg1[%c1_12, %c0_13, %c0_14] : memref<2x8x128xf32, #tpu.memory_space<vmem>>, vector<1x8x128xf32>
    %16 = vector.shape_cast %15 : vector<1x8x128xf32> to vector<8x128xf32>
    %c0_15 = arith.constant 0 : index
    %c0_16 = arith.constant 0 : index
    %17 = vector.load %arg6[%c0_15, %c0_16] : memref<64x384xf32, #tpu.memory_space<vmem>>, vector<8x384xf32>
    %c8 = arith.constant 8 : index
    %c0_17 = arith.constant 0 : index
    %18 = vector.load %arg2[%c8, %c0_17] : memref<392x512xf32, #tpu.memory_space<vmem>>, vector<128x384xf32>
    %cst_18 = arith.constant dense<0.000000e+00> : vector<8x384xf32>
    %19 = tpu.matmul %14, %18, %cst_18 {dimension_numbers = #tpu.dot_dimension_numbers<[1], [0], [0], [1], [0, 0, 1, 1], [], []>} : vector<8x128xf32>, vector<128x384xf32>, vector<8x384xf32> -> vector<8x384xf32>
    %20 = vector.extract_strided_slice %17 {offsets = [0, 0], sizes = [8, 128], strides = [1, 1]} : vector<8x384xf32> to vector<8x128xf32>
    %21 = vector.extract_strided_slice %19 {offsets = [0, 0], sizes = [8, 128], strides = [1, 1]} : vector<8x384xf32> to vector<8x128xf32>
    %22 = arith.addf %20, %21 : vector<8x128xf32>
    %23 = arith.negf %22 : vector<8x128xf32>
    %24 = math.exp %23 : vector<8x128xf32>
    %cst_19 = arith.constant 1.000000e+00 : f32
    %25 = vector.broadcast %cst_19 : f32 to vector<8x128xf32>
    %26 = arith.addf %25, %24 : vector<8x128xf32>
    %27 = arith.divf %25, %26 : vector<8x128xf32>
    %28 = vector.extract_strided_slice %17 {offsets = [0, 128], sizes = [8, 128], strides = [1, 1]} : vector<8x384xf32> to vector<8x128xf32>
    %29 = vector.extract_strided_slice %19 {offsets = [0, 128], sizes = [8, 128], strides = [1, 1]} : vector<8x384xf32> to vector<8x128xf32>
    %30 = arith.addf %28, %29 : vector<8x128xf32>
    %31 = arith.negf %30 : vector<8x128xf32>
    %32 = math.exp %31 : vector<8x128xf32>
    %cst_20 = arith.constant 1.000000e+00 : f32
    %33 = vector.broadcast %cst_20 : f32 to vector<8x128xf32>
    %34 = arith.addf %33, %32 : vector<8x128xf32>
    %35 = arith.divf %33, %34 : vector<8x128xf32>
    %36 = vector.extract_strided_slice %17 {offsets = [0, 256], sizes = [8, 128], strides = [1, 1]} : vector<8x384xf32> to vector<8x128xf32>
    %37 = vector.extract_strided_slice %19 {offsets = [0, 256], sizes = [8, 128], strides = [1, 1]} : vector<8x384xf32> to vector<8x128xf32>
    %38 = arith.addf %37, %3 : vector<8x128xf32>
    %39 = arith.mulf %27, %38 : vector<8x128xf32>
    %40 = arith.addf %36, %39 : vector<8x128xf32>
    %41 = math.tanh %40 : vector<8x128xf32>
    %cst_21 = arith.constant 1.000000e+00 : f32
    %42 = vector.broadcast %cst_21 : f32 to vector<8x128xf32>
    %43 = arith.subf %42, %35 : vector<8x128xf32>
    %44 = arith.mulf %43, %41 : vector<8x128xf32>
    %45 = arith.mulf %35, %14 : vector<8x128xf32>
    %46 = arith.addf %44, %45 : vector<8x128xf32>
    %c8_22 = arith.constant 8 : index
    %c0_23 = arith.constant 0 : index
    %47 = vector.load %arg6[%c8_22, %c0_23] : memref<64x384xf32, #tpu.memory_space<vmem>>, vector<8x384xf32>
    %c8_24 = arith.constant 8 : index
    %c0_25 = arith.constant 0 : index
    %48 = vector.load %arg2[%c8_24, %c0_25] : memref<392x512xf32, #tpu.memory_space<vmem>>, vector<128x384xf32>
    %cst_26 = arith.constant dense<0.000000e+00> : vector<8x384xf32>
    %49 = tpu.matmul %46, %48, %cst_26 {dimension_numbers = #tpu.dot_dimension_numbers<[1], [0], [0], [1], [0, 0, 1, 1], [], []>} : vector<8x128xf32>, vector<128x384xf32>, vector<8x384xf32> -> vector<8x384xf32>
    %50 = vector.extract_strided_slice %47 {offsets = [0, 0], sizes = [8, 128], strides = [1, 1]} : vector<8x384xf32> to vector<8x128xf32>
    %51 = vector.extract_strided_slice %49 {offsets = [0, 0], sizes = [8, 128], strides = [1, 1]} : vector<8x384xf32> to vector<8x128xf32>
    %52 = arith.addf %50, %51 : vector<8x128xf32>
    %53 = arith.negf %52 : vector<8x128xf32>
    %54 = math.exp %53 : vector<8x128xf32>
    %cst_27 = arith.constant 1.000000e+00 : f32
    %55 = vector.broadcast %cst_27 : f32 to vector<8x128xf32>
    %56 = arith.addf %55, %54 : vector<8x128xf32>
    %57 = arith.divf %55, %56 : vector<8x128xf32>
    %58 = vector.extract_strided_slice %47 {offsets = [0, 128], sizes = [8, 128], strides = [1, 1]} : vector<8x384xf32> to vector<8x128xf32>
    %59 = vector.extract_strided_slice %49 {offsets = [0, 128], sizes = [8, 128], strides = [1, 1]} : vector<8x384xf32> to vector<8x128xf32>
    %60 = arith.addf %58, %59 : vector<8x128xf32>
    %61 = arith.negf %60 : vector<8x128xf32>
    %62 = math.exp %61 : vector<8x128xf32>
    %cst_28 = arith.constant 1.000000e+00 : f32
    %63 = vector.broadcast %cst_28 : f32 to vector<8x128xf32>
    %64 = arith.addf %63, %62 : vector<8x128xf32>
    %65 = arith.divf %63, %64 : vector<8x128xf32>
    %66 = vector.extract_strided_slice %47 {offsets = [0, 256], sizes = [8, 128], strides = [1, 1]} : vector<8x384xf32> to vector<8x128xf32>
    %67 = vector.extract_strided_slice %49 {offsets = [0, 256], sizes = [8, 128], strides = [1, 1]} : vector<8x384xf32> to vector<8x128xf32>
    %68 = arith.addf %67, %3 : vector<8x128xf32>
    %69 = arith.mulf %57, %68 : vector<8x128xf32>
    %70 = arith.addf %66, %69 : vector<8x128xf32>
    %71 = math.tanh %70 : vector<8x128xf32>
    %cst_29 = arith.constant 1.000000e+00 : f32
    %72 = vector.broadcast %cst_29 : f32 to vector<8x128xf32>
    %73 = arith.subf %72, %65 : vector<8x128xf32>
    %74 = arith.mulf %73, %71 : vector<8x128xf32>
    %75 = arith.mulf %65, %46 : vector<8x128xf32>
    %76 = arith.addf %74, %75 : vector<8x128xf32>
    %77 = tpu.concatenate %46, %16 in 1 : vector<8x128xf32>, vector<8x128xf32> -> vector<8x256xf32>
    %c136 = arith.constant 136 : index
    %c0_30 = arith.constant 0 : index
    %78 = vector.load %arg2[%c136, %c0_30] : memref<392x512xf32, #tpu.memory_space<vmem>>, vector<256x512xf32>
    %cst_31 = arith.constant dense<0.000000e+00> : vector<8x512xf32>
    %79 = tpu.matmul %77, %78, %cst_31 {dimension_numbers = #tpu.dot_dimension_numbers<[1], [0], [0], [1], [0, 0, 1, 1], [], []>} : vector<8x256xf32>, vector<256x512xf32>, vector<8x512xf32> -> vector<8x512xf32>
    %80 = arith.addf %79, %6 : vector<8x512xf32>
    %81 = vector.extract_strided_slice %80 {offsets = [0, 0], sizes = [8, 128], strides = [1, 1]} : vector<8x512xf32> to vector<8x128xf32>
    %82 = arith.negf %81 : vector<8x128xf32>
    %83 = math.exp %82 : vector<8x128xf32>
    %cst_32 = arith.constant 1.000000e+00 : f32
    %84 = vector.broadcast %cst_32 : f32 to vector<8x128xf32>
    %85 = arith.addf %84, %83 : vector<8x128xf32>
    %86 = arith.divf %84, %85 : vector<8x128xf32>
    %87 = vector.extract_strided_slice %80 {offsets = [0, 128], sizes = [8, 128], strides = [1, 1]} : vector<8x512xf32> to vector<8x128xf32>
    %88 = arith.negf %87 : vector<8x128xf32>
    %89 = math.exp %88 : vector<8x128xf32>
    %cst_33 = arith.constant 1.000000e+00 : f32
    %90 = vector.broadcast %cst_33 : f32 to vector<8x128xf32>
    %91 = arith.addf %90, %89 : vector<8x128xf32>
    %92 = arith.divf %90, %91 : vector<8x128xf32>
    %93 = vector.extract_strided_slice %80 {offsets = [0, 256], sizes = [8, 128], strides = [1, 1]} : vector<8x512xf32> to vector<8x128xf32>
    %94 = vector.extract_strided_slice %80 {offsets = [0, 384], sizes = [8, 128], strides = [1, 1]} : vector<8x512xf32> to vector<8x128xf32>
    %95 = arith.mulf %86, %94 : vector<8x128xf32>
    %96 = arith.addf %93, %95 : vector<8x128xf32>
    %97 = math.tanh %96 : vector<8x128xf32>
    %cst_34 = arith.constant 1.000000e+00 : f32
    %98 = vector.broadcast %cst_34 : f32 to vector<8x128xf32>
    %99 = arith.subf %98, %92 : vector<8x128xf32>
    %100 = arith.mulf %99, %97 : vector<8x128xf32>
    %101 = arith.mulf %92, %16 : vector<8x128xf32>
    %102 = arith.addf %100, %101 : vector<8x128xf32>
    %c16 = arith.constant 16 : index
    %c0_35 = arith.constant 0 : index
    %103 = vector.load %arg6[%c16, %c0_35] : memref<64x384xf32, #tpu.memory_space<vmem>>, vector<8x384xf32>
    %c8_36 = arith.constant 8 : index
    %c0_37 = arith.constant 0 : index
    %104 = vector.load %arg2[%c8_36, %c0_37] : memref<392x512xf32, #tpu.memory_space<vmem>>, vector<128x384xf32>
    %cst_38 = arith.constant dense<0.000000e+00> : vector<8x384xf32>
    %105 = tpu.matmul %76, %104, %cst_38 {dimension_numbers = #tpu.dot_dimension_numbers<[1], [0], [0], [1], [0, 0, 1, 1], [], []>} : vector<8x128xf32>, vector<128x384xf32>, vector<8x384xf32> -> vector<8x384xf32>
    %106 = vector.extract_strided_slice %103 {offsets = [0, 0], sizes = [8, 128], strides = [1, 1]} : vector<8x384xf32> to vector<8x128xf32>
    %107 = vector.extract_strided_slice %105 {offsets = [0, 0], sizes = [8, 128], strides = [1, 1]} : vector<8x384xf32> to vector<8x128xf32>
    %108 = arith.addf %106, %107 : vector<8x128xf32>
    %109 = arith.negf %108 : vector<8x128xf32>
    %110 = math.exp %109 : vector<8x128xf32>
    %cst_39 = arith.constant 1.000000e+00 : f32
    %111 = vector.broadcast %cst_39 : f32 to vector<8x128xf32>
    %112 = arith.addf %111, %110 : vector<8x128xf32>
    %113 = arith.divf %111, %112 : vector<8x128xf32>
    %114 = vector.extract_strided_slice %103 {offsets = [0, 128], sizes = [8, 128], strides = [1, 1]} : vector<8x384xf32> to vector<8x128xf32>
    %115 = vector.extract_strided_slice %105 {offsets = [0, 128], sizes = [8, 128], strides = [1, 1]} : vector<8x384xf32> to vector<8x128xf32>
    %116 = arith.addf %114, %115 : vector<8x128xf32>
    %117 = arith.negf %116 : vector<8x128xf32>
    %118 = math.exp %117 : vector<8x128xf32>
    %cst_40 = arith.constant 1.000000e+00 : f32
    %119 = vector.broadcast %cst_40 : f32 to vector<8x128xf32>
    %120 = arith.addf %119, %118 : vector<8x128xf32>
    %121 = arith.divf %119, %120 : vector<8x128xf32>
    %122 = vector.extract_strided_slice %103 {offsets = [0, 256], sizes = [8, 128], strides = [1, 1]} : vector<8x384xf32> to vector<8x128xf32>
    %123 = vector.extract_strided_slice %105 {offsets = [0, 256], sizes = [8, 128], strides = [1, 1]} : vector<8x384xf32> to vector<8x128xf32>
    %124 = arith.addf %123, %3 : vector<8x128xf32>
    %125 = arith.mulf %113, %124 : vector<8x128xf32>
    %126 = arith.addf %122, %125 : vector<8x128xf32>
    %127 = math.tanh %126 : vector<8x128xf32>
    %cst_41 = arith.constant 1.000000e+00 : f32
    %128 = vector.broadcast %cst_41 : f32 to vector<8x128xf32>
    %129 = arith.subf %128, %121 : vector<8x128xf32>
    %130 = arith.mulf %129, %127 : vector<8x128xf32>
    %131 = arith.mulf %121, %76 : vector<8x128xf32>
    %132 = arith.addf %130, %131 : vector<8x128xf32>
    %133 = tpu.concatenate %76, %102 in 1 : vector<8x128xf32>, vector<8x128xf32> -> vector<8x256xf32>
    %c136_42 = arith.constant 136 : index
    %c0_43 = arith.constant 0 : index
    %134 = vector.load %arg2[%c136_42, %c0_43] : memref<392x512xf32, #tpu.memory_space<vmem>>, vector<256x512xf32>
    %cst_44 = arith.constant dense<0.000000e+00> : vector<8x512xf32>
    %135 = tpu.matmul %133, %134, %cst_44 {dimension_numbers = #tpu.dot_dimension_numbers<[1], [0], [0], [1], [0, 0, 1, 1], [], []>} : vector<8x256xf32>, vector<256x512xf32>, vector<8x512xf32> -> vector<8x512xf32>
    %136 = arith.addf %135, %6 : vector<8x512xf32>
    %137 = vector.extract_strided_slice %136 {offsets = [0, 0], sizes = [8, 128], strides = [1, 1]} : vector<8x512xf32> to vector<8x128xf32>
    %138 = arith.negf %137 : vector<8x128xf32>
    %139 = math.exp %138 : vector<8x128xf32>
    %cst_45 = arith.constant 1.000000e+00 : f32
    %140 = vector.broadcast %cst_45 : f32 to vector<8x128xf32>
    %141 = arith.addf %140, %139 : vector<8x128xf32>
    %142 = arith.divf %140, %141 : vector<8x128xf32>
    %143 = vector.extract_strided_slice %136 {offsets = [0, 128], sizes = [8, 128], strides = [1, 1]} : vector<8x512xf32> to vector<8x128xf32>
    %144 = arith.negf %143 : vector<8x128xf32>
    %145 = math.exp %144 : vector<8x128xf32>
    %cst_46 = arith.constant 1.000000e+00 : f32
    %146 = vector.broadcast %cst_46 : f32 to vector<8x128xf32>
    %147 = arith.addf %146, %145 : vector<8x128xf32>
    %148 = arith.divf %146, %147 : vector<8x128xf32>
    %149 = vector.extract_strided_slice %136 {offsets = [0, 256], sizes = [8, 128], strides = [1, 1]} : vector<8x512xf32> to vector<8x128xf32>
    %150 = vector.extract_strided_slice %136 {offsets = [0, 384], sizes = [8, 128], strides = [1, 1]} : vector<8x512xf32> to vector<8x128xf32>
    %151 = arith.mulf %142, %150 : vector<8x128xf32>
    %152 = arith.addf %149, %151 : vector<8x128xf32>
    %153 = math.tanh %152 : vector<8x128xf32>
    %cst_47 = arith.constant 1.000000e+00 : f32
    %154 = vector.broadcast %cst_47 : f32 to vector<8x128xf32>
    %155 = arith.subf %154, %148 : vector<8x128xf32>
    %156 = arith.mulf %155, %153 : vector<8x128xf32>
    %157 = arith.mulf %148, %102 : vector<8x128xf32>
    %158 = arith.addf %156, %157 : vector<8x128xf32>
    %c24 = arith.constant 24 : index
    %c0_48 = arith.constant 0 : index
    %159 = vector.load %arg6[%c24, %c0_48] : memref<64x384xf32, #tpu.memory_space<vmem>>, vector<8x384xf32>
    %c8_49 = arith.constant 8 : index
    %c0_50 = arith.constant 0 : index
    %160 = vector.load %arg2[%c8_49, %c0_50] : memref<392x512xf32, #tpu.memory_space<vmem>>, vector<128x384xf32>
    %cst_51 = arith.constant dense<0.000000e+00> : vector<8x384xf32>
    %161 = tpu.matmul %132, %160, %cst_51 {dimension_numbers = #tpu.dot_dimension_numbers<[1], [0], [0], [1], [0, 0, 1, 1], [], []>} : vector<8x128xf32>, vector<128x384xf32>, vector<8x384xf32> -> vector<8x384xf32>
    %162 = vector.extract_strided_slice %159 {offsets = [0, 0], sizes = [8, 128], strides = [1, 1]} : vector<8x384xf32> to vector<8x128xf32>
    %163 = vector.extract_strided_slice %161 {offsets = [0, 0], sizes = [8, 128], strides = [1, 1]} : vector<8x384xf32> to vector<8x128xf32>
    %164 = arith.addf %162, %163 : vector<8x128xf32>
    %165 = arith.negf %164 : vector<8x128xf32>
    %166 = math.exp %165 : vector<8x128xf32>
    %cst_52 = arith.constant 1.000000e+00 : f32
    %167 = vector.broadcast %cst_52 : f32 to vector<8x128xf32>
    %168 = arith.addf %167, %166 : vector<8x128xf32>
    %169 = arith.divf %167, %168 : vector<8x128xf32>
    %170 = vector.extract_strided_slice %159 {offsets = [0, 128], sizes = [8, 128], strides = [1, 1]} : vector<8x384xf32> to vector<8x128xf32>
    %171 = vector.extract_strided_slice %161 {offsets = [0, 128], sizes = [8, 128], strides = [1, 1]} : vector<8x384xf32> to vector<8x128xf32>
    %172 = arith.addf %170, %171 : vector<8x128xf32>
    %173 = arith.negf %172 : vector<8x128xf32>
    %174 = math.exp %173 : vector<8x128xf32>
    %cst_53 = arith.constant 1.000000e+00 : f32
    %175 = vector.broadcast %cst_53 : f32 to vector<8x128xf32>
    %176 = arith.addf %175, %174 : vector<8x128xf32>
    %177 = arith.divf %175, %176 : vector<8x128xf32>
    %178 = vector.extract_strided_slice %159 {offsets = [0, 256], sizes = [8, 128], strides = [1, 1]} : vector<8x384xf32> to vector<8x128xf32>
    %179 = vector.extract_strided_slice %161 {offsets = [0, 256], sizes = [8, 128], strides = [1, 1]} : vector<8x384xf32> to vector<8x128xf32>
    %180 = arith.addf %179, %3 : vector<8x128xf32>
    %181 = arith.mulf %169, %180 : vector<8x128xf32>
    %182 = arith.addf %178, %181 : vector<8x128xf32>
    %183 = math.tanh %182 : vector<8x128xf32>
    %cst_54 = arith.constant 1.000000e+00 : f32
    %184 = vector.broadcast %cst_54 : f32 to vector<8x128xf32>
    %185 = arith.subf %184, %177 : vector<8x128xf32>
    %186 = arith.mulf %185, %183 : vector<8x128xf32>
    %187 = arith.mulf %177, %132 : vector<8x128xf32>
    %188 = arith.addf %186, %187 : vector<8x128xf32>
    %189 = tpu.concatenate %132, %158 in 1 : vector<8x128xf32>, vector<8x128xf32> -> vector<8x256xf32>
    %c136_55 = arith.constant 136 : index
    %c0_56 = arith.constant 0 : index
    %190 = vector.load %arg2[%c136_55, %c0_56] : memref<392x512xf32, #tpu.memory_space<vmem>>, vector<256x512xf32>
    %cst_57 = arith.constant dense<0.000000e+00> : vector<8x512xf32>
    %191 = tpu.matmul %189, %190, %cst_57 {dimension_numbers = #tpu.dot_dimension_numbers<[1], [0], [0], [1], [0, 0, 1, 1], [], []>} : vector<8x256xf32>, vector<256x512xf32>, vector<8x512xf32> -> vector<8x512xf32>
    %192 = arith.addf %191, %6 : vector<8x512xf32>
    %193 = vector.extract_strided_slice %192 {offsets = [0, 0], sizes = [8, 128], strides = [1, 1]} : vector<8x512xf32> to vector<8x128xf32>
    %194 = arith.negf %193 : vector<8x128xf32>
    %195 = math.exp %194 : vector<8x128xf32>
    %cst_58 = arith.constant 1.000000e+00 : f32
    %196 = vector.broadcast %cst_58 : f32 to vector<8x128xf32>
    %197 = arith.addf %196, %195 : vector<8x128xf32>
    %198 = arith.divf %196, %197 : vector<8x128xf32>
    %199 = vector.extract_strided_slice %192 {offsets = [0, 128], sizes = [8, 128], strides = [1, 1]} : vector<8x512xf32> to vector<8x128xf32>
    %200 = arith.negf %199 : vector<8x128xf32>
    %201 = math.exp %200 : vector<8x128xf32>
    %cst_59 = arith.constant 1.000000e+00 : f32
    %202 = vector.broadcast %cst_59 : f32 to vector<8x128xf32>
    %203 = arith.addf %202, %201 : vector<8x128xf32>
    %204 = arith.divf %202, %203 : vector<8x128xf32>
    %205 = vector.extract_strided_slice %192 {offsets = [0, 256], sizes = [8, 128], strides = [1, 1]} : vector<8x512xf32> to vector<8x128xf32>
    %206 = vector.extract_strided_slice %192 {offsets = [0, 384], sizes = [8, 128], strides = [1, 1]} : vector<8x512xf32> to vector<8x128xf32>
    %207 = arith.mulf %198, %206 : vector<8x128xf32>
    %208 = arith.addf %205, %207 : vector<8x128xf32>
    %209 = math.tanh %208 : vector<8x128xf32>
    %cst_60 = arith.constant 1.000000e+00 : f32
    %210 = vector.broadcast %cst_60 : f32 to vector<8x128xf32>
    %211 = arith.subf %210, %204 : vector<8x128xf32>
    %212 = arith.mulf %211, %209 : vector<8x128xf32>
    %213 = arith.mulf %204, %158 : vector<8x128xf32>
    %214 = arith.addf %212, %213 : vector<8x128xf32>
    %c32 = arith.constant 32 : index
    %c0_61 = arith.constant 0 : index
    %215 = vector.load %arg6[%c32, %c0_61] : memref<64x384xf32, #tpu.memory_space<vmem>>, vector<8x384xf32>
    %c8_62 = arith.constant 8 : index
    %c0_63 = arith.constant 0 : index
    %216 = vector.load %arg2[%c8_62, %c0_63] : memref<392x512xf32, #tpu.memory_space<vmem>>, vector<128x384xf32>
    %cst_64 = arith.constant dense<0.000000e+00> : vector<8x384xf32>
    %217 = tpu.matmul %188, %216, %cst_64 {dimension_numbers = #tpu.dot_dimension_numbers<[1], [0], [0], [1], [0, 0, 1, 1], [], []>} : vector<8x128xf32>, vector<128x384xf32>, vector<8x384xf32> -> vector<8x384xf32>
    %218 = vector.extract_strided_slice %215 {offsets = [0, 0], sizes = [8, 128], strides = [1, 1]} : vector<8x384xf32> to vector<8x128xf32>
    %219 = vector.extract_strided_slice %217 {offsets = [0, 0], sizes = [8, 128], strides = [1, 1]} : vector<8x384xf32> to vector<8x128xf32>
    %220 = arith.addf %218, %219 : vector<8x128xf32>
    %221 = arith.negf %220 : vector<8x128xf32>
    %222 = math.exp %221 : vector<8x128xf32>
    %cst_65 = arith.constant 1.000000e+00 : f32
    %223 = vector.broadcast %cst_65 : f32 to vector<8x128xf32>
    %224 = arith.addf %223, %222 : vector<8x128xf32>
    %225 = arith.divf %223, %224 : vector<8x128xf32>
    %226 = vector.extract_strided_slice %215 {offsets = [0, 128], sizes = [8, 128], strides = [1, 1]} : vector<8x384xf32> to vector<8x128xf32>
    %227 = vector.extract_strided_slice %217 {offsets = [0, 128], sizes = [8, 128], strides = [1, 1]} : vector<8x384xf32> to vector<8x128xf32>
    %228 = arith.addf %226, %227 : vector<8x128xf32>
    %229 = arith.negf %228 : vector<8x128xf32>
    %230 = math.exp %229 : vector<8x128xf32>
    %cst_66 = arith.constant 1.000000e+00 : f32
    %231 = vector.broadcast %cst_66 : f32 to vector<8x128xf32>
    %232 = arith.addf %231, %230 : vector<8x128xf32>
    %233 = arith.divf %231, %232 : vector<8x128xf32>
    %234 = vector.extract_strided_slice %215 {offsets = [0, 256], sizes = [8, 128], strides = [1, 1]} : vector<8x384xf32> to vector<8x128xf32>
    %235 = vector.extract_strided_slice %217 {offsets = [0, 256], sizes = [8, 128], strides = [1, 1]} : vector<8x384xf32> to vector<8x128xf32>
    %236 = arith.addf %235, %3 : vector<8x128xf32>
    %237 = arith.mulf %225, %236 : vector<8x128xf32>
    %238 = arith.addf %234, %237 : vector<8x128xf32>
    %239 = math.tanh %238 : vector<8x128xf32>
    %cst_67 = arith.constant 1.000000e+00 : f32
    %240 = vector.broadcast %cst_67 : f32 to vector<8x128xf32>
    %241 = arith.subf %240, %233 : vector<8x128xf32>
    %242 = arith.mulf %241, %239 : vector<8x128xf32>
    %243 = arith.mulf %233, %188 : vector<8x128xf32>
    %244 = arith.addf %242, %243 : vector<8x128xf32>
    %245 = tpu.concatenate %188, %214 in 1 : vector<8x128xf32>, vector<8x128xf32> -> vector<8x256xf32>
    %c136_68 = arith.constant 136 : index
    %c0_69 = arith.constant 0 : index
    %246 = vector.load %arg2[%c136_68, %c0_69] : memref<392x512xf32, #tpu.memory_space<vmem>>, vector<256x512xf32>
    %cst_70 = arith.constant dense<0.000000e+00> : vector<8x512xf32>
    %247 = tpu.matmul %245, %246, %cst_70 {dimension_numbers = #tpu.dot_dimension_numbers<[1], [0], [0], [1], [0, 0, 1, 1], [], []>} : vector<8x256xf32>, vector<256x512xf32>, vector<8x512xf32> -> vector<8x512xf32>
    %248 = arith.addf %247, %6 : vector<8x512xf32>
    %249 = vector.extract_strided_slice %248 {offsets = [0, 0], sizes = [8, 128], strides = [1, 1]} : vector<8x512xf32> to vector<8x128xf32>
    %250 = arith.negf %249 : vector<8x128xf32>
    %251 = math.exp %250 : vector<8x128xf32>
    %cst_71 = arith.constant 1.000000e+00 : f32
    %252 = vector.broadcast %cst_71 : f32 to vector<8x128xf32>
    %253 = arith.addf %252, %251 : vector<8x128xf32>
    %254 = arith.divf %252, %253 : vector<8x128xf32>
    %255 = vector.extract_strided_slice %248 {offsets = [0, 128], sizes = [8, 128], strides = [1, 1]} : vector<8x512xf32> to vector<8x128xf32>
    %256 = arith.negf %255 : vector<8x128xf32>
    %257 = math.exp %256 : vector<8x128xf32>
    %cst_72 = arith.constant 1.000000e+00 : f32
    %258 = vector.broadcast %cst_72 : f32 to vector<8x128xf32>
    %259 = arith.addf %258, %257 : vector<8x128xf32>
    %260 = arith.divf %258, %259 : vector<8x128xf32>
    %261 = vector.extract_strided_slice %248 {offsets = [0, 256], sizes = [8, 128], strides = [1, 1]} : vector<8x512xf32> to vector<8x128xf32>
    %262 = vector.extract_strided_slice %248 {offsets = [0, 384], sizes = [8, 128], strides = [1, 1]} : vector<8x512xf32> to vector<8x128xf32>
    %263 = arith.mulf %254, %262 : vector<8x128xf32>
    %264 = arith.addf %261, %263 : vector<8x128xf32>
    %265 = math.tanh %264 : vector<8x128xf32>
    %cst_73 = arith.constant 1.000000e+00 : f32
    %266 = vector.broadcast %cst_73 : f32 to vector<8x128xf32>
    %267 = arith.subf %266, %260 : vector<8x128xf32>
    %268 = arith.mulf %267, %265 : vector<8x128xf32>
    %269 = arith.mulf %260, %214 : vector<8x128xf32>
    %270 = arith.addf %268, %269 : vector<8x128xf32>
    %c40 = arith.constant 40 : index
    %c0_74 = arith.constant 0 : index
    %271 = vector.load %arg6[%c40, %c0_74] : memref<64x384xf32, #tpu.memory_space<vmem>>, vector<8x384xf32>
    %c8_75 = arith.constant 8 : index
    %c0_76 = arith.constant 0 : index
    %272 = vector.load %arg2[%c8_75, %c0_76] : memref<392x512xf32, #tpu.memory_space<vmem>>, vector<128x384xf32>
    %cst_77 = arith.constant dense<0.000000e+00> : vector<8x384xf32>
    %273 = tpu.matmul %244, %272, %cst_77 {dimension_numbers = #tpu.dot_dimension_numbers<[1], [0], [0], [1], [0, 0, 1, 1], [], []>} : vector<8x128xf32>, vector<128x384xf32>, vector<8x384xf32> -> vector<8x384xf32>
    %274 = vector.extract_strided_slice %271 {offsets = [0, 0], sizes = [8, 128], strides = [1, 1]} : vector<8x384xf32> to vector<8x128xf32>
    %275 = vector.extract_strided_slice %273 {offsets = [0, 0], sizes = [8, 128], strides = [1, 1]} : vector<8x384xf32> to vector<8x128xf32>
    %276 = arith.addf %274, %275 : vector<8x128xf32>
    %277 = arith.negf %276 : vector<8x128xf32>
    %278 = math.exp %277 : vector<8x128xf32>
    %cst_78 = arith.constant 1.000000e+00 : f32
    %279 = vector.broadcast %cst_78 : f32 to vector<8x128xf32>
    %280 = arith.addf %279, %278 : vector<8x128xf32>
    %281 = arith.divf %279, %280 : vector<8x128xf32>
    %282 = vector.extract_strided_slice %271 {offsets = [0, 128], sizes = [8, 128], strides = [1, 1]} : vector<8x384xf32> to vector<8x128xf32>
    %283 = vector.extract_strided_slice %273 {offsets = [0, 128], sizes = [8, 128], strides = [1, 1]} : vector<8x384xf32> to vector<8x128xf32>
    %284 = arith.addf %282, %283 : vector<8x128xf32>
    %285 = arith.negf %284 : vector<8x128xf32>
    %286 = math.exp %285 : vector<8x128xf32>
    %cst_79 = arith.constant 1.000000e+00 : f32
    %287 = vector.broadcast %cst_79 : f32 to vector<8x128xf32>
    %288 = arith.addf %287, %286 : vector<8x128xf32>
    %289 = arith.divf %287, %288 : vector<8x128xf32>
    %290 = vector.extract_strided_slice %271 {offsets = [0, 256], sizes = [8, 128], strides = [1, 1]} : vector<8x384xf32> to vector<8x128xf32>
    %291 = vector.extract_strided_slice %273 {offsets = [0, 256], sizes = [8, 128], strides = [1, 1]} : vector<8x384xf32> to vector<8x128xf32>
    %292 = arith.addf %291, %3 : vector<8x128xf32>
    %293 = arith.mulf %281, %292 : vector<8x128xf32>
    %294 = arith.addf %290, %293 : vector<8x128xf32>
    %295 = math.tanh %294 : vector<8x128xf32>
    %cst_80 = arith.constant 1.000000e+00 : f32
    %296 = vector.broadcast %cst_80 : f32 to vector<8x128xf32>
    %297 = arith.subf %296, %289 : vector<8x128xf32>
    %298 = arith.mulf %297, %295 : vector<8x128xf32>
    %299 = arith.mulf %289, %244 : vector<8x128xf32>
    %300 = arith.addf %298, %299 : vector<8x128xf32>
    %301 = tpu.concatenate %244, %270 in 1 : vector<8x128xf32>, vector<8x128xf32> -> vector<8x256xf32>
    %c136_81 = arith.constant 136 : index
    %c0_82 = arith.constant 0 : index
    %302 = vector.load %arg2[%c136_81, %c0_82] : memref<392x512xf32, #tpu.memory_space<vmem>>, vector<256x512xf32>
    %cst_83 = arith.constant dense<0.000000e+00> : vector<8x512xf32>
    %303 = tpu.matmul %301, %302, %cst_83 {dimension_numbers = #tpu.dot_dimension_numbers<[1], [0], [0], [1], [0, 0, 1, 1], [], []>} : vector<8x256xf32>, vector<256x512xf32>, vector<8x512xf32> -> vector<8x512xf32>
    %304 = arith.addf %303, %6 : vector<8x512xf32>
    %305 = vector.extract_strided_slice %304 {offsets = [0, 0], sizes = [8, 128], strides = [1, 1]} : vector<8x512xf32> to vector<8x128xf32>
    %306 = arith.negf %305 : vector<8x128xf32>
    %307 = math.exp %306 : vector<8x128xf32>
    %cst_84 = arith.constant 1.000000e+00 : f32
    %308 = vector.broadcast %cst_84 : f32 to vector<8x128xf32>
    %309 = arith.addf %308, %307 : vector<8x128xf32>
    %310 = arith.divf %308, %309 : vector<8x128xf32>
    %311 = vector.extract_strided_slice %304 {offsets = [0, 128], sizes = [8, 128], strides = [1, 1]} : vector<8x512xf32> to vector<8x128xf32>
    %312 = arith.negf %311 : vector<8x128xf32>
    %313 = math.exp %312 : vector<8x128xf32>
    %cst_85 = arith.constant 1.000000e+00 : f32
    %314 = vector.broadcast %cst_85 : f32 to vector<8x128xf32>
    %315 = arith.addf %314, %313 : vector<8x128xf32>
    %316 = arith.divf %314, %315 : vector<8x128xf32>
    %317 = vector.extract_strided_slice %304 {offsets = [0, 256], sizes = [8, 128], strides = [1, 1]} : vector<8x512xf32> to vector<8x128xf32>
    %318 = vector.extract_strided_slice %304 {offsets = [0, 384], sizes = [8, 128], strides = [1, 1]} : vector<8x512xf32> to vector<8x128xf32>
    %319 = arith.mulf %310, %318 : vector<8x128xf32>
    %320 = arith.addf %317, %319 : vector<8x128xf32>
    %321 = math.tanh %320 : vector<8x128xf32>
    %cst_86 = arith.constant 1.000000e+00 : f32
    %322 = vector.broadcast %cst_86 : f32 to vector<8x128xf32>
    %323 = arith.subf %322, %316 : vector<8x128xf32>
    %324 = arith.mulf %323, %321 : vector<8x128xf32>
    %325 = arith.mulf %316, %270 : vector<8x128xf32>
    %326 = arith.addf %324, %325 : vector<8x128xf32>
    %c48 = arith.constant 48 : index
    %c0_87 = arith.constant 0 : index
    %327 = vector.load %arg6[%c48, %c0_87] : memref<64x384xf32, #tpu.memory_space<vmem>>, vector<8x384xf32>
    %c8_88 = arith.constant 8 : index
    %c0_89 = arith.constant 0 : index
    %328 = vector.load %arg2[%c8_88, %c0_89] : memref<392x512xf32, #tpu.memory_space<vmem>>, vector<128x384xf32>
    %cst_90 = arith.constant dense<0.000000e+00> : vector<8x384xf32>
    %329 = tpu.matmul %300, %328, %cst_90 {dimension_numbers = #tpu.dot_dimension_numbers<[1], [0], [0], [1], [0, 0, 1, 1], [], []>} : vector<8x128xf32>, vector<128x384xf32>, vector<8x384xf32> -> vector<8x384xf32>
    %330 = vector.extract_strided_slice %327 {offsets = [0, 0], sizes = [8, 128], strides = [1, 1]} : vector<8x384xf32> to vector<8x128xf32>
    %331 = vector.extract_strided_slice %329 {offsets = [0, 0], sizes = [8, 128], strides = [1, 1]} : vector<8x384xf32> to vector<8x128xf32>
    %332 = arith.addf %330, %331 : vector<8x128xf32>
    %333 = arith.negf %332 : vector<8x128xf32>
    %334 = math.exp %333 : vector<8x128xf32>
    %cst_91 = arith.constant 1.000000e+00 : f32
    %335 = vector.broadcast %cst_91 : f32 to vector<8x128xf32>
    %336 = arith.addf %335, %334 : vector<8x128xf32>
    %337 = arith.divf %335, %336 : vector<8x128xf32>
    %338 = vector.extract_strided_slice %327 {offsets = [0, 128], sizes = [8, 128], strides = [1, 1]} : vector<8x384xf32> to vector<8x128xf32>
    %339 = vector.extract_strided_slice %329 {offsets = [0, 128], sizes = [8, 128], strides = [1, 1]} : vector<8x384xf32> to vector<8x128xf32>
    %340 = arith.addf %338, %339 : vector<8x128xf32>
    %341 = arith.negf %340 : vector<8x128xf32>
    %342 = math.exp %341 : vector<8x128xf32>
    %cst_92 = arith.constant 1.000000e+00 : f32
    %343 = vector.broadcast %cst_92 : f32 to vector<8x128xf32>
    %344 = arith.addf %343, %342 : vector<8x128xf32>
    %345 = arith.divf %343, %344 : vector<8x128xf32>
    %346 = vector.extract_strided_slice %327 {offsets = [0, 256], sizes = [8, 128], strides = [1, 1]} : vector<8x384xf32> to vector<8x128xf32>
    %347 = vector.extract_strided_slice %329 {offsets = [0, 256], sizes = [8, 128], strides = [1, 1]} : vector<8x384xf32> to vector<8x128xf32>
    %348 = arith.addf %347, %3 : vector<8x128xf32>
    %349 = arith.mulf %337, %348 : vector<8x128xf32>
    %350 = arith.addf %346, %349 : vector<8x128xf32>
    %351 = math.tanh %350 : vector<8x128xf32>
    %cst_93 = arith.constant 1.000000e+00 : f32
    %352 = vector.broadcast %cst_93 : f32 to vector<8x128xf32>
    %353 = arith.subf %352, %345 : vector<8x128xf32>
    %354 = arith.mulf %353, %351 : vector<8x128xf32>
    %355 = arith.mulf %345, %300 : vector<8x128xf32>
    %356 = arith.addf %354, %355 : vector<8x128xf32>
    %357 = tpu.concatenate %300, %326 in 1 : vector<8x128xf32>, vector<8x128xf32> -> vector<8x256xf32>
    %c136_94 = arith.constant 136 : index
    %c0_95 = arith.constant 0 : index
    %358 = vector.load %arg2[%c136_94, %c0_95] : memref<392x512xf32, #tpu.memory_space<vmem>>, vector<256x512xf32>
    %cst_96 = arith.constant dense<0.000000e+00> : vector<8x512xf32>
    %359 = tpu.matmul %357, %358, %cst_96 {dimension_numbers = #tpu.dot_dimension_numbers<[1], [0], [0], [1], [0, 0, 1, 1], [], []>} : vector<8x256xf32>, vector<256x512xf32>, vector<8x512xf32> -> vector<8x512xf32>
    %360 = arith.addf %359, %6 : vector<8x512xf32>
    %361 = vector.extract_strided_slice %360 {offsets = [0, 0], sizes = [8, 128], strides = [1, 1]} : vector<8x512xf32> to vector<8x128xf32>
    %362 = arith.negf %361 : vector<8x128xf32>
    %363 = math.exp %362 : vector<8x128xf32>
    %cst_97 = arith.constant 1.000000e+00 : f32
    %364 = vector.broadcast %cst_97 : f32 to vector<8x128xf32>
    %365 = arith.addf %364, %363 : vector<8x128xf32>
    %366 = arith.divf %364, %365 : vector<8x128xf32>
    %367 = vector.extract_strided_slice %360 {offsets = [0, 128], sizes = [8, 128], strides = [1, 1]} : vector<8x512xf32> to vector<8x128xf32>
    %368 = arith.negf %367 : vector<8x128xf32>
    %369 = math.exp %368 : vector<8x128xf32>
    %cst_98 = arith.constant 1.000000e+00 : f32
    %370 = vector.broadcast %cst_98 : f32 to vector<8x128xf32>
    %371 = arith.addf %370, %369 : vector<8x128xf32>
    %372 = arith.divf %370, %371 : vector<8x128xf32>
    %373 = vector.extract_strided_slice %360 {offsets = [0, 256], sizes = [8, 128], strides = [1, 1]} : vector<8x512xf32> to vector<8x128xf32>
    %374 = vector.extract_strided_slice %360 {offsets = [0, 384], sizes = [8, 128], strides = [1, 1]} : vector<8x512xf32> to vector<8x128xf32>
    %375 = arith.mulf %366, %374 : vector<8x128xf32>
    %376 = arith.addf %373, %375 : vector<8x128xf32>
    %377 = math.tanh %376 : vector<8x128xf32>
    %cst_99 = arith.constant 1.000000e+00 : f32
    %378 = vector.broadcast %cst_99 : f32 to vector<8x128xf32>
    %379 = arith.subf %378, %372 : vector<8x128xf32>
    %380 = arith.mulf %379, %377 : vector<8x128xf32>
    %381 = arith.mulf %372, %326 : vector<8x128xf32>
    %382 = arith.addf %380, %381 : vector<8x128xf32>
    %c56 = arith.constant 56 : index
    %c0_100 = arith.constant 0 : index
    %383 = vector.load %arg6[%c56, %c0_100] : memref<64x384xf32, #tpu.memory_space<vmem>>, vector<8x384xf32>
    %c8_101 = arith.constant 8 : index
    %c0_102 = arith.constant 0 : index
    %384 = vector.load %arg2[%c8_101, %c0_102] : memref<392x512xf32, #tpu.memory_space<vmem>>, vector<128x384xf32>
    %cst_103 = arith.constant dense<0.000000e+00> : vector<8x384xf32>
    %385 = tpu.matmul %356, %384, %cst_103 {dimension_numbers = #tpu.dot_dimension_numbers<[1], [0], [0], [1], [0, 0, 1, 1], [], []>} : vector<8x128xf32>, vector<128x384xf32>, vector<8x384xf32> -> vector<8x384xf32>
    %386 = vector.extract_strided_slice %383 {offsets = [0, 0], sizes = [8, 128], strides = [1, 1]} : vector<8x384xf32> to vector<8x128xf32>
    %387 = vector.extract_strided_slice %385 {offsets = [0, 0], sizes = [8, 128], strides = [1, 1]} : vector<8x384xf32> to vector<8x128xf32>
    %388 = arith.addf %386, %387 : vector<8x128xf32>
    %389 = arith.negf %388 : vector<8x128xf32>
    %390 = math.exp %389 : vector<8x128xf32>
    %cst_104 = arith.constant 1.000000e+00 : f32
    %391 = vector.broadcast %cst_104 : f32 to vector<8x128xf32>
    %392 = arith.addf %391, %390 : vector<8x128xf32>
    %393 = arith.divf %391, %392 : vector<8x128xf32>
    %394 = vector.extract_strided_slice %383 {offsets = [0, 128], sizes = [8, 128], strides = [1, 1]} : vector<8x384xf32> to vector<8x128xf32>
    %395 = vector.extract_strided_slice %385 {offsets = [0, 128], sizes = [8, 128], strides = [1, 1]} : vector<8x384xf32> to vector<8x128xf32>
    %396 = arith.addf %394, %395 : vector<8x128xf32>
    %397 = arith.negf %396 : vector<8x128xf32>
    %398 = math.exp %397 : vector<8x128xf32>
    %cst_105 = arith.constant 1.000000e+00 : f32
    %399 = vector.broadcast %cst_105 : f32 to vector<8x128xf32>
    %400 = arith.addf %399, %398 : vector<8x128xf32>
    %401 = arith.divf %399, %400 : vector<8x128xf32>
    %402 = vector.extract_strided_slice %383 {offsets = [0, 256], sizes = [8, 128], strides = [1, 1]} : vector<8x384xf32> to vector<8x128xf32>
    %403 = vector.extract_strided_slice %385 {offsets = [0, 256], sizes = [8, 128], strides = [1, 1]} : vector<8x384xf32> to vector<8x128xf32>
    %404 = arith.addf %403, %3 : vector<8x128xf32>
    %405 = arith.mulf %393, %404 : vector<8x128xf32>
    %406 = arith.addf %402, %405 : vector<8x128xf32>
    %407 = math.tanh %406 : vector<8x128xf32>
    %cst_106 = arith.constant 1.000000e+00 : f32
    %408 = vector.broadcast %cst_106 : f32 to vector<8x128xf32>
    %409 = arith.subf %408, %401 : vector<8x128xf32>
    %410 = arith.mulf %409, %407 : vector<8x128xf32>
    %411 = arith.mulf %401, %356 : vector<8x128xf32>
    %412 = arith.addf %410, %411 : vector<8x128xf32>
    %413 = tpu.concatenate %356, %382 in 1 : vector<8x128xf32>, vector<8x128xf32> -> vector<8x256xf32>
    %c136_107 = arith.constant 136 : index
    %c0_108 = arith.constant 0 : index
    %414 = vector.load %arg2[%c136_107, %c0_108] : memref<392x512xf32, #tpu.memory_space<vmem>>, vector<256x512xf32>
    %cst_109 = arith.constant dense<0.000000e+00> : vector<8x512xf32>
    %415 = tpu.matmul %413, %414, %cst_109 {dimension_numbers = #tpu.dot_dimension_numbers<[1], [0], [0], [1], [0, 0, 1, 1], [], []>} : vector<8x256xf32>, vector<256x512xf32>, vector<8x512xf32> -> vector<8x512xf32>
    %416 = arith.addf %415, %6 : vector<8x512xf32>
    %417 = vector.extract_strided_slice %416 {offsets = [0, 0], sizes = [8, 128], strides = [1, 1]} : vector<8x512xf32> to vector<8x128xf32>
    %418 = arith.negf %417 : vector<8x128xf32>
    %419 = math.exp %418 : vector<8x128xf32>
    %cst_110 = arith.constant 1.000000e+00 : f32
    %420 = vector.broadcast %cst_110 : f32 to vector<8x128xf32>
    %421 = arith.addf %420, %419 : vector<8x128xf32>
    %422 = arith.divf %420, %421 : vector<8x128xf32>
    %423 = vector.extract_strided_slice %416 {offsets = [0, 128], sizes = [8, 128], strides = [1, 1]} : vector<8x512xf32> to vector<8x128xf32>
    %424 = arith.negf %423 : vector<8x128xf32>
    %425 = math.exp %424 : vector<8x128xf32>
    %cst_111 = arith.constant 1.000000e+00 : f32
    %426 = vector.broadcast %cst_111 : f32 to vector<8x128xf32>
    %427 = arith.addf %426, %425 : vector<8x128xf32>
    %428 = arith.divf %426, %427 : vector<8x128xf32>
    %429 = vector.extract_strided_slice %416 {offsets = [0, 256], sizes = [8, 128], strides = [1, 1]} : vector<8x512xf32> to vector<8x128xf32>
    %430 = vector.extract_strided_slice %416 {offsets = [0, 384], sizes = [8, 128], strides = [1, 1]} : vector<8x512xf32> to vector<8x128xf32>
    %431 = arith.mulf %422, %430 : vector<8x128xf32>
    %432 = arith.addf %429, %431 : vector<8x128xf32>
    %433 = math.tanh %432 : vector<8x128xf32>
    %cst_112 = arith.constant 1.000000e+00 : f32
    %434 = vector.broadcast %cst_112 : f32 to vector<8x128xf32>
    %435 = arith.subf %434, %428 : vector<8x128xf32>
    %436 = arith.mulf %435, %433 : vector<8x128xf32>
    %437 = arith.mulf %428, %382 : vector<8x128xf32>
    %438 = arith.addf %436, %437 : vector<8x128xf32>
    %439 = tpu.concatenate %412, %438 in 1 : vector<8x128xf32>, vector<8x128xf32> -> vector<8x256xf32>
    %c136_113 = arith.constant 136 : index
    %c0_114 = arith.constant 0 : index
    %440 = vector.load %arg2[%c136_113, %c0_114] : memref<392x512xf32, #tpu.memory_space<vmem>>, vector<256x512xf32>
    %cst_115 = arith.constant dense<0.000000e+00> : vector<8x512xf32>
    %441 = tpu.matmul %439, %440, %cst_115 {dimension_numbers = #tpu.dot_dimension_numbers<[1], [0], [0], [1], [0, 0, 1, 1], [], []>} : vector<8x256xf32>, vector<256x512xf32>, vector<8x512xf32> -> vector<8x512xf32>
    %442 = arith.addf %441, %6 : vector<8x512xf32>
    %443 = vector.extract_strided_slice %442 {offsets = [0, 0], sizes = [8, 128], strides = [1, 1]} : vector<8x512xf32> to vector<8x128xf32>
    %444 = arith.negf %443 : vector<8x128xf32>
    %445 = math.exp %444 : vector<8x128xf32>
    %cst_116 = arith.constant 1.000000e+00 : f32
    %446 = vector.broadcast %cst_116 : f32 to vector<8x128xf32>
    %447 = arith.addf %446, %445 : vector<8x128xf32>
    %448 = arith.divf %446, %447 : vector<8x128xf32>
    %449 = vector.extract_strided_slice %442 {offsets = [0, 128], sizes = [8, 128], strides = [1, 1]} : vector<8x512xf32> to vector<8x128xf32>
    %450 = arith.negf %449 : vector<8x128xf32>
    %451 = math.exp %450 : vector<8x128xf32>
    %cst_117 = arith.constant 1.000000e+00 : f32
    %452 = vector.broadcast %cst_117 : f32 to vector<8x128xf32>
    %453 = arith.addf %452, %451 : vector<8x128xf32>
    %454 = arith.divf %452, %453 : vector<8x128xf32>
    %455 = vector.extract_strided_slice %442 {offsets = [0, 256], sizes = [8, 128], strides = [1, 1]} : vector<8x512xf32> to vector<8x128xf32>
    %456 = vector.extract_strided_slice %442 {offsets = [0, 384], sizes = [8, 128], strides = [1, 1]} : vector<8x512xf32> to vector<8x128xf32>
    %457 = arith.mulf %448, %456 : vector<8x128xf32>
    %458 = arith.addf %455, %457 : vector<8x128xf32>
    %459 = math.tanh %458 : vector<8x128xf32>
    %cst_118 = arith.constant 1.000000e+00 : f32
    %460 = vector.broadcast %cst_118 : f32 to vector<8x128xf32>
    %461 = arith.subf %460, %454 : vector<8x128xf32>
    %462 = arith.mulf %461, %459 : vector<8x128xf32>
    %463 = arith.mulf %454, %438 : vector<8x128xf32>
    %464 = arith.addf %462, %463 : vector<8x128xf32>
    %c0_119 = arith.constant 0 : index
    %c0_120 = arith.constant 0 : index
    %c0_121 = arith.constant 0 : index
    %465 = vector.load %arg5[%c0_119, %c0_120, %c0_121] : memref<2x8x128xf32, #tpu.memory_space<vmem>>, vector<1x8x128xf32>
    %466 = vector.shape_cast %465 : vector<1x8x128xf32> to vector<8x128xf32>
    %467 = vector.shape_cast %412 : vector<8x128xf32> to vector<1x8x128xf32>
    tpu.vector_store %arg5[%c0_119, %c0_120, %c0_121], %467 {strides = array<i32>} : memref<2x8x128xf32, #tpu.memory_space<vmem>>, vector<1x8x128xf32>,
    %c1_122 = arith.constant 1 : index
    %c0_123 = arith.constant 0 : index
    %c0_124 = arith.constant 0 : index
    %468 = vector.load %arg5[%c1_122, %c0_123, %c0_124] : memref<2x8x128xf32, #tpu.memory_space<vmem>>, vector<1x8x128xf32>
    %469 = vector.shape_cast %468 : vector<1x8x128xf32> to vector<8x128xf32>
    %470 = vector.shape_cast %464 : vector<8x128xf32> to vector<1x8x128xf32>
    tpu.vector_store %arg5[%c1_122, %c0_123, %c0_124], %470 {strides = array<i32>} : memref<2x8x128xf32, #tpu.memory_space<vmem>>, vector<1x8x128xf32>,
    %cst_125 = arith.constant 0.000000e+00 : f32
    %471 = vector.broadcast %cst_125 : f32 to vector<8x128xf32>
    %472 = arith.maximumf %464, %471 : vector<8x128xf32>
    %c3 = arith.constant 3 : index
    %c0_126 = arith.constant 0 : index
    %473 = vector.load %arg3[%c3, %c0_126] : memref<8x512xf32, #tpu.memory_space<vmem>>, vector<1x128xf32>
    %474 = vector.broadcast %473 : vector<1x128xf32> to vector<8x128xf32>
    %475 = arith.mulf %472, %474 : vector<8x128xf32>
    %cst_127 = arith.constant dense<0.000000e+00> : vector<8xf32>
    %476 = vector.multi_reduction <add>, %475, %cst_127 [1] : vector<8x128xf32> to vector<8xf32>
    %477 = vector.shape_cast %476 : vector<8xf32> to vector<8x1xf32>
    %478 = vector.extract_strided_slice %477 {offsets = [0, 0], sizes = [2, 1], strides = [1, 1]} : vector<8x1xf32> to vector<2x1xf32>
    %c4 = arith.constant 4 : index
    %c0_128 = arith.constant 0 : index
    %479 = vector.load %arg3[%c4, %c0_128] : memref<8x512xf32, #tpu.memory_space<vmem>>, vector<1x1xf32>
    %480 = vector.broadcast %479 : vector<1x1xf32> to vector<2x1xf32>
    %481 = arith.addf %478, %480 : vector<2x1xf32>
    %c0_129 = arith.constant 0 : index
    %c0_130 = arith.constant 0 : index
    %482 = vector.load %arg4[%c0_129, %c0_130] : memref<2x1xf32, #tpu.memory_space<vmem>>, vector<2x1xf32>
    tpu.vector_store %arg4[%c0_129, %c0_130], %481 {strides = array<i32>} : memref<2x1xf32, #tpu.memory_space<vmem>>, vector<2x1xf32>,
    return
  }
}

</mosaic_0001>

<llo_original>
// kernel: grunet_forward.1
$region0: #{grunet_forward.1}
  #allocation0 [shape = 'u32[]', space=smem, size = 0x4, offset = 0x4, fixed_abs, tag = 'smem constant byte address 0x4 - core index']
  #allocation1 [shape = 'u32[144,128]{1,0:T(1,128)}', space=vmem, size = 0x12000, scoped, tag = 'internal scratch']
  #allocation2 [shape = 'f32[64,384]{1,0:T(8,128)}', space=vmem, size = 0x18000, scoped, tag = 'scratch operand']
  %s0 = inlined_call_operand.vmem [shape: f32[64,8], index: 0, kind: input, shape index: {}]
  %s1 = inlined_call_operand.vmem [shape: f32[2,8,128], index: 1, kind: input, shape index: {}, may-alias: {1,5}]
  %s2 = inlined_call_operand.hbm [shape: f32[392,512], index: 2, kind: input, shape index: {}]
  %s3 = inlined_call_operand.vmem [shape: f32[8,512], index: 3, kind: input, shape index: {}]
  %s4 = inlined_call_operand.vmem [shape: f32[2,1], index: 4, kind: output, shape index: {0}]
  %s5 = inlined_call_operand.vmem [shape: f32[2,8,128], index: 5, kind: output, shape index: {1}, may-alias: {1,5}]
  %6 = xla_tuple %s4, %s5
  %s7 = sld [smem:[#allocation0]]
  $region38: #{grunet_forward.1} parent=0
    _
  %s9 = ssub.s32 1, %s7
  %s10 = scalar_select 0, %s9, %s7
  $region1: #{grunet_forward.1} parent=0
    #allocation3 [shape = 'u8[802816]{0}', space=vmem, size = 0xc4000, scoped, tag = 'input window, operand 2, single buffered']
    #allocation4 [shape = 's32[1]{0}', space=sflag, size = 0x4, scoped, tag = 'scoped memory for grunet_forward.1']
    %11 = vsyncpa [#allocation4], 0
    // Predicated region
    $region2: #{grunet_forward.1} parent=1 // pred_check
      _
    $region3: #{grunet_forward.1} parent=1 // pred_check_branch
      %13 = sbr.rel (0) target = $region5
    $region4: #{grunet_forward.1} parent=1 // pred_region
      _
    $region5: #{grunet_forward.1} parent=1 // pred_fallthru
      _
    // Predicated region
    $region6: #{grunet_forward.1} parent=1 // pred_check
      _
    $region7: #{grunet_forward.1} parent=1 // pred_check_branch
      %15 = sbr.rel (0) target = $region9
    $region8: #{grunet_forward.1} parent=1 // pred_region
      _
    $region9: #{grunet_forward.1} parent=1 // pred_fallthru
      _
    // Predicated region
    $region10: #{grunet_forward.1} parent=1 // pred_check
      _
    $region11: #{grunet_forward.1} parent=1 // pred_check_branch
      %17 = sbr.rel (0) target = $region13
    $region12: #{grunet_forward.1} parent=1 // pred_region
      %s19 = ssub.s32 25088, 25088
      %20 = vsyncadd [#allocation4], %s19
      %s21 = sshll.u32 [#allocation3], 4
      %s22 = int_to_ptr.vmem [resolvable:$true] %s21
      %27 = dma.hbm_to_vmem [thread:$0]  %s2, 25088, %s22, [#allocation4], 512, 512, 32
    $region13: #{grunet_forward.1} parent=1 // pred_fallthru
      _
    // Predicated region
    $region14: #{grunet_forward.1} parent=1 // pred_check
      _
    $region15: #{grunet_forward.1} parent=1 // pred_check_branch
      %29 = sbr.rel (0) target = $region17
    $region16: #{grunet_forward.1} parent=1 // pred_region
      _
    $region17: #{grunet_forward.1} parent=1 // pred_fallthru
      _
    // Predicated region
    $region18: #{grunet_forward.1} parent=1 // pred_check
      _
    $region19: #{grunet_forward.1} parent=1 // pred_check_branch
      %31 = sbr.rel (0) target = $region21
    $region20: #{grunet_forward.1} parent=1 // pred_region
      %32 = dma.done [#allocation4], 25088
    $region21: #{grunet_forward.1} parent=1 // pred_fallthru
      _
    %v33 = vld [vmem:[%s3] ss:$8 sm:$0x7]
    %v34 = vld [vmem:[%s3 + $0x1] ss:$0 sm:$0xff]
    %s35 = scalar_lea.vmem %s3, 2
    %v36 = vld [vmem:[%s35] ss:$8 sm:$0xf]
    %v38 = vlaneseq
    %v39 = vshrl.u32 %v38, 7
    %v40 = vsub.s32 0, %v39
    %v41 = vrot.slane %v36, %v40
    %v42 = vlaneseq
    %v43 = vshrl.u32 %v42, 7
    %v44 = vsub.s32 1, %v43
    %v45 = vrot.slane %v36, %v44
    %v46 = vlaneseq
    %v47 = vshrl.u32 %v46, 7
    %v48 = vsub.s32 2, %v47
    %v49 = vrot.slane %v36, %v48
    %v50 = vlaneseq
    %v51 = vshrl.u32 %v50, 7
    %v52 = vsub.s32 3, %v51
    %v53 = vrot.slane %v36, %v52
    %v58 = vld [vmem:[%s0] sm:$0xff]
    %v59 = vld [vmem:[%s0 + $0x8] sm:$0xff]
    %v60 = vld [vmem:[%s0 + $0x10] sm:$0xff]
    %v61 = vld [vmem:[%s0 + $0x18] sm:$0xff]
    %v62 = vld [vmem:[%s0 + $0x20] sm:$0xff]
    %v63 = vld [vmem:[%s0 + $0x28] sm:$0xff]
    %v64 = vld [vmem:[%s0 + $0x30] sm:$0xff]
    %v65 = vld [vmem:[%s0 + $0x38] sm:$0xff]
    %v66 = vld [vmem:[#allocation3] sm:$0xff]
    %v67 = vld [vmem:[#allocation3 + $0x8] sm:$0xff]
    %v68 = vld [vmem:[#allocation3 + $0x10] sm:$0xff]
    %v70 = vlaneseq
    %v71 = vshrl.u32 %v70, 7
    %v72 = vsub.s32 0, %v71
    %v73 = vrot.slane %v33, %v72
    %v74 = vlaneseq
    %v75 = vshrl.u32 %v74, 7
    %v76 = vsub.s32 1, %v75
    %v77 = vrot.slane %v33, %v76
    %v78 = vlaneseq
    %v79 = vshrl.u32 %v78, 7
    %v80 = vsub.s32 2, %v79
    %v81 = vrot.slane %v33, %v80
    %vm85 = vcmask 64512
    %v87 = vsel %vm85, %v58, 0
    %v90 = vsel %vm85, %v59, 0
    %v93 = vsel %vm85, %v60, 0
    %v96 = vsel %vm85, %v61, 0
    %v99 = vsel %vm85, %v62, 0
    %v102 = vsel %vm85, %v63, 0
    %v105 = vsel %vm85, %v64, 0
    %v108 = vsel %vm85, %v65, 0
    %110 = vmatprep.subr.mxu0 %v67
    %111 = vmatpush1.msra.mxu0 %v66
    %112 = vmatprep.subr.mxu0 0.0
    %113 = vmatpush1.msra.mxu0 0.0
    %114 = vmatprep.subr.mxu0 0.0
    %115 = vmatpush1.msra.mxu0 0.0
    %116 = vmatprep.subr.mxu0 0.0
    %117 = vmatpush1.msra.mxu0 0.0
    %118 = vmatprep.subr.mxu0 0.0
    %119 = vmatpush1.msra.mxu0 0.0
    %120 = vmatprep.subr.mxu0 0.0
    %121 = vmatpush1.msra.mxu0 0.0
    %122 = vmatprep.subr.mxu0 0.0
    %123 = vmatpush1.msra.mxu0 0.0
    %124 = vmatprep.subr.mxu0 0.0
    %125 = vmatpush1.msra.mxu0 0.0
    %126 = vmatprep.subr.mxu0 0.0
    %127 = vmatpush1.msra.mxu0 0.0
    %128 = vmatprep.subr.mxu0 0.0
    %129 = vmatpush1.msra.mxu0 0.0
    %130 = vmatprep.subr.mxu0 0.0
    %131 = vmatpush1.msra.mxu0 0.0
    %132 = vmatprep.subr.mxu0 0.0
    %133 = vmatpush1.msra.mxu0 0.0
    %134 = vmatprep.subr.mxu0 0.0
    %135 = vmatpush1.msra.mxu0 0.0
    %136 = vmatprep.subr.mxu0 0.0
    %137 = vmatpush1.msra.mxu0 0.0
    %138 = vmatprep.subr.mxu0 0.0
    %139 = vmatpush1.msra.mxu0 0.0
    %140 = vmatprep.subr.mxu0 0.0
    %141 = vmatpush1.msra.mxu0 0.0
    %142 = vmatprep.subr.mxu0 0.0
    %143 = vmatpush1.msra.mxu0 0.0
    %144 = vmatprep.subr.mxu0 0.0
    %145 = vmatpush1.msra.mxu0 0.0
    %146 = vmatprep.subr.mxu0 0.0
    %147 = vmatpush1.msra.mxu0 0.0
    %148 = vmatprep.subr.mxu0 0.0
    %149 = vmatpush1.msra.mxu0 0.0
    %150 = vmatprep.subr.mxu0 0.0
    %151 = vmatpush1.msra.mxu0 0.0
    %152 = vmatprep.subr.mxu0 0.0
    %153 = vmatpush1.msra.mxu0 0.0
    %154 = vmatprep.subr.mxu0 0.0
    %155 = vmatpush1.msra.mxu0 0.0
    %156 = vmatprep.subr.mxu0 0.0
    %157 = vmatpush1.msra.mxu0 0.0
    %158 = vmatprep.subr.mxu0 0.0
    %159 = vmatpush1.msra.mxu0 0.0
    %160 = vmatprep.subr.mxu0 0.0
    %161 = vmatpush1.msra.mxu0 0.0
    %162 = vmatprep.subr.mxu0 0.0
    %163 = vmatpush1.msra.mxu0 0.0
    %164 = vmatprep.subr.mxu0 0.0
    %165 = vmatpush1.msra.mxu0 0.0
    %166 = vmatprep.subr.mxu0 0.0
    %167 = vmatpush1.msra.mxu0 0.0
    %168 = vmatprep.subr.mxu0 0.0
    %169 = vmatpush1.msra.mxu0 0.0
    %170 = vmatprep.subr.mxu0 0.0
    %171 = vmatpush1.msra.mxu0 0.0
    %172 = vmatprep.subr.mxu0 0.0
    %173 = vmatpush1.msra.mxu0 0.0
    %174 = vmatprep.mubr.f32.mxu0 0.0
    %175 = vmatmul.mubr.f32.gmra.mrb[0].mxu0 %v87
    %v176 = vpop.f32.mrb[0].mxu0
    %v177 = vadd.f32 %v73, %v176
    %v178 = vpop.f32.mrb[0].mxu0
    %v179 = vadd.f32 %v77, %v178
    %180 = vmatprep.mubr.f32.mxu0 0.0
    %181 = vmatmul.mubr.f32.gmra.mrb[0].mxu0 %v90
    %v182 = vpop.f32.mrb[0].mxu0
    %v183 = vadd.f32 %v73, %v182
    %v184 = vpop.f32.mrb[0].mxu0
    %v185 = vadd.f32 %v77, %v184
    %186 = vmatprep.mubr.f32.mxu0 0.0
    %187 = vmatmul.mubr.f32.gmra.mrb[0].mxu0 %v93
    %v188 = vpop.f32.mrb[0].mxu0
    %v189 = vadd.f32 %v73, %v188
    %v190 = vpop.f32.mrb[0].mxu0
    %v191 = vadd.f32 %v77, %v190
    %192 = vmatprep.mubr.f32.mxu0 0.0
    %193 = vmatmul.mubr.f32.gmra.mrb[0].mxu0 %v96
    %v194 = vpop.f32.mrb[0].mxu0
    %v195 = vadd.f32 %v73, %v194
    %v196 = vpop.f32.mrb[0].mxu0
    %v197 = vadd.f32 %v77, %v196
    %198 = vmatprep.mubr.f32.mxu0 0.0
    %199 = vmatmul.mubr.f32.gmra.mrb[0].mxu0 %v99
    %v200 = vpop.f32.mrb[0].mxu0
    %v201 = vadd.f32 %v73, %v200
    %v202 = vpop.f32.mrb[0].mxu0
    %v203 = vadd.f32 %v77, %v202
    %204 = vmatprep.mubr.f32.mxu0 0.0
    %205 = vmatmul.mubr.f32.gmra.mrb[0].mxu0 %v102
    %v206 = vpop.f32.mrb[0].mxu0
    %v207 = vadd.f32 %v73, %v206
    %v208 = vpop.f32.mrb[0].mxu0
    %v209 = vadd.f32 %v77, %v208
    %210 = vmatprep.mubr.f32.mxu0 0.0
    %211 = vmatmul.mubr.f32.gmra.mrb[0].mxu0 %v105
    %v212 = vpop.f32.mrb[0].mxu0
    %v213 = vadd.f32 %v73, %v212
    %v214 = vpop.f32.mrb[0].mxu0
    %v215 = vadd.f32 %v77, %v214
    %216 = vmatprep.mubr.f32.mxu0 0.0
    %217 = vmatmul.mubr.f32.gmra.mrb[0].mxu0 %v108
    %v218 = vpop.f32.mrb[0].mxu0
    %v219 = vadd.f32 %v73, %v218
    %v220 = vpop.f32.mrb[0].mxu0
    %v221 = vadd.f32 %v77, %v220
    %222 = vdwg.mxu0
    %223 = vmatprep.subr.mxu0 0.0
    %224 = vmatpush1.msra.mxu0 %v68
    %225 = vmatprep.subr.mxu0 0.0
    %226 = vmatpush1.msra.mxu0 0.0
    %227 = vmatprep.subr.mxu0 0.0
    %228 = vmatpush1.msra.mxu0 0.0
    %229 = vmatprep.subr.mxu0 0.0
    %230 = vmatpush1.msra.mxu0 0.0
    %231 = vmatprep.subr.mxu0 0.0
    %232 = vmatpush1.msra.mxu0 0.0
    %233 = vmatprep.subr.mxu0 0.0
    %234 = vmatpush1.msra.mxu0 0.0
    %235 = vmatprep.subr.mxu0 0.0
    %236 = vmatpush1.msra.mxu0 0.0
    %237 = vmatprep.subr.mxu0 0.0
    %238 = vmatpush1.msra.mxu0 0.0
    %239 = vmatprep.subr.mxu0 0.0
    %240 = vmatpush1.msra.mxu0 0.0
    %241 = vmatprep.subr.mxu0 0.0
    %242 = vmatpush1.msra.mxu0 0.0
    %243 = vmatprep.subr.mxu0 0.0
    %244 = vmatpush1.msra.mxu0 0.0
    %245 = vmatprep.subr.mxu0 0.0
    %246 = vmatpush1.msra.mxu0 0.0
    %247 = vmatprep.subr.mxu0 0.0
    %248 = vmatpush1.msra.mxu0 0.0
    %249 = vmatprep.subr.mxu0 0.0
    %250 = vmatpush1.msra.mxu0 0.0
    %251 = vmatprep.subr.mxu0 0.0
    %252 = vmatpush1.msra.mxu0 0.0
    %253 = vmatprep.subr.mxu0 0.0
    %254 = vmatpush1.msra.mxu0 0.0
    %255 = vmatprep.subr.mxu0 0.0
    %256 = vmatpush1.msra.mxu0 0.0
    %257 = vmatprep.subr.mxu0 0.0
    %258 = vmatpush1.msra.mxu0 0.0
    %259 = vmatprep.subr.mxu0 0.0
    %260 = vmatpush1.msra.mxu0 0.0
    %261 = vmatprep.subr.mxu0 0.0
    %262 = vmatpush1.msra.mxu0 0.0
    %263 = vmatprep.subr.mxu0 0.0
    %264 = vmatpush1.msra.mxu0 0.0
    %265 = vmatprep.subr.mxu0 0.0
    %266 = vmatpush1.msra.mxu0 0.0
    %267 = vmatprep.subr.mxu0 0.0
    %268 = vmatpush1.msra.mxu0 0.0
    %269 = vmatprep.subr.mxu0 0.0
    %270 = vmatpush1.msra.mxu0 0.0
    %271 = vmatprep.subr.mxu0 0.0
    %272 = vmatpush1.msra.mxu0 0.0
    %273 = vmatprep.subr.mxu0 0.0
    %274 = vmatpush1.msra.mxu0 0.0
    %275 = vmatprep.subr.mxu0 0.0
    %276 = vmatpush1.msra.mxu0 0.0
    %277 = vmatprep.subr.mxu0 0.0
    %278 = vmatpush1.msra.mxu0 0.0
    %279 = vmatprep.subr.mxu0 0.0
    %280 = vmatpush1.msra.mxu0 0.0
    %281 = vmatprep.subr.mxu0 0.0
    %282 = vmatpush1.msra.mxu0 0.0
    %283 = vmatprep.subr.mxu0 0.0
    %284 = vmatpush1.msra.mxu0 0.0
    %285 = vmatprep.subr.mxu0 0.0
    %286 = vmatpush1.msra.mxu0 0.0
    %287 = vmatprep.mubr.f32.mxu0 0.0
    %288 = vmatmul.mubr.f32.gmra.mrb[0].mxu0 %v87
    %v289 = vpop.f32.mrb[0].mxu0
    %v290 = vadd.f32 %v81, %v289
    %v291 = vpop.f32.mrb[0].mxu0
    %292 = vmatprep.mubr.f32.mxu0 0.0
    %293 = vmatmul.mubr.f32.gmra.mrb[0].mxu0 %v90
    %v294 = vpop.f32.mrb[0].mxu0
    %v295 = vadd.f32 %v81, %v294
    %v296 = vpop.f32.mrb[0].mxu0
    %297 = vmatprep.mubr.f32.mxu0 0.0
    %298 = vmatmul.mubr.f32.gmra.mrb[0].mxu0 %v93
    %v299 = vpop.f32.mrb[0].mxu0
    %v300 = vadd.f32 %v81, %v299
    %v301 = vpop.f32.mrb[0].mxu0
    %302 = vmatprep.mubr.f32.mxu0 0.0
    %303 = vmatmul.mubr.f32.gmra.mrb[0].mxu0 %v96
    %v304 = vpop.f32.mrb[0].mxu0
    %v305 = vadd.f32 %v81, %v304
    %v306 = vpop.f32.mrb[0].mxu0
    %307 = vmatprep.mubr.f32.mxu0 0.0
    %308 = vmatmul.mubr.f32.gmra.mrb[0].mxu0 %v99
    %v309 = vpop.f32.mrb[0].mxu0
    %v310 = vadd.f32 %v81, %v309
    %v311 = vpop.f32.mrb[0].mxu0
    %312 = vmatprep.mubr.f32.mxu0 0.0
    %313 = vmatmul.mubr.f32.gmra.mrb[0].mxu0 %v102
    %v314 = vpop.f32.mrb[0].mxu0
    %v315 = vadd.f32 %v81, %v314
    %v316 = vpop.f32.mrb[0].mxu0
    %317 = vmatprep.mubr.f32.mxu0 0.0
    %318 = vmatmul.mubr.f32.gmra.mrb[0].mxu0 %v105
    %v319 = vpop.f32.mrb[0].mxu0
    %v320 = vadd.f32 %v81, %v319
    %v321 = vpop.f32.mrb[0].mxu0
    %322 = vmatprep.mubr.f32.mxu0 0.0
    %323 = vmatmul.mubr.f32.gmra.mrb[0].mxu0 %v108
    %v324 = vpop.f32.mrb[0].mxu0
    %v325 = vadd.f32 %v81, %v324
    %v326 = vpop.f32.mrb[0].mxu0
    %327 = vdwg.mxu0
    %328 = vst [vmem:[#allocation2] sm:$0xff] %v177
    %329 = vst [vmem:[#allocation2 + $0x8] sm:$0xff] %v179
    %330 = vst [vmem:[#allocation2 + $0x10] sm:$0xff] %v290
    %331 = vst [vmem:[#allocation2 + $0x18] sm:$0xff] %v183
    %332 = vst [vmem:[#allocation2 + $0x20] sm:$0xff] %v185
    %333 = vst [vmem:[#allocation2 + $0x28] sm:$0xff] %v295
    %334 = vst [vmem:[#allocation2 + $0x30] sm:$0xff] %v189
    %335 = vst [vmem:[#allocation2 + $0x38] sm:$0xff] %v191
    %336 = vst [vmem:[#allocation2 + $0x40] sm:$0xff] %v300
    %337 = vst [vmem:[#allocation2 + $0x48] sm:$0xff] %v195
    %338 = vst [vmem:[#allocation2 + $0x50] sm:$0xff] %v197
    %339 = vst [vmem:[#allocation2 + $0x58] sm:$0xff] %v305
    %340 = vst [vmem:[#allocation2 + $0x60] sm:$0xff] %v201
    %341 = vst [vmem:[#allocation2 + $0x68] sm:$0xff] %v203
    %342 = vst [vmem:[#allocation2 + $0x70] sm:$0xff] %v310
    %343 = vst [vmem:[#allocation2 + $0x78] sm:$0xff] %v207
    %344 = vst [vmem:[#allocation2 + $0x80] sm:$0xff] %v209
    %345 = vst [vmem:[#allocation2 + $0x88] sm:$0xff] %v315
    %346 = vst [vmem:[#allocation2 + $0x90] sm:$0xff] %v213
    %347 = vst [vmem:[#allocation2 + $0x98] sm:$0xff] %v215
    %348 = vst [vmem:[#allocation2 + $0xa0] sm:$0xff] %v320
    %349 = vst [vmem:[#allocation2 + $0xa8] sm:$0xff] %v219
    %350 = vst [vmem:[#allocation2 + $0xb0] sm:$0xff] %v221
    %351 = vst [vmem:[#allocation2 + $0xb8] sm:$0xff] %v325
    %v352 = vld [vmem:[%s1] sm:$0xff]
    %s353 = scalar_lea.vmem %s1, 8
    %v354 = vld [vmem:[%s353] sm:$0xff]
    %v355 = vld [vmem:[#allocation2] sm:$0xff]
    %v356 = vld [vmem:[#allocation2 + $0x8] sm:$0xff]
    %v357 = vld [vmem:[#allocation2 + $0x10] sm:$0xff]
    %v358 = vld [vmem:[#allocation3 + $0x20] sm:$0xff]
    %v359 = vld [vmem:[#allocation3 + $0x28] sm:$0xff]
    %v360 = vld [vmem:[#allocation3 + $0x30] sm:$0xff]
    %v361 = vld [vmem:[#allocation3 + $0x40] sm:$0xff]
    %v362 = vld [vmem:[#allocation3 + $0x48] sm:$0xff]
    %v363 = vld [vmem:[#allocation3 + $0x50] sm:$0xff]
    %v364 = vld [vmem:[#allocation3 + $0x60] sm:$0xff]
    %v365 = vld [vmem:[#allocation3 + $0x68] sm:$0xff]
    %v366 = vld [vmem:[#allocation3 + $0x70] sm:$0xff]
    %v367 = vld [vmem:[#allocation3 + $0x80] sm:$0xff]
    %v368 = vld [vmem:[#allocation3 + $0x88] sm:$0xff]
    %v369 = vld [vmem:[#allocation3 + $0x90] sm:$0xff]
    %v370 = vld [vmem:[#allocation3 + $0xa0] sm:$0xff]
    %v371 = vld [vmem:[#allocation3 + $0xa8] sm:$0xff]
    %v372 = vld [vmem:[#allocation3 + $0xb0] sm:$0xff]
    %v373 = vld [vmem:[#allocation3 + $0xc0] sm:$0xff]
    %v374 = vld [vmem:[#allocation3 + $0xc8] sm:$0xff]
    %v375 = vld [vmem:[#allocation3 + $0xd0] sm:$0xff]
    %v376 = vld [vmem:[#allocation3 + $0xe0] sm:$0xff]
    %v377 = vld [vmem:[#allocation3 + $0xe8] sm:$0xff]
    %v378 = vld [vmem:[#allocation3 + $0xf0] sm:$0xff]
    %v379 = vld [vmem:[#allocation3 + $0x100] sm:$0xff]
    %v380 = vld [vmem:[#allocation3 + $0x108] sm:$0xff]
    %v381 = vld [vmem:[#allocation3 + $0x110] sm:$0xff]
    %v382 = vld [vmem:[#allocation3 + $0x120] sm:$0xff]
    %v383 = vld [vmem:[#allocation3 + $0x128] sm:$0xff]
    %v384 = vld [vmem:[#allocation3 + $0x130] sm:$0xff]
    %v385 = vld [vmem:[#allocation3 + $0x140] sm:$0xff]
    %v386 = vld [vmem:[#allocation3 + $0x148] sm:$0xff]
    %v387 = vld [vmem:[#allocation3 + $0x150] sm:$0xff]
    %v388 = vld [vmem:[#allocation3 + $0x160] sm:$0xff]
    %v389 = vld [vmem:[#allocation3 + $0x168] sm:$0xff]
    %v390 = vld [vmem:[#allocation3 + $0x170] sm:$0xff]
    %v391 = vld [vmem:[#allocation3 + $0x180] sm:$0xff]
    %v392 = vld [vmem:[#allocation3 + $0x188] sm:$0xff]
    %v393 = vld [vmem:[#allocation3 + $0x190] sm:$0xff]
    %v394 = vld [vmem:[#allocation3 + $0x1a0] sm:$0xff]
    %v395 = vld [vmem:[#allocation3 + $0x1a8] sm:$0xff]
    %v396 = vld [vmem:[#allocation3 + $0x1b0] sm:$0xff]
    %v397 = vld [vmem:[#allocation3 + $0x1c0] sm:$0xff]
    %v398 = vld [vmem:[#allocation3 + $0x1c8] sm:$0xff]
    %v399 = vld [vmem:[#allocation3 + $0x1d0] sm:$0xff]
    %v400 = vld [vmem:[#allocation3 + $0x1e0] sm:$0xff]
    %v401 = vld [vmem:[#allocation3 + $0x1e8] sm:$0xff]
    %v402 = vld [vmem:[#allocation3 + $0x1f0] sm:$0xff]
    %v403 = vld [vmem:[#allocation3 + $0x200] sm:$0xff]
    %v404 = vld [vmem:[#allocation3 + $0x208] sm:$0xff]
    %v405 = vld [vmem:[#allocation3 + $0x210] sm:$0xff]
    %406 = vmatprep.subr.mxu0 %v359
    %407 = vmatpush1.msra.mxu0 %v358
    %408 = vmatprep.subr.mxu0 %v362
    %409 = vmatpush1.msra.mxu0 %v361
    %410 = vmatprep.subr.mxu0 %v365
    %411 = vmatpush1.msra.mxu0 %v364
    %412 = vmatprep.subr.mxu0 %v368
    %413 = vmatpush1.msra.mxu0 %v367
    %414 = vmatprep.subr.mxu0 %v371
    %415 = vmatpush1.msra.mxu0 %v370
    %416 = vmatprep.subr.mxu0 %v374
    %417 = vmatpush1.msra.mxu0 %v373
    %418 = vmatprep.subr.mxu0 %v377
    %419 = vmatpush1.msra.mxu0 %v376
    %420 = vmatprep.subr.mxu0 %v380
    %421 = vmatpush1.msra.mxu0 %v379
    %422 = vmatprep.subr.mxu0 %v383
    %423 = vmatpush1.msra.mxu0 %v382
    %424 = vmatprep.subr.mxu0 %v386
    %425 = vmatpush1.msra.mxu0 %v385
    %426 = vmatprep.subr.mxu0 %v389
    %427 = vmatpush1.msra.mxu0 %v388
    %428 = vmatprep.subr.mxu0 %v392
    %429 = vmatpush1.msra.mxu0 %v391
    %430 = vmatprep.subr.mxu0 %v395
    %431 = vmatpush1.msra.mxu0 %v394
    %432 = vmatprep.subr.mxu0 %v398
    %433 = vmatpush1.msra.mxu0 %v397
    %434 = vmatprep.subr.mxu0 %v401
    %435 = vmatpush1.msra.mxu0 %v400
    %436 = vmatprep.subr.mxu0 %v404
    %437 = vmatpush1.msra.mxu0 %v403
    %438 = vmatprep.subr.mxu0 0.0
    %439 = vmatpush1.msra.mxu0 0.0
    %440 = vmatprep.subr.mxu0 0.0
    %441 = vmatpush1.msra.mxu0 0.0
    %442 = vmatprep.subr.mxu0 0.0
    %443 = vmatpush1.msra.mxu0 0.0
    %444 = vmatprep.subr.mxu0 0.0
    %445 = vmatpush1.msra.mxu0 0.0
    %446 = vmatprep.subr.mxu0 0.0
    %447 = vmatpush1.msra.mxu0 0.0
    %448 = vmatprep.subr.mxu0 0.0
    %449 = vmatpush1.msra.mxu0 0.0
    %450 = vmatprep.subr.mxu0 0.0
    %451 = vmatpush1.msra.mxu0 0.0
    %452 = vmatprep.subr.mxu0 0.0
    %453 = vmatpush1.msra.mxu0 0.0
    %454 = vmatprep.subr.mxu0 0.0
    %455 = vmatpush1.msra.mxu0 0.0
    %456 = vmatprep.subr.mxu0 0.0
    %457 = vmatpush1.msra.mxu0 0.0
    %458 = vmatprep.subr.mxu0 0.0
    %459 = vmatpush1.msra.mxu0 0.0
    %460 = vmatprep.subr.mxu0 0.0
    %461 = vmatpush1.msra.mxu0 0.0
    %462 = vmatprep.subr.mxu0 0.0
    %463 = vmatpush1.msra.mxu0 0.0
    %464 = vmatprep.subr.mxu0 0.0
    %465 = vmatpush1.msra.mxu0 0.0
    %466 = vmatprep.subr.mxu0 0.0
    %467 = vmatpush1.msra.mxu0 0.0
    %468 = vmatprep.subr.mxu0 0.0
    %469 = vmatpush1.msra.mxu0 0.0
    %470 = vmatprep.mubr.f32.mxu0 0.0
    %471 = vmatmul.mubr.f32.gmra.mrb[0].mxu0 %v352
    %v472 = vpop.f32.mrb[0].mxu0
    %v473 = vadd.f32 0.0, %v472
    %v474 = vpop.f32.mrb[0].mxu0
    %v475 = vadd.f32 0.0, %v474
    %476 = vdwg.mxu0
    %477 = vmatprep.subr.mxu0 0.0
    %478 = vmatpush1.msra.mxu0 %v360
    %479 = vmatprep.subr.mxu0 0.0
    %480 = vmatpush1.msra.mxu0 %v363
    %481 = vmatprep.subr.mxu0 0.0
    %482 = vmatpush1.msra.mxu0 %v366
    %483 = vmatprep.subr.mxu0 0.0
    %484 = vmatpush1.msra.mxu0 %v369
    %485 = vmatprep.subr.mxu0 0.0
    %486 = vmatpush1.msra.mxu0 %v372
    %487 = vmatprep.subr.mxu0 0.0
    %488 = vmatpush1.msra.mxu0 %v375
    %489 = vmatprep.subr.mxu0 0.0
    %490 = vmatpush1.msra.mxu0 %v378
    %491 = vmatprep.subr.mxu0 0.0
    %492 = vmatpush1.msra.mxu0 %v381
    %493 = vmatprep.subr.mxu0 0.0
    %494 = vmatpush1.msra.mxu0 %v384
    %495 = vmatprep.subr.mxu0 0.0
    %496 = vmatpush1.msra.mxu0 %v387
    %497 = vmatprep.subr.mxu0 0.0
    %498 = vmatpush1.msra.mxu0 %v390
    %499 = vmatprep.subr.mxu0 0.0
    %500 = vmatpush1.msra.mxu0 %v393
    %501 = vmatprep.subr.mxu0 0.0
    %502 = vmatpush1.msra.mxu0 %v396
    %503 = vmatprep.subr.mxu0 0.0
    %504 = vmatpush1.msra.mxu0 %v399
    %505 = vmatprep.subr.mxu0 0.0
    %506 = vmatpush1.msra.mxu0 %v402
    %507 = vmatprep.subr.mxu0 0.0
    %508 = vmatpush1.msra.mxu0 %v405
    %509 = vmatprep.subr.mxu0 0.0
    %510 = vmatpush1.msra.mxu0 0.0
    %511 = vmatprep.subr.mxu0 0.0
    %512 = vmatpush1.msra.mxu0 0.0
    %513 = vmatprep.subr.mxu0 0.0
    %514 = vmatpush1.msra.mxu0 0.0
    %515 = vmatprep.subr.mxu0 0.0
    %516 = vmatpush1.msra.mxu0 0.0
    %517 = vmatprep.subr.mxu0 0.0
    %518 = vmatpush1.msra.mxu0 0.0
    %519 = vmatprep.subr.mxu0 0.0
    %520 = vmatpush1.msra.mxu0 0.0
    %521 = vmatprep.subr.mxu0 0.0
    %522 = vmatpush1.msra.mxu0 0.0
    %523 = vmatprep.subr.mxu0 0.0
    %524 = vmatpush1.msra.mxu0 0.0
    %525 = vmatprep.subr.mxu0 0.0
    %526 = vmatpush1.msra.mxu0 0.0
    %527 = vmatprep.subr.mxu0 0.0
    %528 = vmatpush1.msra.mxu0 0.0
    %529 = vmatprep.subr.mxu0 0.0
    %530 = vmatpush1.msra.mxu0 0.0
    %531 = vmatprep.subr.mxu0 0.0
    %532 = vmatpush1.msra.mxu0 0.0
    %533 = vmatprep.subr.mxu0 0.0
    %534 = vmatpush1.msra.mxu0 0.0
    %535 = vmatprep.subr.mxu0 0.0
    %536 = vmatpush1.msra.mxu0 0.0
    %537 = vmatprep.subr.mxu0 0.0
    %538 = vmatpush1.msra.mxu0 0.0
    %539 = vmatprep.subr.mxu0 0.0
    %540 = vmatpush1.msra.mxu0 0.0
    %541 = vmatprep.mubr.f32.mxu0 0.0
    %542 = vmatmul.mubr.f32.gmra.mrb[0].mxu0 %v352
    %v543 = vpop.f32.mrb[0].mxu0
    %v544 = vadd.f32 0.0, %v543
    %v545 = vpop.f32.mrb[0].mxu0
    %546 = vdwg.mxu0
    %v547 = vadd.f32 %v355, %v473
    %v548 = vxor.u32 %v547, 2147483648
    %v549 = vmul.f32 %v548, 1.442695
    %v550 = vpow.pop %v549
    %v551 = vadd.f32 %v550, 1.0
    %v552 = vrcp.pop %v551
    %v553 = vmul.f32 1.0, %v552
    %v554 = vadd.f32 %v356, %v475
    %v555 = vxor.u32 %v554, 2147483648
    %v556 = vmul.f32 %v555, 1.442695
    %v557 = vpow.pop %v556
    %v558 = vadd.f32 %v557, 1.0
    %v559 = vrcp.pop %v558
    %v560 = vmul.f32 1.0, %v559
    %v561 = vadd.f32 %v544, %v34
    %v562 = vmul.f32 %v553, %v561
    %v563 = vadd.f32 %v357, %v562
    %v564 = vtanh.pop %v563
    %v565 = vsub.f32 1.0, %v560
    %v566 = vmul.f32 %v565, %v564
    %v567 = vmul.f32 %v560, %v352
    %v568 = vadd.f32 %v566, %v567
    %v569 = vld [vmem:[#allocation2 + $0x18] sm:$0xff]
    %v570 = vld [vmem:[#allocation2 + $0x20] sm:$0xff]
    %v571 = vld [vmem:[#allocation2 + $0x28] sm:$0xff]
    %572 = vmatprep.subr.mxu0 %v359
    %573 = vmatpush1.msra.mxu0 %v358
    %574 = vmatprep.subr.mxu0 %v362
    %575 = vmatpush1.msra.mxu0 %v361
    %576 = vmatprep.subr.mxu0 %v365
    %577 = vmatpush1.msra.mxu0 %v364
    %578 = vmatprep.subr.mxu0 %v368
    %579 = vmatpush1.msra.mxu0 %v367
    %580 = vmatprep.subr.mxu0 %v371
    %581 = vmatpush1.msra.mxu0 %v370
    %582 = vmatprep.subr.mxu0 %v374
    %583 = vmatpush1.msra.mxu0 %v373
    %584 = vmatprep.subr.mxu0 %v377
    %585 = vmatpush1.msra.mxu0 %v376
    %586 = vmatprep.subr.mxu0 %v380
    %587 = vmatpush1.msra.mxu0 %v379
    %588 = vmatprep.subr.mxu0 %v383
    %589 = vmatpush1.msra.mxu0 %v382
    %590 = vmatprep.subr.mxu0 %v386
    %591 = vmatpush1.msra.mxu0 %v385
    %592 = vmatprep.subr.mxu0 %v389
    %593 = vmatpush1.msra.mxu0 %v388
    %594 = vmatprep.subr.mxu0 %v392
    %595 = vmatpush1.msra.mxu0 %v391
    %596 = vmatprep.subr.mxu0 %v395
    %597 = vmatpush1.msra.mxu0 %v394
    %598 = vmatprep.subr.mxu0 %v398
    %599 = vmatpush1.msra.mxu0 %v397
    %600 = vmatprep.subr.mxu0 %v401
    %601 = vmatpush1.msra.mxu0 %v400
    %602 = vmatprep.subr.mxu0 %v404
    %603 = vmatpush1.msra.mxu0 %v403
    %604 = vmatprep.subr.mxu0 0.0
    %605 = vmatpush1.msra.mxu0 0.0
    %606 = vmatprep.subr.mxu0 0.0
    %607 = vmatpush1.msra.mxu0 0.0
    %608 = vmatprep.subr.mxu0 0.0
    %609 = vmatpush1.msra.mxu0 0.0
    %610 = vmatprep.subr.mxu0 0.0
    %611 = vmatpush1.msra.mxu0 0.0
    %612 = vmatprep.subr.mxu0 0.0
    %613 = vmatpush1.msra.mxu0 0.0
    %614 = vmatprep.subr.mxu0 0.0
    %615 = vmatpush1.msra.mxu0 0.0
    %616 = vmatprep.subr.mxu0 0.0
    %617 = vmatpush1.msra.mxu0 0.0
    %618 = vmatprep.subr.mxu0 0.0
    %619 = vmatpush1.msra.mxu0 0.0
    %620 = vmatprep.subr.mxu0 0.0
    %621 = vmatpush1.msra.mxu0 0.0
    %622 = vmatprep.subr.mxu0 0.0
    %623 = vmatpush1.msra.mxu0 0.0
    %624 = vmatprep.subr.mxu0 0.0
    %625 = vmatpush1.msra.mxu0 0.0
    %626 = vmatprep.subr.mxu0 0.0
    %627 = vmatpush1.msra.mxu0 0.0
    %628 = vmatprep.subr.mxu0 0.0
    %629 = vmatpush1.msra.mxu0 0.0
    %630 = vmatprep.subr.mxu0 0.0
    %631 = vmatpush1.msra.mxu0 0.0
    %632 = vmatprep.subr.mxu0 0.0
    %633 = vmatpush1.msra.mxu0 0.0
    %634 = vmatprep.subr.mxu0 0.0
    %635 = vmatpush1.msra.mxu0 0.0
    %636 = vmatprep.mubr.f32.mxu0 0.0
    %637 = vmatmul.mubr.f32.gmra.mrb[0].mxu0 %v568
    %v638 = vpop.f32.mrb[0].mxu0
    %v639 = vadd.f32 0.0, %v638
    %v640 = vpop.f32.mrb[0].mxu0
    %v641 = vadd.f32 0.0, %v640
    %642 = vdwg.mxu0
    %643 = vmatprep.subr.mxu0 0.0
    %644 = vmatpush1.msra.mxu0 %v360
    %645 = vmatprep.subr.mxu0 0.0
    %646 = vmatpush1.msra.mxu0 %v363
    %647 = vmatprep.subr.mxu0 0.0
    %648 = vmatpush1.msra.mxu0 %v366
    %649 = vmatprep.subr.mxu0 0.0
    %650 = vmatpush1.msra.mxu0 %v369
    %651 = vmatprep.subr.mxu0 0.0
    %652 = vmatpush1.msra.mxu0 %v372
    %653 = vmatprep.subr.mxu0 0.0
    %654 = vmatpush1.msra.mxu0 %v375
    %655 = vmatprep.subr.mxu0 0.0
    %656 = vmatpush1.msra.mxu0 %v378
    %657 = vmatprep.subr.mxu0 0.0
    %658 = vmatpush1.msra.mxu0 %v381
    %659 = vmatprep.subr.mxu0 0.0
    %660 = vmatpush1.msra.mxu0 %v384
    %661 = vmatprep.subr.mxu0 0.0
    %662 = vmatpush1.msra.mxu0 %v387
    %663 = vmatprep.subr.mxu0 0.0
    %664 = vmatpush1.msra.mxu0 %v390
    %665 = vmatprep.subr.mxu0 0.0
    %666 = vmatpush1.msra.mxu0 %v393
    %667 = vmatprep.subr.mxu0 0.0
    %668 = vmatpush1.msra.mxu0 %v396
    %669 = vmatprep.subr.mxu0 0.0
    %670 = vmatpush1.msra.mxu0 %v399
    %671 = vmatprep.subr.mxu0 0.0
    %672 = vmatpush1.msra.mxu0 %v402
    %673 = vmatprep.subr.mxu0 0.0
    %674 = vmatpush1.msra.mxu0 %v405
    %675 = vmatprep.subr.mxu0 0.0
    %676 = vmatpush1.msra.mxu0 0.0
    %677 = vmatprep.subr.mxu0 0.0
    %678 = vmatpush1.msra.mxu0 0.0
    %679 = vmatprep.subr.mxu0 0.0
    %680 = vmatpush1.msra.mxu0 0.0
    %681 = vmatprep.subr.mxu0 0.0
    %682 = vmatpush1.msra.mxu0 0.0
    %683 = vmatprep.subr.mxu0 0.0
    %684 = vmatpush1.msra.mxu0 0.0
    %685 = vmatprep.subr.mxu0 0.0
    %686 = vmatpush1.msra.mxu0 0.0
    %687 = vmatprep.subr.mxu0 0.0
    %688 = vmatpush1.msra.mxu0 0.0
    %689 = vmatprep.subr.mxu0 0.0
    %690 = vmatpush1.msra.mxu0 0.0
    %691 = vmatprep.subr.mxu0 0.0
    %692 = vmatpush1.msra.mxu0 0.0
    %693 = vmatprep.subr.mxu0 0.0
    %694 = vmatpush1.msra.mxu0 0.0
    %695 = vmatprep.subr.mxu0 0.0
    %696 = vmatpush1.msra.mxu0 0.0
    %697 = vmatprep.subr.mxu0 0.0
    %698 = vmatpush1.msra.mxu0 0.0
    %699 = vmatprep.subr.mxu0 0.0
    %700 = vmatpush1.msra.mxu0 0.0
    %701 = vmatprep.subr.mxu0 0.0
    %702 = vmatpush1.msra.mxu0 0.0
    %703 = vmatprep.subr.mxu0 0.0
    %704 = vmatpush1.msra.mxu0 0.0
    %705 = vmatprep.subr.mxu0 0.0
    %706 = vmatpush1.msra.mxu0 0.0
    %707 = vmatprep.mubr.f32.mxu0 0.0
    %708 = vmatmul.mubr.f32.gmra.mrb[0].mxu0 %v568
    %v709 = vpop.f32.mrb[0].mxu0
    %v710 = vadd.f32 0.0, %v709
    %v711 = vpop.f32.mrb[0].mxu0
    %712 = vdwg.mxu0
    %v713 = vadd.f32 %v569, %v639
    %v714 = vxor.u32 %v713, 2147483648
    %v715 = vmul.f32 %v714, 1.442695
    %v716 = vpow.pop %v715
    %v717 = vadd.f32 %v716, 1.0
    %v718 = vrcp.pop %v717
    %v719 = vmul.f32 1.0, %v718
    %v720 = vadd.f32 %v570, %v641
    %v721 = vxor.u32 %v720, 2147483648
    %v722 = vmul.f32 %v721, 1.442695
    %v723 = vpow.pop %v722
    %v724 = vadd.f32 %v723, 1.0
    %v725 = vrcp.pop %v724
    %v726 = vmul.f32 1.0, %v725
    %v727 = vadd.f32 %v710, %v34
    %v728 = vmul.f32 %v719, %v727
    %v729 = vadd.f32 %v571, %v728
    %v730 = vtanh.pop %v729
    %v731 = vsub.f32 1.0, %v726
    %v732 = vmul.f32 %v731, %v730
    %v733 = vmul.f32 %v726, %v568
    %v734 = vadd.f32 %v732, %v733
    %v735 = vld [vmem:[#allocation3 + $0x220] sm:$0xff]
    %v736 = vld [vmem:[#allocation3 + $0x228] sm:$0xff]
    %v737 = vld [vmem:[#allocation3 + $0x230] sm:$0xff]
    %v738 = vld [vmem:[#allocation3 + $0x238] sm:$0xff]
    %v739 = vld [vmem:[#allocation3 + $0x240] sm:$0xff]
    %v740 = vld [vmem:[#allocation3 + $0x248] sm:$0xff]
    %v741 = vld [vmem:[#allocation3 + $0x250] sm:$0xff]
    %v742 = vld [vmem:[#allocation3 + $0x258] sm:$0xff]
    %v743 = vld [vmem:[#allocation3 + $0x260] sm:$0xff]
    %v744 = vld [vmem:[#allocation3 + $0x268] sm:$0xff]
    %v745 = vld [vmem:[#allocation3 + $0x270] sm:$0xff]
    %v746 = vld [vmem:[#allocation3 + $0x278] sm:$0xff]
    %v747 = vld [vmem:[#allocation3 + $0x280] sm:$0xff]
    %v748 = vld [vmem:[#allocation3 + $0x288] sm:$0xff]
    %v749 = vld [vmem:[#allocation3 + $0x290] sm:$0xff]
    %v750 = vld [vmem:[#allocation3 + $0x298] sm:$0xff]
    %v751 = vld [vmem:[#allocation3 + $0x2a0] sm:$0xff]
    %v752 = vld [vmem:[#allocation3 + $0x2a8] sm:$0xff]
    %v753 = vld [vmem:[#allocation3 + $0x2b0] sm:$0xff]
    %v754 = vld [vmem:[#allocation3 + $0x2b8] sm:$0xff]
    %v755 = vld [vmem:[#allocation3 + $0x2c0] sm:$0xff]
    %v756 = vld [vmem:[#allocation3 + $0x2c8] sm:$0xff]
    %v757 = vld [vmem:[#allocation3 + $0x2d0] sm:$0xff]
    %v758 = vld [vmem:[#allocation3 + $0x2d8] sm:$0xff]
    %v759 = vld [vmem:[#allocation3 + $0x2e0] sm:$0xff]
    %v760 = vld [vmem:[#allocation3 + $0x2e8] sm:$0xff]
    %v761 = vld [vmem:[#allocation3 + $0x2f0] sm:$0xff]
    %v762 = vld [vmem:[#allocation3 + $0x2f8] sm:$0xff]
    %v763 = vld [vmem:[#allocation3 + $0x300] sm:$0xff]
    %v764 = vld [vmem:[#allocation3 + $0x308] sm:$0xff]
    %v765 = vld [vmem:[#allocation3 + $0x310] sm:$0xff]
    %v766 = vld [vmem:[#allocation3 + $0x318] sm:$0xff]
    %v767 = vld [vmem:[#allocation3 + $0x320] sm:$0xff]
    %v768 = vld [vmem:[#allocation3 + $0x328] sm:$0xff]
    %v769 = vld [vmem:[#allocation3 + $0x330] sm:$0xff]
    %v770 = vld [vmem:[#allocation3 + $0x338] sm:$0xff]
    %v771 = vld [vmem:[#allocation3 + $0x340] sm:$0xff]
    %v772 = vld [vmem:[#allocation3 + $0x348] sm:$0xff]
    %v773 = vld [vmem:[#allocation3 + $0x350] sm:$0xff]
    %v774 = vld [vmem:[#allocation3 + $0x358] sm:$0xff]
    %v775 = vld [vmem:[#allocation3 + $0x360] sm:$0xff]
    %v776 = vld [vmem:[#allocation3 + $0x368] sm:$0xff]
    %v777 = vld [vmem:[#allocation3 + $0x370] sm:$0xff]
    %v778 = vld [vmem:[#allocation3 + $0x378] sm:$0xff]
    %v779 = vld [vmem:[#allocation3 + $0x380] sm:$0xff]
    %v780 = vld [vmem:[#allocation3 + $0x388] sm:$0xff]
    %v781 = vld [vmem:[#allocation3 + $0x390] sm:$0xff]
    %v782 = vld [vmem:[#allocation3 + $0x398] sm:$0xff]
    %v783 = vld [vmem:[#allocation3 + $0x3a0] sm:$0xff]
    %v784 = vld [vmem:[#allocation3 + $0x3a8] sm:$0xff]
    %v785 = vld [vmem:[#allocation3 + $0x3b0] sm:$0xff]
    %v786 = vld [vmem:[#allocation3 + $0x3b8] sm:$0xff]
    %v787 = vld [vmem:[#allocation3 + $0x3c0] sm:$0xff]
    %v788 = vld [vmem:[#allocation3 + $0x3c8] sm:$0xff]
    %v789 = vld [vmem:[#allocation3 + $0x3d0] sm:$0xff]
    %v790 = vld [vmem:[#allocation3 + $0x3d8] sm:$0xff]
    %v791 = vld [vmem:[#allocation3 + $0x3e0] sm:$0xff]
    %v792 = vld [vmem:[#allocation3 + $0x3e8] sm:$0xff]
    %v793 = vld [vmem:[#allocation3 + $0x3f0] sm:$0xff]
    %v794 = vld [vmem:[#allocation3 + $0x3f8] sm:$0xff]
    %v795 = vld [vmem:[#allocation3 + $0x400] sm:$0xff]
    %v796 = vld [vmem:[#allocation3 + $0x408] sm:$0xff]
    %v797 = vld [vmem:[#allocation3 + $0x410] sm:$0xff]
    %v798 = vld [vmem:[#allocation3 + $0x418] sm:$0xff]
    %v799 = vld [vmem:[#allocation3 + $0x420] sm:$0xff]
    %v800 = vld [vmem:[#allocation3 + $0x428] sm:$0xff]
    %v801 = vld [vmem:[#allocation3 + $0x430] sm:$0xff]
    %v802 = vld [vmem:[#allocation3 + $0x438] sm:$0xff]
    %v803 = vld [vmem:[#allocation3 + $0x440] sm:$0xff]
    %v804 = vld [vmem:[#allocation3 + $0x448] sm:$0xff]
    %v805 = vld [vmem:[#allocation3 + $0x450] sm:$0xff]
    %v806 = vld [vmem:[#allocation3 + $0x458] sm:$0xff]
    %v807 = vld [vmem:[#allocation3 + $0x460] sm:$0xff]
    %v808 = vld [vmem:[#allocation3 + $0x468] sm:$0xff]
    %v809 = vld [vmem:[#allocation3 + $0x470] sm:$0xff]
    %v810 = vld [vmem:[#allocation3 + $0x478] sm:$0xff]
    %v811 = vld [vmem:[#allocation3 + $0x480] sm:$0xff]
    %v812 = vld [vmem:[#allocation3 + $0x488] sm:$0xff]
    %v813 = vld [vmem:[#allocation3 + $0x490] sm:$0xff]
    %v814 = vld [vmem:[#allocation3 + $0x498] sm:$0xff]
    %v815 = vld [vmem:[#allocation3 + $0x4a0] sm:$0xff]
    %v816 = vld [vmem:[#allocation3 + $0x4a8] sm:$0xff]
    %v817 = vld [vmem:[#allocation3 + $0x4b0] sm:$0xff]
    %v818 = vld [vmem:[#allocation3 + $0x4b8] sm:$0xff]
    %v819 = vld [vmem:[#allocation3 + $0x4c0] sm:$0xff]
    %v820 = vld [vmem:[#allocation3 + $0x4c8] sm:$0xff]
    %v821 = vld [vmem:[#allocation3 + $0x4d0] sm:$0xff]
    %v822 = vld [vmem:[#allocation3 + $0x4d8] sm:$0xff]
    %v823 = vld [vmem:[#allocation3 + $0x4e0] sm:$0xff]
    %v824 = vld [vmem:[#allocation3 + $0x4e8] sm:$0xff]
    %v825 = vld [vmem:[#allocation3 + $0x4f0] sm:$0xff]
    %v826 = vld [vmem:[#allocation3 + $0x4f8] sm:$0xff]
    %v827 = vld [vmem:[#allocation3 + $0x500] sm:$0xff]
    %v828 = vld [vmem:[#allocation3 + $0x508] sm:$0xff]
    %v829 = vld [vmem:[#allocation3 + $0x510] sm:$0xff]
    %v830 = vld [vmem:[#allocation3 + $0x518] sm:$0xff]
    %v831 = vld [vmem:[#allocation3 + $0x520] sm:$0xff]
    %v832 = vld [vmem:[#allocation3 + $0x528] sm:$0xff]
    %v833 = vld [vmem:[#allocation3 + $0x530] sm:$0xff]
    %v834 = vld [vmem:[#allocation3 + $0x538] sm:$0xff]
    %v835 = vld [vmem:[#allocation3 + $0x540] sm:$0xff]
    %v836 = vld [vmem:[#allocation3 + $0x548] sm:$0xff]
    %v837 = vld [vmem:[#allocation3 + $0x550] sm:$0xff]
    %v838 = vld [vmem:[#allocation3 + $0x558] sm:$0xff]
    %v839 = vld [vmem:[#allocation3 + $0x560] sm:$0xff]
    %v840 = vld [vmem:[#allocation3 + $0x568] sm:$0xff]
    %v841 = vld [vmem:[#allocation3 + $0x570] sm:$0xff]
    %v842 = vld [vmem:[#allocation3 + $0x578] sm:$0xff]
    %v843 = vld [vmem:[#allocation3 + $0x580] sm:$0xff]
    %v844 = vld [vmem:[#allocation3 + $0x588] sm:$0xff]
    %v845 = vld [vmem:[#allocation3 + $0x590] sm:$0xff]
    %v846 = vld [vmem:[#allocation3 + $0x598] sm:$0xff]
    %v847 = vld [vmem:[#allocation3 + $0x5a0] sm:$0xff]
    %v848 = vld [vmem:[#allocation3 + $0x5a8] sm:$0xff]
    %v849 = vld [vmem:[#allocation3 + $0x5b0] sm:$0xff]
    %v850 = vld [vmem:[#allocation3 + $0x5b8] sm:$0xff]
    %v851 = vld [vmem:[#allocation3 + $0x5c0] sm:$0xff]
    %v852 = vld [vmem:[#allocation3 + $0x5c8] sm:$0xff]
    %v853 = vld [vmem:[#allocation3 + $0x5d0] sm:$0xff]
    %v854 = vld [vmem:[#allocation3 + $0x5d8] sm:$0xff]
    %v855 = vld [vmem:[#allocation3 + $0x5e0] sm:$0xff]
    %v856 = vld [vmem:[#allocation3 + $0x5e8] sm:$0xff]
    %v857 = vld [vmem:[#allocation3 + $0x5f0] sm:$0xff]
    %v858 = vld [vmem:[#allocation3 + $0x5f8] sm:$0xff]
    %v859 = vld [vmem:[#allocation3 + $0x600] sm:$0xff]
    %v860 = vld [vmem:[#allocation3 + $0x608] sm:$0xff]
    %v861 = vld [vmem:[#allocation3 + $0x610] sm:$0xff]
    %v862 = vld [vmem:[#allocation3 + $0x618] sm:$0xff]
    %863 = vmatprep.subr.mxu0 %v736
    %864 = vmatpush1.msra.mxu0 %v735
    %865 = vmatprep.subr.mxu0 %v740
    %866 = vmatpush1.msra.mxu0 %v739
    %867 = vmatprep.subr.mxu0 %v744
    %868 = vmatpush1.msra.mxu0 %v743
    %869 = vmatprep.subr.mxu0 %v748
    %870 = vmatpush1.msra.mxu0 %v747
    %871 = vmatprep.subr.mxu0 %v752
    %872 = vmatpush1.msra.mxu0 %v751
    %873 = vmatprep.subr.mxu0 %v756
    %874 = vmatpush1.msra.mxu0 %v755
    %875 = vmatprep.subr.mxu0 %v760
    %876 = vmatpush1.msra.mxu0 %v759
    %877 = vmatprep.subr.mxu0 %v764
    %878 = vmatpush1.msra.mxu0 %v763
    %879 = vmatprep.subr.mxu0 %v768
    %880 = vmatpush1.msra.mxu0 %v767
    %881 = vmatprep.subr.mxu0 %v772
    %882 = vmatpush1.msra.mxu0 %v771
    %883 = vmatprep.subr.mxu0 %v776
    %884 = vmatpush1.msra.mxu0 %v775
    %885 = vmatprep.subr.mxu0 %v780
    %886 = vmatpush1.msra.mxu0 %v779
    %887 = vmatprep.subr.mxu0 %v784
    %888 = vmatpush1.msra.mxu0 %v783
    %889 = vmatprep.subr.mxu0 %v788
    %890 = vmatpush1.msra.mxu0 %v787
    %891 = vmatprep.subr.mxu0 %v792
    %892 = vmatpush1.msra.mxu0 %v791
    %893 = vmatprep.subr.mxu0 %v796
    %894 = vmatpush1.msra.mxu0 %v795
    %895 = vmatprep.subr.mxu0 %v800
    %896 = vmatpush1.msra.mxu0 %v799
    %897 = vmatprep.subr.mxu0 %v804
    %898 = vmatpush1.msra.mxu0 %v803
    %899 = vmatprep.subr.mxu0 %v808
    %900 = vmatpush1.msra.mxu0 %v807
    %901 = vmatprep.subr.mxu0 %v812
    %902 = vmatpush1.msra.mxu0 %v811
    %903 = vmatprep.subr.mxu0 %v816
    %904 = vmatpush1.msra.mxu0 %v815
    %905 = vmatprep.subr.mxu0 %v820
    %906 = vmatpush1.msra.mxu0 %v819
    %907 = vmatprep.subr.mxu0 %v824
    %908 = vmatpush1.msra.mxu0 %v823
    %909 = vmatprep.subr.mxu0 %v828
    %910 = vmatpush1.msra.mxu0 %v827
    %911 = vmatprep.subr.mxu0 %v832
    %912 = vmatpush1.msra.mxu0 %v831
    %913 = vmatprep.subr.mxu0 %v836
    %914 = vmatpush1.msra.mxu0 %v835
    %915 = vmatprep.subr.mxu0 %v840
    %916 = vmatpush1.msra.mxu0 %v839
    %917 = vmatprep.subr.mxu0 %v844
    %918 = vmatpush1.msra.mxu0 %v843
    %919 = vmatprep.subr.mxu0 %v848
    %920 = vmatpush1.msra.mxu0 %v847
    %921 = vmatprep.subr.mxu0 %v852
    %922 = vmatpush1.msra.mxu0 %v851
    %923 = vmatprep.subr.mxu0 %v856
    %924 = vmatpush1.msra.mxu0 %v855
    %925 = vmatprep.subr.mxu0 %v860
    %926 = vmatpush1.msra.mxu0 %v859
    %927 = vmatprep.mubr.f32.mxu0 %v354
    %928 = vmatmul.mubr.f32.gmra.mrb[0].mxu0 %v568
    %v929 = vpop.f32.mrb[0].mxu0
    %v930 = vadd.f32 %v41, %v929
    %v931 = vpop.f32.mrb[0].mxu0
    %v932 = vadd.f32 %v45, %v931
    %933 = vdwg.mxu0
    %934 = vmatprep.subr.mxu0 %v738
    %935 = vmatpush1.msra.mxu0 %v737
    %936 = vmatprep.subr.mxu0 %v742
    %937 = vmatpush1.msra.mxu0 %v741
    %938 = vmatprep.subr.mxu0 %v746
    %939 = vmatpush1.msra.mxu0 %v745
    %940 = vmatprep.subr.mxu0 %v750
    %941 = vmatpush1.msra.mxu0 %v749
    %942 = vmatprep.subr.mxu0 %v754
    %943 = vmatpush1.msra.mxu0 %v753
    %944 = vmatprep.subr.mxu0 %v758
    %945 = vmatpush1.msra.mxu0 %v757
    %946 = vmatprep.subr.mxu0 %v762
    %947 = vmatpush1.msra.mxu0 %v761
    %948 = vmatprep.subr.mxu0 %v766
    %949 = vmatpush1.msra.mxu0 %v765
    %950 = vmatprep.subr.mxu0 %v770
    %951 = vmatpush1.msra.mxu0 %v769
    %952 = vmatprep.subr.mxu0 %v774
    %953 = vmatpush1.msra.mxu0 %v773
    %954 = vmatprep.subr.mxu0 %v778
    %955 = vmatpush1.msra.mxu0 %v777
    %956 = vmatprep.subr.mxu0 %v782
    %957 = vmatpush1.msra.mxu0 %v781
    %958 = vmatprep.subr.mxu0 %v786
    %959 = vmatpush1.msra.mxu0 %v785
    %960 = vmatprep.subr.mxu0 %v790
    %961 = vmatpush1.msra.mxu0 %v789
    %962 = vmatprep.subr.mxu0 %v794
    %963 = vmatpush1.msra.mxu0 %v793
    %964 = vmatprep.subr.mxu0 %v798
    %965 = vmatpush1.msra.mxu0 %v797
    %966 = vmatprep.subr.mxu0 %v802
    %967 = vmatpush1.msra.mxu0 %v801
    %968 = vmatprep.subr.mxu0 %v806
    %969 = vmatpush1.msra.mxu0 %v805
    %970 = vmatprep.subr.mxu0 %v810
    %971 = vmatpush1.msra.mxu0 %v809
    %972 = vmatprep.subr.mxu0 %v814
    %973 = vmatpush1.msra.mxu0 %v813
    %974 = vmatprep.subr.mxu0 %v818
    %975 = vmatpush1.msra.mxu0 %v817
    %976 = vmatprep.subr.mxu0 %v822
    %977 = vmatpush1.msra.mxu0 %v821
    %978 = vmatprep.subr.mxu0 %v826
    %979 = vmatpush1.msra.mxu0 %v825
    %980 = vmatprep.subr.mxu0 %v830
    %981 = vmatpush1.msra.mxu0 %v829
    %982 = vmatprep.subr.mxu0 %v834
    %983 = vmatpush1.msra.mxu0 %v833
    %984 = vmatprep.subr.mxu0 %v838
    %985 = vmatpush1.msra.mxu0 %v837
    %986 = vmatprep.subr.mxu0 %v842
    %987 = vmatpush1.msra.mxu0 %v841
    %988 = vmatprep.subr.mxu0 %v846
    %989 = vmatpush1.msra.mxu0 %v845
    %990 = vmatprep.subr.mxu0 %v850
    %991 = vmatpush1.msra.mxu0 %v849
    %992 = vmatprep.subr.mxu0 %v854
    %993 = vmatpush1.msra.mxu0 %v853
    %994 = vmatprep.subr.mxu0 %v858
    %995 = vmatpush1.msra.mxu0 %v857
    %996 = vmatprep.subr.mxu0 %v862
    %997 = vmatpush1.msra.mxu0 %v861
    %998 = vmatprep.mubr.f32.mxu0 %v354
    %999 = vmatmul.mubr.f32.gmra.mrb[0].mxu0 %v568
    %v1000 = vpop.f32.mrb[0].mxu0
    %v1001 = vadd.f32 %v49, %v1000
    %v1002 = vpop.f32.mrb[0].mxu0
    %v1003 = vadd.f32 %v53, %v1002
    %1004 = vdwg.mxu0
    %v1005 = vxor.u32 %v930, 2147483648
    %v1006 = vmul.f32 %v1005, 1.442695
    %v1007 = vpow.pop %v1006
    %v1008 = vadd.f32 %v1007, 1.0
    %v1009 = vrcp.pop %v1008
    %v1010 = vmul.f32 1.0, %v1009
    %v1011 = vxor.u32 %v932, 2147483648
    %v1012 = vmul.f32 %v1011, 1.442695
    %v1013 = vpow.pop %v1012
    %v1014 = vadd.f32 %v1013, 1.0
    %v1015 = vrcp.pop %v1014
    %v1016 = vmul.f32 1.0, %v1015
    %v1017 = vmul.f32 %v1010, %v1003
    %v1018 = vadd.f32 %v1001, %v1017
    %v1019 = vtanh.pop %v1018
    %v1020 = vsub.f32 1.0, %v1016
    %v1021 = vmul.f32 %v1020, %v1019
    %v1022 = vmul.f32 %v1016, %v354
    %v1023 = vadd.f32 %v1021, %v1022
    %v1024 = vld [vmem:[#allocation2 + $0x30] sm:$0xff]
    %v1025 = vld [vmem:[#allocation2 + $0x38] sm:$0xff]
    %v1026 = vld [vmem:[#allocation2 + $0x40] sm:$0xff]
    %1027 = vmatprep.subr.mxu0 %v359
    %1028 = vmatpush1.msra.mxu0 %v358
    %1029 = vmatprep.subr.mxu0 %v362
    %1030 = vmatpush1.msra.mxu0 %v361
    %1031 = vmatprep.subr.mxu0 %v365
    %1032 = vmatpush1.msra.mxu0 %v364
    %1033 = vmatprep.subr.mxu0 %v368
    %1034 = vmatpush1.msra.mxu0 %v367
    %1035 = vmatprep.subr.mxu0 %v371
    %1036 = vmatpush1.msra.mxu0 %v370
    %1037 = vmatprep.subr.mxu0 %v374
    %1038 = vmatpush1.msra.mxu0 %v373
    %1039 = vmatprep.subr.mxu0 %v377
    %1040 = vmatpush1.msra.mxu0 %v376
    %1041 = vmatprep.subr.mxu0 %v380
    %1042 = vmatpush1.msra.mxu0 %v379
    %1043 = vmatprep.subr.mxu0 %v383
    %1044 = vmatpush1.msra.mxu0 %v382
    %1045 = vmatprep.subr.mxu0 %v386
    %1046 = vmatpush1.msra.mxu0 %v385
    %1047 = vmatprep.subr.mxu0 %v389
    %1048 = vmatpush1.msra.mxu0 %v388
    %1049 = vmatprep.subr.mxu0 %v392
    %1050 = vmatpush1.msra.mxu0 %v391
    %1051 = vmatprep.subr.mxu0 %v395
    %1052 = vmatpush1.msra.mxu0 %v394
    %1053 = vmatprep.subr.mxu0 %v398
    %1054 = vmatpush1.msra.mxu0 %v397
    %1055 = vmatprep.subr.mxu0 %v401
    %1056 = vmatpush1.msra.mxu0 %v400
    %1057 = vmatprep.subr.mxu0 %v404
    %1058 = vmatpush1.msra.mxu0 %v403
    %1059 = vmatprep.subr.mxu0 0.0
    %1060 = vmatpush1.msra.mxu0 0.0
    %1061 = vmatprep.subr.mxu0 0.0
    %1062 = vmatpush1.msra.mxu0 0.0
    %1063 = vmatprep.subr.mxu0 0.0
    %1064 = vmatpush1.msra.mxu0 0.0
    %1065 = vmatprep.subr.mxu0 0.0
    %1066 = vmatpush1.msra.mxu0 0.0
    %1067 = vmatprep.subr.mxu0 0.0
    %1068 = vmatpush1.msra.mxu0 0.0
    %1069 = vmatprep.subr.mxu0 0.0
    %1070 = vmatpush1.msra.mxu0 0.0
    %1071 = vmatprep.subr.mxu0 0.0
    %1072 = vmatpush1.msra.mxu0 0.0
    %1073 = vmatprep.subr.mxu0 0.0
    %1074 = vmatpush1.msra.mxu0 0.0
    %1075 = vmatprep.subr.mxu0 0.0
    %1076 = vmatpush1.msra.mxu0 0.0
    %1077 = vmatprep.subr.mxu0 0.0
    %1078 = vmatpush1.msra.mxu0 0.0
    %1079 = vmatprep.subr.mxu0 0.0
    %1080 = vmatpush1.msra.mxu0 0.0
    %1081 = vmatprep.subr.mxu0 0.0
    %1082 = vmatpush1.msra.mxu0 0.0
    %1083 = vmatprep.subr.mxu0 0.0
    %1084 = vmatpush1.msra.mxu0 0.0
    %1085 = vmatprep.subr.mxu0 0.0
    %1086 = vmatpush1.msra.mxu0 0.0
    %1087 = vmatprep.subr.mxu0 0.0
    %1088 = vmatpush1.msra.mxu0 0.0
    %1089 = vmatprep.subr.mxu0 0.0
    %1090 = vmatpush1.msra.mxu0 0.0
    %1091 = vmatprep.mubr.f32.mxu0 0.0
    %1092 = vmatmul.mubr.f32.gmra.mrb[0].mxu0 %v734
    %v1093 = vpop.f32.mrb[0].mxu0
    %v1094 = vadd.f32 0.0, %v1093
    %v1095 = vpop.f32.mrb[0].mxu0
    %v1096 = vadd.f32 0.0, %v1095
    %1097 = vdwg.mxu0
    %1098 = vmatprep.subr.mxu0 0.0
    %1099 = vmatpush1.msra.mxu0 %v360
    %1100 = vmatprep.subr.mxu0 0.0
    %1101 = vmatpush1.msra.mxu0 %v363
    %1102 = vmatprep.subr.mxu0 0.0
    %1103 = vmatpush1.msra.mxu0 %v366
    %1104 = vmatprep.subr.mxu0 0.0
    %1105 = vmatpush1.msra.mxu0 %v369
    %1106 = vmatprep.subr.mxu0 0.0
    %1107 = vmatpush1.msra.mxu0 %v372
    %1108 = vmatprep.subr.mxu0 0.0
    %1109 = vmatpush1.msra.mxu0 %v375
    %1110 = vmatprep.subr.mxu0 0.0
    %1111 = vmatpush1.msra.mxu0 %v378
    %1112 = vmatprep.subr.mxu0 0.0
    %1113 = vmatpush1.msra.mxu0 %v381
    %1114 = vmatprep.subr.mxu0 0.0
    %1115 = vmatpush1.msra.mxu0 %v384
    %1116 = vmatprep.subr.mxu0 0.0
    %1117 = vmatpush1.msra.mxu0 %v387
    %1118 = vmatprep.subr.mxu0 0.0
    %1119 = vmatpush1.msra.mxu0 %v390
    %1120 = vmatprep.subr.mxu0 0.0
    %1121 = vmatpush1.msra.mxu0 %v393
    %1122 = vmatprep.subr.mxu0 0.0
    %1123 = vmatpush1.msra.mxu0 %v396
    %1124 = vmatprep.subr.mxu0 0.0
    %1125 = vmatpush1.msra.mxu0 %v399
    %1126 = vmatprep.subr.mxu0 0.0
    %1127 = vmatpush1.msra.mxu0 %v402
    %1128 = vmatprep.subr.mxu0 0.0
    %1129 = vmatpush1.msra.mxu0 %v405
    %1130 = vmatprep.subr.mxu0 0.0
    %1131 = vmatpush1.msra.mxu0 0.0
    %1132 = vmatprep.subr.mxu0 0.0
    %1133 = vmatpush1.msra.mxu0 0.0
    %1134 = vmatprep.subr.mxu0 0.0
    %1135 = vmatpush1.msra.mxu0 0.0
    %1136 = vmatprep.subr.mxu0 0.0
    %1137 = vmatpush1.msra.mxu0 0.0
    %1138 = vmatprep.subr.mxu0 0.0
    %1139 = vmatpush1.msra.mxu0 0.0
    %1140 = vmatprep.subr.mxu0 0.0
    %1141 = vmatpush1.msra.mxu0 0.0
    %1142 = vmatprep.subr.mxu0 0.0
    %1143 = vmatpush1.msra.mxu0 0.0
    %1144 = vmatprep.subr.mxu0 0.0
    %1145 = vmatpush1.msra.mxu0 0.0
    %1146 = vmatprep.subr.mxu0 0.0
    %1147 = vmatpush1.msra.mxu0 0.0
    %1148 = vmatprep.subr.mxu0 0.0
    %1149 = vmatpush1.msra.mxu0 0.0
    %1150 = vmatprep.subr.mxu0 0.0
    %1151 = vmatpush1.msra.mxu0 0.0
    %1152 = vmatprep.subr.mxu0 0.0
    %1153 = vmatpush1.msra.mxu0 0.0
    %1154 = vmatprep.subr.mxu0 0.0
    %1155 = vmatpush1.msra.mxu0 0.0
    %1156 = vmatprep.subr.mxu0 0.0
    %1157 = vmatpush1.msra.mxu0 0.0
    %1158 = vmatprep.subr.mxu0 0.0
    %1159 = vmatpush1.msra.mxu0 0.0
    %1160 = vmatprep.subr.mxu0 0.0
    %1161 = vmatpush1.msra.mxu0 0.0
    %1162 = vmatprep.mubr.f32.mxu0 0.0
    %1163 = vmatmul.mubr.f32.gmra.mrb[0].mxu0 %v734
    %v1164 = vpop.f32.mrb[0].mxu0
    %v1165 = vadd.f32 0.0, %v1164
    %v1166 = vpop.f32.mrb[0].mxu0
    %1167 = vdwg.mxu0
    %v1168 = vadd.f32 %v1024, %v1094
    %v1169 = vxor.u32 %v1168, 2147483648
    %v1170 = vmul.f32 %v1169, 1.442695
    %v1171 = vpow.pop %v1170
    %v1172 = vadd.f32 %v1171, 1.0
    %v1173 = vrcp.pop %v1172
    %v1174 = vmul.f32 1.0, %v1173
    %v1175 = vadd.f32 %v1025, %v1096
    %v1176 = vxor.u32 %v1175, 2147483648
    %v1177 = vmul.f32 %v1176, 1.442695
    %v1178 = vpow.pop %v1177
    %v1179 = vadd.f32 %v1178, 1.0
    %v1180 = vrcp.pop %v1179
    %v1181 = vmul.f32 1.0, %v1180
    %v1182 = vadd.f32 %v1165, %v34
    %v1183 = vmul.f32 %v1174, %v1182
    %v1184 = vadd.f32 %v1026, %v1183
    %v1185 = vtanh.pop %v1184
    %v1186 = vsub.f32 1.0, %v1181
    %v1187 = vmul.f32 %v1186, %v1185
    %v1188 = vmul.f32 %v1181, %v734
    %v1189 = vadd.f32 %v1187, %v1188
    %1190 = vmatprep.subr.mxu0 %v736
    %1191 = vmatpush1.msra.mxu0 %v735
    %1192 = vmatprep.subr.mxu0 %v740
    %1193 = vmatpush1.msra.mxu0 %v739
    %1194 = vmatprep.subr.mxu0 %v744
    %1195 = vmatpush1.msra.mxu0 %v743
    %1196 = vmatprep.subr.mxu0 %v748
    %1197 = vmatpush1.msra.mxu0 %v747
    %1198 = vmatprep.subr.mxu0 %v752
    %1199 = vmatpush1.msra.mxu0 %v751
    %1200 = vmatprep.subr.mxu0 %v756
    %1201 = vmatpush1.msra.mxu0 %v755
    %1202 = vmatprep.subr.mxu0 %v760
    %1203 = vmatpush1.msra.mxu0 %v759
    %1204 = vmatprep.subr.mxu0 %v764
    %1205 = vmatpush1.msra.mxu0 %v763
    %1206 = vmatprep.subr.mxu0 %v768
    %1207 = vmatpush1.msra.mxu0 %v767
    %1208 = vmatprep.subr.mxu0 %v772
    %1209 = vmatpush1.msra.mxu0 %v771
    %1210 = vmatprep.subr.mxu0 %v776
    %1211 = vmatpush1.msra.mxu0 %v775
    %1212 = vmatprep.subr.mxu0 %v780
    %1213 = vmatpush1.msra.mxu0 %v779
    %1214 = vmatprep.subr.mxu0 %v784
    %1215 = vmatpush1.msra.mxu0 %v783
    %1216 = vmatprep.subr.mxu0 %v788
    %1217 = vmatpush1.msra.mxu0 %v787
    %1218 = vmatprep.subr.mxu0 %v792
    %1219 = vmatpush1.msra.mxu0 %v791
    %1220 = vmatprep.subr.mxu0 %v796
    %1221 = vmatpush1.msra.mxu0 %v795
    %1222 = vmatprep.subr.mxu0 %v800
    %1223 = vmatpush1.msra.mxu0 %v799
    %1224 = vmatprep.subr.mxu0 %v804
    %1225 = vmatpush1.msra.mxu0 %v803
    %1226 = vmatprep.subr.mxu0 %v808
    %1227 = vmatpush1.msra.mxu0 %v807
    %1228 = vmatprep.subr.mxu0 %v812
    %1229 = vmatpush1.msra.mxu0 %v811
    %1230 = vmatprep.subr.mxu0 %v816
    %1231 = vmatpush1.msra.mxu0 %v815
    %1232 = vmatprep.subr.mxu0 %v820
    %1233 = vmatpush1.msra.mxu0 %v819
    %1234 = vmatprep.subr.mxu0 %v824
    %1235 = vmatpush1.msra.mxu0 %v823
    %1236 = vmatprep.subr.mxu0 %v828
    %1237 = vmatpush1.msra.mxu0 %v827
    %1238 = vmatprep.subr.mxu0 %v832
    %1239 = vmatpush1.msra.mxu0 %v831
    %1240 = vmatprep.subr.mxu0 %v836
    %1241 = vmatpush1.msra.mxu0 %v835
    %1242 = vmatprep.subr.mxu0 %v840
    %1243 = vmatpush1.msra.mxu0 %v839
    %1244 = vmatprep.subr.mxu0 %v844
    %1245 = vmatpush1.msra.mxu0 %v843
    %1246 = vmatprep.subr.mxu0 %v848
    %1247 = vmatpush1.msra.mxu0 %v847
    %1248 = vmatprep.subr.mxu0 %v852
    %1249 = vmatpush1.msra.mxu0 %v851
    %1250 = vmatprep.subr.mxu0 %v856
    %1251 = vmatpush1.msra.mxu0 %v855
    %1252 = vmatprep.subr.mxu0 %v860
    %1253 = vmatpush1.msra.mxu0 %v859
    %1254 = vmatprep.mubr.f32.mxu0 %v1023
    %1255 = vmatmul.mubr.f32.gmra.mrb[0].mxu0 %v734
    %v1256 = vpop.f32.mrb[0].mxu0
    %v1257 = vadd.f32 %v41, %v1256
    %v1258 = vpop.f32.mrb[0].mxu0
    %v1259 = vadd.f32 %v45, %v1258
    %1260 = vdwg.mxu0
    %1261 = vmatprep.subr.mxu0 %v738
    %1262 = vmatpush1.msra.mxu0 %v737
    %1263 = vmatprep.subr.mxu0 %v742
    %1264 = vmatpush1.msra.mxu0 %v741
    %1265 = vmatprep.subr.mxu0 %v746
    %1266 = vmatpush1.msra.mxu0 %v745
    %1267 = vmatprep.subr.mxu0 %v750
    %1268 = vmatpush1.msra.mxu0 %v749
    %1269 = vmatprep.subr.mxu0 %v754
    %1270 = vmatpush1.msra.mxu0 %v753
    %1271 = vmatprep.subr.mxu0 %v758
    %1272 = vmatpush1.msra.mxu0 %v757
    %1273 = vmatprep.subr.mxu0 %v762
    %1274 = vmatpush1.msra.mxu0 %v761
    %1275 = vmatprep.subr.mxu0 %v766
    %1276 = vmatpush1.msra.mxu0 %v765
    %1277 = vmatprep.subr.mxu0 %v770
    %1278 = vmatpush1.msra.mxu0 %v769
    %1279 = vmatprep.subr.mxu0 %v774
    %1280 = vmatpush1.msra.mxu0 %v773
    %1281 = vmatprep.subr.mxu0 %v778
    %1282 = vmatpush1.msra.mxu0 %v777
    %1283 = vmatprep.subr.mxu0 %v782
    %1284 = vmatpush1.msra.mxu0 %v781
    %1285 = vmatprep.subr.mxu0 %v786
    %1286 = vmatpush1.msra.mxu0 %v785
    %1287 = vmatprep.subr.mxu0 %v790
    %1288 = vmatpush1.msra.mxu0 %v789
    %1289 = vmatprep.subr.mxu0 %v794
    %1290 = vmatpush1.msra.mxu0 %v793
    %1291 = vmatprep.subr.mxu0 %v798
    %1292 = vmatpush1.msra.mxu0 %v797
    %1293 = vmatprep.subr.mxu0 %v802
    %1294 = vmatpush1.msra.mxu0 %v801
    %1295 = vmatprep.subr.mxu0 %v806
    %1296 = vmatpush1.msra.mxu0 %v805
    %1297 = vmatprep.subr.mxu0 %v810
    %1298 = vmatpush1.msra.mxu0 %v809
    %1299 = vmatprep.subr.mxu0 %v814
    %1300 = vmatpush1.msra.mxu0 %v813
    %1301 = vmatprep.subr.mxu0 %v818
    %1302 = vmatpush1.msra.mxu0 %v817
    %1303 = vmatprep.subr.mxu0 %v822
    %1304 = vmatpush1.msra.mxu0 %v821
    %1305 = vmatprep.subr.mxu0 %v826
    %1306 = vmatpush1.msra.mxu0 %v825
    %1307 = vmatprep.subr.mxu0 %v830
    %1308 = vmatpush1.msra.mxu0 %v829
    %1309 = vmatprep.subr.mxu0 %v834
    %1310 = vmatpush1.msra.mxu0 %v833
    %1311 = vmatprep.subr.mxu0 %v838
    %1312 = vmatpush1.msra.mxu0 %v837
    %1313 = vmatprep.subr.mxu0 %v842
    %1314 = vmatpush1.msra.mxu0 %v841
    %1315 = vmatprep.subr.mxu0 %v846
    %1316 = vmatpush1.msra.mxu0 %v845
    %1317 = vmatprep.subr.mxu0 %v850
    %1318 = vmatpush1.msra.mxu0 %v849
    %1319 = vmatprep.subr.mxu0 %v854
    %1320 = vmatpush1.msra.mxu0 %v853
    %1321 = vmatprep.subr.mxu0 %v858
    %1322 = vmatpush1.msra.mxu0 %v857
    %1323 = vmatprep.subr.mxu0 %v862
    %1324 = vmatpush1.msra.mxu0 %v861
    %1325 = vmatprep.mubr.f32.mxu0 %v1023
    %1326 = vmatmul.mubr.f32.gmra.mrb[0].mxu0 %v734
    %v1327 = vpop.f32.mrb[0].mxu0
    %v1328 = vadd.f32 %v49, %v1327
    %v1329 = vpop.f32.mrb[0].mxu0
    %v1330 = vadd.f32 %v53, %v1329
    %1331 = vdwg.mxu0
    %v1332 = vxor.u32 %v1257, 2147483648
    %v1333 = vmul.f32 %v1332, 1.442695
    %v1334 = vpow.pop %v1333
    %v1335 = vadd.f32 %v1334, 1.0
    %v1336 = vrcp.pop %v1335
    %v1337 = vmul.f32 1.0, %v1336
    %v1338 = vxor.u32 %v1259, 2147483648
    %v1339 = vmul.f32 %v1338, 1.442695
    %v1340 = vpow.pop %v1339
    %v1341 = vadd.f32 %v1340, 1.0
    %v1342 = vrcp.pop %v1341
    %v1343 = vmul.f32 1.0, %v1342
    %v1344 = vmul.f32 %v1337, %v1330
    %v1345 = vadd.f32 %v1328, %v1344
    %v1346 = vtanh.pop %v1345
    %v1347 = vsub.f32 1.0, %v1343
    %v1348 = vmul.f32 %v1347, %v1346
    %v1349 = vmul.f32 %v1343, %v1023
    %v1350 = vadd.f32 %v1348, %v1349
    %v1351 = vld [vmem:[#allocation2 + $0x48] sm:$0xff]
    %v1352 = vld [vmem:[#allocation2 + $0x50] sm:$0xff]
    %v1353 = vld [vmem:[#allocation2 + $0x58] sm:$0xff]
    %1354 = vmatprep.subr.mxu0 %v359
    %1355 = vmatpush1.msra.mxu0 %v358
    %1356 = vmatprep.subr.mxu0 %v362
    %1357 = vmatpush1.msra.mxu0 %v361
    %1358 = vmatprep.subr.mxu0 %v365
    %1359 = vmatpush1.msra.mxu0 %v364
    %1360 = vmatprep.subr.mxu0 %v368
    %1361 = vmatpush1.msra.mxu0 %v367
    %1362 = vmatprep.subr.mxu0 %v371
    %1363 = vmatpush1.msra.mxu0 %v370
    %1364 = vmatprep.subr.mxu0 %v374
    %1365 = vmatpush1.msra.mxu0 %v373
    %1366 = vmatprep.subr.mxu0 %v377
    %1367 = vmatpush1.msra.mxu0 %v376
    %1368 = vmatprep.subr.mxu0 %v380
    %1369 = vmatpush1.msra.mxu0 %v379
    %1370 = vmatprep.subr.mxu0 %v383
    %1371 = vmatpush1.msra.mxu0 %v382
    %1372 = vmatprep.subr.mxu0 %v386
    %1373 = vmatpush1.msra.mxu0 %v385
    %1374 = vmatprep.subr.mxu0 %v389
    %1375 = vmatpush1.msra.mxu0 %v388
    %1376 = vmatprep.subr.mxu0 %v392
    %1377 = vmatpush1.msra.mxu0 %v391
    %1378 = vmatprep.subr.mxu0 %v395
    %1379 = vmatpush1.msra.mxu0 %v394
    %1380 = vmatprep.subr.mxu0 %v398
    %1381 = vmatpush1.msra.mxu0 %v397
    %1382 = vmatprep.subr.mxu0 %v401
    %1383 = vmatpush1.msra.mxu0 %v400
    %1384 = vmatprep.subr.mxu0 %v404
    %1385 = vmatpush1.msra.mxu0 %v403
    %1386 = vmatprep.subr.mxu0 0.0
    %1387 = vmatpush1.msra.mxu0 0.0
    %1388 = vmatprep.subr.mxu0 0.0
    %1389 = vmatpush1.msra.mxu0 0.0
    %1390 = vmatprep.subr.mxu0 0.0
    %1391 = vmatpush1.msra.mxu0 0.0
    %1392 = vmatprep.subr.mxu0 0.0
    %1393 = vmatpush1.msra.mxu0 0.0
    %1394 = vmatprep.subr.mxu0 0.0
    %1395 = vmatpush1.msra.mxu0 0.0
    %1396 = vmatprep.subr.mxu0 0.0
    %1397 = vmatpush1.msra.mxu0 0.0
    %1398 = vmatprep.subr.mxu0 0.0
    %1399 = vmatpush1.msra.mxu0 0.0
    %1400 = vmatprep.subr.mxu0 0.0
    %1401 = vmatpush1.msra.mxu0 0.0
    %1402 = vmatprep.subr.mxu0 0.0
    %1403 = vmatpush1.msra.mxu0 0.0
    %1404 = vmatprep.subr.mxu0 0.0
    %1405 = vmatpush1.msra.mxu0 0.0
    %1406 = vmatprep.subr.mxu0 0.0
    %1407 = vmatpush1.msra.mxu0 0.0
    %1408 = vmatprep.subr.mxu0 0.0
    %1409 = vmatpush1.msra.mxu0 0.0
    %1410 = vmatprep.subr.mxu0 0.0
    %1411 = vmatpush1.msra.mxu0 0.0
    %1412 = vmatprep.subr.mxu0 0.0
    %1413 = vmatpush1.msra.mxu0 0.0
    %1414 = vmatprep.subr.mxu0 0.0
    %1415 = vmatpush1.msra.mxu0 0.0
    %1416 = vmatprep.subr.mxu0 0.0
    %1417 = vmatpush1.msra.mxu0 0.0
    %1418 = vmatprep.mubr.f32.mxu0 0.0
    %1419 = vmatmul.mubr.f32.gmra.mrb[0].mxu0 %v1189
    %v1420 = vpop.f32.mrb[0].mxu0
    %v1421 = vadd.f32 0.0, %v1420
    %v1422 = vpop.f32.mrb[0].mxu0
    %v1423 = vadd.f32 0.0, %v1422
    %1424 = vdwg.mxu0
    %1425 = vmatprep.subr.mxu0 0.0
    %1426 = vmatpush1.msra.mxu0 %v360
    %1427 = vmatprep.subr.mxu0 0.0
    %1428 = vmatpush1.msra.mxu0 %v363
    %1429 = vmatprep.subr.mxu0 0.0
    %1430 = vmatpush1.msra.mxu0 %v366
    %1431 = vmatprep.subr.mxu0 0.0
    %1432 = vmatpush1.msra.mxu0 %v369
    %1433 = vmatprep.subr.mxu0 0.0
    %1434 = vmatpush1.msra.mxu0 %v372
    %1435 = vmatprep.subr.mxu0 0.0
    %1436 = vmatpush1.msra.mxu0 %v375
    %1437 = vmatprep.subr.mxu0 0.0
    %1438 = vmatpush1.msra.mxu0 %v378
    %1439 = vmatprep.subr.mxu0 0.0
    %1440 = vmatpush1.msra.mxu0 %v381
    %1441 = vmatprep.subr.mxu0 0.0
    %1442 = vmatpush1.msra.mxu0 %v384
    %1443 = vmatprep.subr.mxu0 0.0
    %1444 = vmatpush1.msra.mxu0 %v387
    %1445 = vmatprep.subr.mxu0 0.0
    %1446 = vmatpush1.msra.mxu0 %v390
    %1447 = vmatprep.subr.mxu0 0.0
    %1448 = vmatpush1.msra.mxu0 %v393
    %1449 = vmatprep.subr.mxu0 0.0
    %1450 = vmatpush1.msra.mxu0 %v396
    %1451 = vmatprep.subr.mxu0 0.0
    %1452 = vmatpush1.msra.mxu0 %v399
    %1453 = vmatprep.subr.mxu0 0.0
    %1454 = vmatpush1.msra.mxu0 %v402
    %1455 = vmatprep.subr.mxu0 0.0
    %1456 = vmatpush1.msra.mxu0 %v405
    %1457 = vmatprep.subr.mxu0 0.0
    %1458 = vmatpush1.msra.mxu0 0.0
    %1459 = vmatprep.subr.mxu0 0.0
    %1460 = vmatpush1.msra.mxu0 0.0
    %1461 = vmatprep.subr.mxu0 0.0
    %1462 = vmatpush1.msra.mxu0 0.0
    %1463 = vmatprep.subr.mxu0 0.0
    %1464 = vmatpush1.msra.mxu0 0.0
    %1465 = vmatprep.subr.mxu0 0.0
    %1466 = vmatpush1.msra.mxu0 0.0
    %1467 = vmatprep.subr.mxu0 0.0
    %1468 = vmatpush1.msra.mxu0 0.0
    %1469 = vmatprep.subr.mxu0 0.0
    %1470 = vmatpush1.msra.mxu0 0.0
    %1471 = vmatprep.subr.mxu0 0.0
    %1472 = vmatpush1.msra.mxu0 0.0
    %1473 = vmatprep.subr.mxu0 0.0
    %1474 = vmatpush1.msra.mxu0 0.0
    %1475 = vmatprep.subr.mxu0 0.0
    %1476 = vmatpush1.msra.mxu0 0.0
    %1477 = vmatprep.subr.mxu0 0.0
    %1478 = vmatpush1.msra.mxu0 0.0
    %1479 = vmatprep.subr.mxu0 0.0
    %1480 = vmatpush1.msra.mxu0 0.0
    %1481 = vmatprep.subr.mxu0 0.0
    %1482 = vmatpush1.msra.mxu0 0.0
    %1483 = vmatprep.subr.mxu0 0.0
    %1484 = vmatpush1.msra.mxu0 0.0
    %1485 = vmatprep.subr.mxu0 0.0
    %1486 = vmatpush1.msra.mxu0 0.0
    %1487 = vmatprep.subr.mxu0 0.0
    %1488 = vmatpush1.msra.mxu0 0.0
    %1489 = vmatprep.mubr.f32.mxu0 0.0
    %1490 = vmatmul.mubr.f32.gmra.mrb[0].mxu0 %v1189
    %v1491 = vpop.f32.mrb[0].mxu0
    %v1492 = vadd.f32 0.0, %v1491
    %v1493 = vpop.f32.mrb[0].mxu0
    %1494 = vdwg.mxu0
    %v1495 = vadd.f32 %v1351, %v1421
    %v1496 = vxor.u32 %v1495, 2147483648
    %v1497 = vmul.f32 %v1496, 1.442695
    %v1498 = vpow.pop %v1497
    %v1499 = vadd.f32 %v1498, 1.0
    %v1500 = vrcp.pop %v1499
    %v1501 = vmul.f32 1.0, %v1500
    %v1502 = vadd.f32 %v1352, %v1423
    %v1503 = vxor.u32 %v1502, 2147483648
    %v1504 = vmul.f32 %v1503, 1.442695
    %v1505 = vpow.pop %v1504
    %v1506 = vadd.f32 %v1505, 1.0
    %v1507 = vrcp.pop %v1506
    %v1508 = vmul.f32 1.0, %v1507
    %v1509 = vadd.f32 %v1492, %v34
    %v1510 = vmul.f32 %v1501, %v1509
    %v1511 = vadd.f32 %v1353, %v1510
    %v1512 = vtanh.pop %v1511
    %v1513 = vsub.f32 1.0, %v1508
    %v1514 = vmul.f32 %v1513, %v1512
    %v1515 = vmul.f32 %v1508, %v1189
    %v1516 = vadd.f32 %v1514, %v1515
    %1517 = vmatprep.subr.mxu0 %v736
    %1518 = vmatpush1.msra.mxu0 %v735
    %1519 = vmatprep.subr.mxu0 %v740
    %1520 = vmatpush1.msra.mxu0 %v739
    %1521 = vmatprep.subr.mxu0 %v744
    %1522 = vmatpush1.msra.mxu0 %v743
    %1523 = vmatprep.subr.mxu0 %v748
    %1524 = vmatpush1.msra.mxu0 %v747
    %1525 = vmatprep.subr.mxu0 %v752
    %1526 = vmatpush1.msra.mxu0 %v751
    %1527 = vmatprep.subr.mxu0 %v756
    %1528 = vmatpush1.msra.mxu0 %v755
    %1529 = vmatprep.subr.mxu0 %v760
    %1530 = vmatpush1.msra.mxu0 %v759
    %1531 = vmatprep.subr.mxu0 %v764
    %1532 = vmatpush1.msra.mxu0 %v763
    %1533 = vmatprep.subr.mxu0 %v768
    %1534 = vmatpush1.msra.mxu0 %v767
    %1535 = vmatprep.subr.mxu0 %v772
    %1536 = vmatpush1.msra.mxu0 %v771
    %1537 = vmatprep.subr.mxu0 %v776
    %1538 = vmatpush1.msra.mxu0 %v775
    %1539 = vmatprep.subr.mxu0 %v780
    %1540 = vmatpush1.msra.mxu0 %v779
    %1541 = vmatprep.subr.mxu0 %v784
    %1542 = vmatpush1.msra.mxu0 %v783
    %1543 = vmatprep.subr.mxu0 %v788
    %1544 = vmatpush1.msra.mxu0 %v787
    %1545 = vmatprep.subr.mxu0 %v792
    %1546 = vmatpush1.msra.mxu0 %v791
    %1547 = vmatprep.subr.mxu0 %v796
    %1548 = vmatpush1.msra.mxu0 %v795
    %1549 = vmatprep.subr.mxu0 %v800
    %1550 = vmatpush1.msra.mxu0 %v799
    %1551 = vmatprep.subr.mxu0 %v804
    %1552 = vmatpush1.msra.mxu0 %v803
    %1553 = vmatprep.subr.mxu0 %v808
    %1554 = vmatpush1.msra.mxu0 %v807
    %1555 = vmatprep.subr.mxu0 %v812
    %1556 = vmatpush1.msra.mxu0 %v811
    %1557 = vmatprep.subr.mxu0 %v816
    %1558 = vmatpush1.msra.mxu0 %v815
    %1559 = vmatprep.subr.mxu0 %v820
    %1560 = vmatpush1.msra.mxu0 %v819
    %1561 = vmatprep.subr.mxu0 %v824
    %1562 = vmatpush1.msra.mxu0 %v823
    %1563 = vmatprep.subr.mxu0 %v828
    %1564 = vmatpush1.msra.mxu0 %v827
    %1565 = vmatprep.subr.mxu0 %v832
    %1566 = vmatpush1.msra.mxu0 %v831
    %1567 = vmatprep.subr.mxu0 %v836
    %1568 = vmatpush1.msra.mxu0 %v835
    %1569 = vmatprep.subr.mxu0 %v840
    %1570 = vmatpush1.msra.mxu0 %v839
    %1571 = vmatprep.subr.mxu0 %v844
    %1572 = vmatpush1.msra.mxu0 %v843
    %1573 = vmatprep.subr.mxu0 %v848
    %1574 = vmatpush1.msra.mxu0 %v847
    %1575 = vmatprep.subr.mxu0 %v852
    %1576 = vmatpush1.msra.mxu0 %v851
    %1577 = vmatprep.subr.mxu0 %v856
    %1578 = vmatpush1.msra.mxu0 %v855
    %1579 = vmatprep.subr.mxu0 %v860
    %1580 = vmatpush1.msra.mxu0 %v859
    %1581 = vmatprep.mubr.f32.mxu0 %v1350
    %1582 = vmatmul.mubr.f32.gmra.mrb[0].mxu0 %v1189
    %v1583 = vpop.f32.mrb[0].mxu0
    %v1584 = vadd.f32 %v41, %v1583
    %v1585 = vpop.f32.mrb[0].mxu0
    %v1586 = vadd.f32 %v45, %v1585
    %1587 = vdwg.mxu0
    %1588 = vmatprep.subr.mxu0 %v738
    %1589 = vmatpush1.msra.mxu0 %v737
    %1590 = vmatprep.subr.mxu0 %v742
    %1591 = vmatpush1.msra.mxu0 %v741
    %1592 = vmatprep.subr.mxu0 %v746
    %1593 = vmatpush1.msra.mxu0 %v745
    %1594 = vmatprep.subr.mxu0 %v750
    %1595 = vmatpush1.msra.mxu0 %v749
    %1596 = vmatprep.subr.mxu0 %v754
    %1597 = vmatpush1.msra.mxu0 %v753
    %1598 = vmatprep.subr.mxu0 %v758
    %1599 = vmatpush1.msra.mxu0 %v757
    %1600 = vmatprep.subr.mxu0 %v762
    %1601 = vmatpush1.msra.mxu0 %v761
    %1602 = vmatprep.subr.mxu0 %v766
    %1603 = vmatpush1.msra.mxu0 %v765
    %1604 = vmatprep.subr.mxu0 %v770
    %1605 = vmatpush1.msra.mxu0 %v769
    %1606 = vmatprep.subr.mxu0 %v774
    %1607 = vmatpush1.msra.mxu0 %v773
    %1608 = vmatprep.subr.mxu0 %v778
    %1609 = vmatpush1.msra.mxu0 %v777
    %1610 = vmatprep.subr.mxu0 %v782
    %1611 = vmatpush1.msra.mxu0 %v781
    %1612 = vmatprep.subr.mxu0 %v786
    %1613 = vmatpush1.msra.mxu0 %v785
    %1614 = vmatprep.subr.mxu0 %v790
    %1615 = vmatpush1.msra.mxu0 %v789
    %1616 = vmatprep.subr.mxu0 %v794
    %1617 = vmatpush1.msra.mxu0 %v793
    %1618 = vmatprep.subr.mxu0 %v798
    %1619 = vmatpush1.msra.mxu0 %v797
    %1620 = vmatprep.subr.mxu0 %v802
    %1621 = vmatpush1.msra.mxu0 %v801
    %1622 = vmatprep.subr.mxu0 %v806
    %1623 = vmatpush1.msra.mxu0 %v805
    %1624 = vmatprep.subr.mxu0 %v810
    %1625 = vmatpush1.msra.mxu0 %v809
    %1626 = vmatprep.subr.mxu0 %v814
    %1627 = vmatpush1.msra.mxu0 %v813
    %1628 = vmatprep.subr.mxu0 %v818
    %1629 = vmatpush1.msra.mxu0 %v817
    %1630 = vmatprep.subr.mxu0 %v822
    %1631 = vmatpush1.msra.mxu0 %v821
    %1632 = vmatprep.subr.mxu0 %v826
    %1633 = vmatpush1.msra.mxu0 %v825
    %1634 = vmatprep.subr.mxu0 %v830
    %1635 = vmatpush1.msra.mxu0 %v829
    %1636 = vmatprep.subr.mxu0 %v834
    %1637 = vmatpush1.msra.mxu0 %v833
    %1638 = vmatprep.subr.mxu0 %v838
    %1639 = vmatpush1.msra.mxu0 %v837
    %1640 = vmatprep.subr.mxu0 %v842
    %1641 = vmatpush1.msra.mxu0 %v841
    %1642 = vmatprep.subr.mxu0 %v846
    %1643 = vmatpush1.msra.mxu0 %v845
    %1644 = vmatprep.subr.mxu0 %v850
    %1645 = vmatpush1.msra.mxu0 %v849
    %1646 = vmatprep.subr.mxu0 %v854
    %1647 = vmatpush1.msra.mxu0 %v853
    %1648 = vmatprep.subr.mxu0 %v858
    %1649 = vmatpush1.msra.mxu0 %v857
    %1650 = vmatprep.subr.mxu0 %v862
    %1651 = vmatpush1.msra.mxu0 %v861
    %1652 = vmatprep.mubr.f32.mxu0 %v1350
    %1653 = vmatmul.mubr.f32.gmra.mrb[0].mxu0 %v1189
    %v1654 = vpop.f32.mrb[0].mxu0
    %v1655 = vadd.f32 %v49, %v1654
    %v1656 = vpop.f32.mrb[0].mxu0
    %v1657 = vadd.f32 %v53, %v1656
    %1658 = vdwg.mxu0
    %v1659 = vxor.u32 %v1584, 2147483648
    %v1660 = vmul.f32 %v1659, 1.442695
    %v1661 = vpow.pop %v1660
    %v1662 = vadd.f32 %v1661, 1.0
    %v1663 = vrcp.pop %v1662
    %v1664 = vmul.f32 1.0, %v1663
    %v1665 = vxor.u32 %v1586, 2147483648
    %v1666 = vmul.f32 %v1665, 1.442695
    %v1667 = vpow.pop %v1666
    %v1668 = vadd.f32 %v1667, 1.0
    %v1669 = vrcp.pop %v1668
    %v1670 = vmul.f32 1.0, %v1669
    %v1671 = vmul.f32 %v1664, %v1657
    %v1672 = vadd.f32 %v1655, %v1671
    %v1673 = vtanh.pop %v1672
    %v1674 = vsub.f32 1.0, %v1670
    %v1675 = vmul.f32 %v1674, %v1673
    %v1676 = vmul.f32 %v1670, %v1350
    %v1677 = vadd.f32 %v1675, %v1676
    %v1678 = vld [vmem:[#allocation2 + $0x60] sm:$0xff]
    %v1679 = vld [vmem:[#allocation2 + $0x68] sm:$0xff]
    %v1680 = vld [vmem:[#allocation2 + $0x70] sm:$0xff]
    %1681 = vmatprep.subr.mxu0 %v359
    %1682 = vmatpush1.msra.mxu0 %v358
    %1683 = vmatprep.subr.mxu0 %v362
    %1684 = vmatpush1.msra.mxu0 %v361
    %1685 = vmatprep.subr.mxu0 %v365
    %1686 = vmatpush1.msra.mxu0 %v364
    %1687 = vmatprep.subr.mxu0 %v368
    %1688 = vmatpush1.msra.mxu0 %v367
    %1689 = vmatprep.subr.mxu0 %v371
    %1690 = vmatpush1.msra.mxu0 %v370
    %1691 = vmatprep.subr.mxu0 %v374
    %1692 = vmatpush1.msra.mxu0 %v373
    %1693 = vmatprep.subr.mxu0 %v377
    %1694 = vmatpush1.msra.mxu0 %v376
    %1695 = vmatprep.subr.mxu0 %v380
    %1696 = vmatpush1.msra.mxu0 %v379
    %1697 = vmatprep.subr.mxu0 %v383
    %1698 = vmatpush1.msra.mxu0 %v382
    %1699 = vmatprep.subr.mxu0 %v386
    %1700 = vmatpush1.msra.mxu0 %v385
    %1701 = vmatprep.subr.mxu0 %v389
    %1702 = vmatpush1.msra.mxu0 %v388
    %1703 = vmatprep.subr.mxu0 %v392
    %1704 = vmatpush1.msra.mxu0 %v391
    %1705 = vmatprep.subr.mxu0 %v395
    %1706 = vmatpush1.msra.mxu0 %v394
    %1707 = vmatprep.subr.mxu0 %v398
    %1708 = vmatpush1.msra.mxu0 %v397
    %1709 = vmatprep.subr.mxu0 %v401
    %1710 = vmatpush1.msra.mxu0 %v400
    %1711 = vmatprep.subr.mxu0 %v404
    %1712 = vmatpush1.msra.mxu0 %v403
    %1713 = vmatprep.subr.mxu0 0.0
    %1714 = vmatpush1.msra.mxu0 0.0
    %1715 = vmatprep.subr.mxu0 0.0
    %1716 = vmatpush1.msra.mxu0 0.0
    %1717 = vmatprep.subr.mxu0 0.0
    %1718 = vmatpush1.msra.mxu0 0.0
    %1719 = vmatprep.subr.mxu0 0.0
    %1720 = vmatpush1.msra.mxu0 0.0
    %1721 = vmatprep.subr.mxu0 0.0
    %1722 = vmatpush1.msra.mxu0 0.0
    %1723 = vmatprep.subr.mxu0 0.0
    %1724 = vmatpush1.msra.mxu0 0.0
    %1725 = vmatprep.subr.mxu0 0.0
    %1726 = vmatpush1.msra.mxu0 0.0
    %1727 = vmatprep.subr.mxu0 0.0
    %1728 = vmatpush1.msra.mxu0 0.0
    %1729 = vmatprep.subr.mxu0 0.0
    %1730 = vmatpush1.msra.mxu0 0.0
    %1731 = vmatprep.subr.mxu0 0.0
    %1732 = vmatpush1.msra.mxu0 0.0
    %1733 = vmatprep.subr.mxu0 0.0
    %1734 = vmatpush1.msra.mxu0 0.0
    %1735 = vmatprep.subr.mxu0 0.0
    %1736 = vmatpush1.msra.mxu0 0.0
    %1737 = vmatprep.subr.mxu0 0.0
    %1738 = vmatpush1.msra.mxu0 0.0
    %1739 = vmatprep.subr.mxu0 0.0
    %1740 = vmatpush1.msra.mxu0 0.0
    %1741 = vmatprep.subr.mxu0 0.0
    %1742 = vmatpush1.msra.mxu0 0.0
    %1743 = vmatprep.subr.mxu0 0.0
    %1744 = vmatpush1.msra.mxu0 0.0
    %1745 = vmatprep.mubr.f32.mxu0 0.0
    %1746 = vmatmul.mubr.f32.gmra.mrb[0].mxu0 %v1516
    %v1747 = vpop.f32.mrb[0].mxu0
    %v1748 = vadd.f32 0.0, %v1747
    %v1749 = vpop.f32.mrb[0].mxu0
    %v1750 = vadd.f32 0.0, %v1749
    %1751 = vdwg.mxu0
    %1752 = vmatprep.subr.mxu0 0.0
    %1753 = vmatpush1.msra.mxu0 %v360
    %1754 = vmatprep.subr.mxu0 0.0
    %1755 = vmatpush1.msra.mxu0 %v363
    %1756 = vmatprep.subr.mxu0 0.0
    %1757 = vmatpush1.msra.mxu0 %v366
    %1758 = vmatprep.subr.mxu0 0.0
    %1759 = vmatpush1.msra.mxu0 %v369
    %1760 = vmatprep.subr.mxu0 0.0
    %1761 = vmatpush1.msra.mxu0 %v372
    %1762 = vmatprep.subr.mxu0 0.0
    %1763 = vmatpush1.msra.mxu0 %v375
    %1764 = vmatprep.subr.mxu0 0.0
    %1765 = vmatpush1.msra.mxu0 %v378
    %1766 = vmatprep.subr.mxu0 0.0
    %1767 = vmatpush1.msra.mxu0 %v381
    %1768 = vmatprep.subr.mxu0 0.0
    %1769 = vmatpush1.msra.mxu0 %v384
    %1770 = vmatprep.subr.mxu0 0.0
    %1771 = vmatpush1.msra.mxu0 %v387
    %1772 = vmatprep.subr.mxu0 0.0
    %1773 = vmatpush1.msra.mxu0 %v390
    %1774 = vmatprep.subr.mxu0 0.0
    %1775 = vmatpush1.msra.mxu0 %v393
    %1776 = vmatprep.subr.mxu0 0.0
    %1777 = vmatpush1.msra.mxu0 %v396
    %1778 = vmatprep.subr.mxu0 0.0
    %1779 = vmatpush1.msra.mxu0 %v399
    %1780 = vmatprep.subr.mxu0 0.0
    %1781 = vmatpush1.msra.mxu0 %v402
    %1782 = vmatprep.subr.mxu0 0.0
    %1783 = vmatpush1.msra.mxu0 %v405
    %1784 = vmatprep.subr.mxu0 0.0
    %1785 = vmatpush1.msra.mxu0 0.0
    %1786 = vmatprep.subr.mxu0 0.0
    %1787 = vmatpush1.msra.mxu0 0.0
    %1788 = vmatprep.subr.mxu0 0.0
    %1789 = vmatpush1.msra.mxu0 0.0
    %1790 = vmatprep.subr.mxu0 0.0
    %1791 = vmatpush1.msra.mxu0 0.0
    %1792 = vmatprep.subr.mxu0 0.0
    %1793 = vmatpush1.msra.mxu0 0.0
    %1794 = vmatprep.subr.mxu0 0.0
    %1795 = vmatpush1.msra.mxu0 0.0
    %1796 = vmatprep.subr.mxu0 0.0
    %1797 = vmatpush1.msra.mxu0 0.0
    %1798 = vmatprep.subr.mxu0 0.0
    %1799 = vmatpush1.msra.mxu0 0.0
    %1800 = vmatprep.subr.mxu0 0.0
    %1801 = vmatpush1.msra.mxu0 0.0
    %1802 = vmatprep.subr.mxu0 0.0
    %1803 = vmatpush1.msra.mxu0 0.0
    %1804 = vmatprep.subr.mxu0 0.0
    %1805 = vmatpush1.msra.mxu0 0.0
    %1806 = vmatprep.subr.mxu0 0.0
    %1807 = vmatpush1.msra.mxu0 0.0
    %1808 = vmatprep.subr.mxu0 0.0
    %1809 = vmatpush1.msra.mxu0 0.0
    %1810 = vmatprep.subr.mxu0 0.0
    %1811 = vmatpush1.msra.mxu0 0.0
    %1812 = vmatprep.subr.mxu0 0.0
    %1813 = vmatpush1.msra.mxu0 0.0
    %1814 = vmatprep.subr.mxu0 0.0
    %1815 = vmatpush1.msra.mxu0 0.0
    %1816 = vmatprep.mubr.f32.mxu0 0.0
    %1817 = vmatmul.mubr.f32.gmra.mrb[0].mxu0 %v1516
    %v1818 = vpop.f32.mrb[0].mxu0
    %v1819 = vadd.f32 0.0, %v1818
    %v1820 = vpop.f32.mrb[0].mxu0
    %1821 = vdwg.mxu0
    %v1822 = vadd.f32 %v1678, %v1748
    %v1823 = vxor.u32 %v1822, 2147483648
    %v1824 = vmul.f32 %v1823, 1.442695
    %v1825 = vpow.pop %v1824
    %v1826 = vadd.f32 %v1825, 1.0
    %v1827 = vrcp.pop %v1826
    %v1828 = vmul.f32 1.0, %v1827
    %v1829 = vadd.f32 %v1679, %v1750
    %v1830 = vxor.u32 %v1829, 2147483648
    %v1831 = vmul.f32 %v1830, 1.442695
    %v1832 = vpow.pop %v1831
    %v1833 = vadd.f32 %v1832, 1.0
    %v1834 = vrcp.pop %v1833
    %v1835 = vmul.f32 1.0, %v1834
    %v1836 = vadd.f32 %v1819, %v34
    %v1837 = vmul.f32 %v1828, %v1836
    %v1838 = vadd.f32 %v1680, %v1837
    %v1839 = vtanh.pop %v1838
    %v1840 = vsub.f32 1.0, %v1835
    %v1841 = vmul.f32 %v1840, %v1839
    %v1842 = vmul.f32 %v1835, %v1516
    %v1843 = vadd.f32 %v1841, %v1842
    %1844 = vmatprep.subr.mxu0 %v736
    %1845 = vmatpush1.msra.mxu0 %v735
    %1846 = vmatprep.subr.mxu0 %v740
    %1847 = vmatpush1.msra.mxu0 %v739
    %1848 = vmatprep.subr.mxu0 %v744
    %1849 = vmatpush1.msra.mxu0 %v743
    %1850 = vmatprep.subr.mxu0 %v748
    %1851 = vmatpush1.msra.mxu0 %v747
    %1852 = vmatprep.subr.mxu0 %v752
    %1853 = vmatpush1.msra.mxu0 %v751
    %1854 = vmatprep.subr.mxu0 %v756
    %1855 = vmatpush1.msra.mxu0 %v755
    %1856 = vmatprep.subr.mxu0 %v760
    %1857 = vmatpush1.msra.mxu0 %v759
    %1858 = vmatprep.subr.mxu0 %v764
    %1859 = vmatpush1.msra.mxu0 %v763
    %1860 = vmatprep.subr.mxu0 %v768
    %1861 = vmatpush1.msra.mxu0 %v767
    %1862 = vmatprep.subr.mxu0 %v772
    %1863 = vmatpush1.msra.mxu0 %v771
    %1864 = vmatprep.subr.mxu0 %v776
    %1865 = vmatpush1.msra.mxu0 %v775
    %1866 = vmatprep.subr.mxu0 %v780
    %1867 = vmatpush1.msra.mxu0 %v779
    %1868 = vmatprep.subr.mxu0 %v784
    %1869 = vmatpush1.msra.mxu0 %v783
    %1870 = vmatprep.subr.mxu0 %v788
    %1871 = vmatpush1.msra.mxu0 %v787
    %1872 = vmatprep.subr.mxu0 %v792
    %1873 = vmatpush1.msra.mxu0 %v791
    %1874 = vmatprep.subr.mxu0 %v796
    %1875 = vmatpush1.msra.mxu0 %v795
    %1876 = vmatprep.subr.mxu0 %v800
    %1877 = vmatpush1.msra.mxu0 %v799
    %1878 = vmatprep.subr.mxu0 %v804
    %1879 = vmatpush1.msra.mxu0 %v803
    %1880 = vmatprep.subr.mxu0 %v808
    %1881 = vmatpush1.msra.mxu0 %v807
    %1882 = vmatprep.subr.mxu0 %v812
    %1883 = vmatpush1.msra.mxu0 %v811
    %1884 = vmatprep.subr.mxu0 %v816
    %1885 = vmatpush1.msra.mxu0 %v815
    %1886 = vmatprep.subr.mxu0 %v820
    %1887 = vmatpush1.msra.mxu0 %v819
    %1888 = vmatprep.subr.mxu0 %v824
    %1889 = vmatpush1.msra.mxu0 %v823
    %1890 = vmatprep.subr.mxu0 %v828
    %1891 = vmatpush1.msra.mxu0 %v827
    %1892 = vmatprep.subr.mxu0 %v832
    %1893 = vmatpush1.msra.mxu0 %v831
    %1894 = vmatprep.subr.mxu0 %v836
    %1895 = vmatpush1.msra.mxu0 %v835
    %1896 = vmatprep.subr.mxu0 %v840
    %1897 = vmatpush1.msra.mxu0 %v839
    %1898 = vmatprep.subr.mxu0 %v844
    %1899 = vmatpush1.msra.mxu0 %v843
    %1900 = vmatprep.subr.mxu0 %v848
    %1901 = vmatpush1.msra.mxu0 %v847
    %1902 = vmatprep.subr.mxu0 %v852
    %1903 = vmatpush1.msra.mxu0 %v851
    %1904 = vmatprep.subr.mxu0 %v856
    %1905 = vmatpush1.msra.mxu0 %v855
    %1906 = vmatprep.subr.mxu0 %v860
    %1907 = vmatpush1.msra.mxu0 %v859
    %1908 = vmatprep.mubr.f32.mxu0 %v1677
    %1909 = vmatmul.mubr.f32.gmra.mrb[0].mxu0 %v1516
    %v1910 = vpop.f32.mrb[0].mxu0
    %v1911 = vadd.f32 %v41, %v1910
    %v1912 = vpop.f32.mrb[0].mxu0
    %v1913 = vadd.f32 %v45, %v1912
    %1914 = vdwg.mxu0
    %1915 = vmatprep.subr.mxu0 %v738
    %1916 = vmatpush1.msra.mxu0 %v737
    %1917 = vmatprep.subr.mxu0 %v742
    %1918 = vmatpush1.msra.mxu0 %v741
    %1919 = vmatprep.subr.mxu0 %v746
    %1920 = vmatpush1.msra.mxu0 %v745
    %1921 = vmatprep.subr.mxu0 %v750
    %1922 = vmatpush1.msra.mxu0 %v749
    %1923 = vmatprep.subr.mxu0 %v754
    %1924 = vmatpush1.msra.mxu0 %v753
    %1925 = vmatprep.subr.mxu0 %v758
    %1926 = vmatpush1.msra.mxu0 %v757
    %1927 = vmatprep.subr.mxu0 %v762
    %1928 = vmatpush1.msra.mxu0 %v761
    %1929 = vmatprep.subr.mxu0 %v766
    %1930 = vmatpush1.msra.mxu0 %v765
    %1931 = vmatprep.subr.mxu0 %v770
    %1932 = vmatpush1.msra.mxu0 %v769
    %1933 = vmatprep.subr.mxu0 %v774
    %1934 = vmatpush1.msra.mxu0 %v773
    %1935 = vmatprep.subr.mxu0 %v778
    %1936 = vmatpush1.msra.mxu0 %v777
    %1937 = vmatprep.subr.mxu0 %v782
    %1938 = vmatpush1.msra.mxu0 %v781
    %1939 = vmatprep.subr.mxu0 %v786
    %1940 = vmatpush1.msra.mxu0 %v785
    %1941 = vmatprep.subr.mxu0 %v790
    %1942 = vmatpush1.msra.mxu0 %v789
    %1943 = vmatprep.subr.mxu0 %v794
    %1944 = vmatpush1.msra.mxu0 %v793
    %1945 = vmatprep.subr.mxu0 %v798
    %1946 = vmatpush1.msra.mxu0 %v797
    %1947 = vmatprep.subr.mxu0 %v802
    %1948 = vmatpush1.msra.mxu0 %v801
    %1949 = vmatprep.subr.mxu0 %v806
    %1950 = vmatpush1.msra.mxu0 %v805
    %1951 = vmatprep.subr.mxu0 %v810
    %1952 = vmatpush1.msra.mxu0 %v809
    %1953 = vmatprep.subr.mxu0 %v814
    %1954 = vmatpush1.msra.mxu0 %v813
    %1955 = vmatprep.subr.mxu0 %v818
    %1956 = vmatpush1.msra.mxu0 %v817
    %1957 = vmatprep.subr.mxu0 %v822
    %1958 = vmatpush1.msra.mxu0 %v821
    %1959 = vmatprep.subr.mxu0 %v826
    %1960 = vmatpush1.msra.mxu0 %v825
    %1961 = vmatprep.subr.mxu0 %v830
    %1962 = vmatpush1.msra.mxu0 %v829
    %1963 = vmatprep.subr.mxu0 %v834
    %1964 = vmatpush1.msra.mxu0 %v833
    %1965 = vmatprep.subr.mxu0 %v838
    %1966 = vmatpush1.msra.mxu0 %v837
    %1967 = vmatprep.subr.mxu0 %v842
    %1968 = vmatpush1.msra.mxu0 %v841
    %1969 = vmatprep.subr.mxu0 %v846
    %1970 = vmatpush1.msra.mxu0 %v845
    %1971 = vmatprep.subr.mxu0 %v850
    %1972 = vmatpush1.msra.mxu0 %v849
    %1973 = vmatprep.subr.mxu0 %v854
    %1974 = vmatpush1.msra.mxu0 %v853
    %1975 = vmatprep.subr.mxu0 %v858
    %1976 = vmatpush1.msra.mxu0 %v857
    %1977 = vmatprep.subr.mxu0 %v862
    %1978 = vmatpush1.msra.mxu0 %v861
    %1979 = vmatprep.mubr.f32.mxu0 %v1677
    %1980 = vmatmul.mubr.f32.gmra.mrb[0].mxu0 %v1516
    %v1981 = vpop.f32.mrb[0].mxu0
    %v1982 = vadd.f32 %v49, %v1981
    %v1983 = vpop.f32.mrb[0].mxu0
    %v1984 = vadd.f32 %v53, %v1983
    %1985 = vdwg.mxu0
    %v1986 = vxor.u32 %v1911, 2147483648
    %v1987 = vmul.f32 %v1986, 1.442695
    %v1988 = vpow.pop %v1987
    %v1989 = vadd.f32 %v1988, 1.0
    %v1990 = vrcp.pop %v1989
    %v1991 = vmul.f32 1.0, %v1990
    %v1992 = vxor.u32 %v1913, 2147483648
    %v1993 = vmul.f32 %v1992, 1.442695
    %v1994 = vpow.pop %v1993
    %v1995 = vadd.f32 %v1994, 1.0
    %v1996 = vrcp.pop %v1995
    %v1997 = vmul.f32 1.0, %v1996
    %v1998 = vmul.f32 %v1991, %v1984
    %v1999 = vadd.f32 %v1982, %v1998
    %v2000 = vtanh.pop %v1999
    %v2001 = vsub.f32 1.0, %v1997
    %v2002 = vmul.f32 %v2001, %v2000
    %v2003 = vmul.f32 %v1997, %v1677
    %v2004 = vadd.f32 %v2002, %v2003
    %v2005 = vld [vmem:[#allocation2 + $0x78] sm:$0xff]
    %v2006 = vld [vmem:[#allocation2 + $0x80] sm:$0xff]
    %v2007 = vld [vmem:[#allocation2 + $0x88] sm:$0xff]
    %2008 = vmatprep.subr.mxu0 %v359
    %2009 = vmatpush1.msra.mxu0 %v358
    %2010 = vmatprep.subr.mxu0 %v362
    %2011 = vmatpush1.msra.mxu0 %v361
    %2012 = vmatprep.subr.mxu0 %v365
    %2013 = vmatpush1.msra.mxu0 %v364
    %2014 = vmatprep.subr.mxu0 %v368
    %2015 = vmatpush1.msra.mxu0 %v367
    %2016 = vmatprep.subr.mxu0 %v371
    %2017 = vmatpush1.msra.mxu0 %v370
    %2018 = vmatprep.subr.mxu0 %v374
    %2019 = vmatpush1.msra.mxu0 %v373
    %2020 = vmatprep.subr.mxu0 %v377
    %2021 = vmatpush1.msra.mxu0 %v376
    %2022 = vmatprep.subr.mxu0 %v380
    %2023 = vmatpush1.msra.mxu0 %v379
    %2024 = vmatprep.subr.mxu0 %v383
    %2025 = vmatpush1.msra.mxu0 %v382
    %2026 = vmatprep.subr.mxu0 %v386
    %2027 = vmatpush1.msra.mxu0 %v385
    %2028 = vmatprep.subr.mxu0 %v389
    %2029 = vmatpush1.msra.mxu0 %v388
    %2030 = vmatprep.subr.mxu0 %v392
    %2031 = vmatpush1.msra.mxu0 %v391
    %2032 = vmatprep.subr.mxu0 %v395
    %2033 = vmatpush1.msra.mxu0 %v394
    %2034 = vmatprep.subr.mxu0 %v398
    %2035 = vmatpush1.msra.mxu0 %v397
    %2036 = vmatprep.subr.mxu0 %v401
    %2037 = vmatpush1.msra.mxu0 %v400
    %2038 = vmatprep.subr.mxu0 %v404
    %2039 = vmatpush1.msra.mxu0 %v403
    %2040 = vmatprep.subr.mxu0 0.0
    %2041 = vmatpush1.msra.mxu0 0.0
    %2042 = vmatprep.subr.mxu0 0.0
    %2043 = vmatpush1.msra.mxu0 0.0
    %2044 = vmatprep.subr.mxu0 0.0
    %2045 = vmatpush1.msra.mxu0 0.0
    %2046 = vmatprep.subr.mxu0 0.0
    %2047 = vmatpush1.msra.mxu0 0.0
    %2048 = vmatprep.subr.mxu0 0.0
    %2049 = vmatpush1.msra.mxu0 0.0
    %2050 = vmatprep.subr.mxu0 0.0
    %2051 = vmatpush1.msra.mxu0 0.0
    %2052 = vmatprep.subr.mxu0 0.0
    %2053 = vmatpush1.msra.mxu0 0.0
    %2054 = vmatprep.subr.mxu0 0.0
    %2055 = vmatpush1.msra.mxu0 0.0
    %2056 = vmatprep.subr.mxu0 0.0
    %2057 = vmatpush1.msra.mxu0 0.0
    %2058 = vmatprep.subr.mxu0 0.0
    %2059 = vmatpush1.msra.mxu0 0.0
    %2060 = vmatprep.subr.mxu0 0.0
    %2061 = vmatpush1.msra.mxu0 0.0
    %2062 = vmatprep.subr.mxu0 0.0
    %2063 = vmatpush1.msra.mxu0 0.0
    %2064 = vmatprep.subr.mxu0 0.0
    %2065 = vmatpush1.msra.mxu0 0.0
    %2066 = vmatprep.subr.mxu0 0.0
    %2067 = vmatpush1.msra.mxu0 0.0
    %2068 = vmatprep.subr.mxu0 0.0
    %2069 = vmatpush1.msra.mxu0 0.0
    %2070 = vmatprep.subr.mxu0 0.0
    %2071 = vmatpush1.msra.mxu0 0.0
    %2072 = vmatprep.mubr.f32.mxu0 0.0
    %2073 = vmatmul.mubr.f32.gmra.mrb[0].mxu0 %v1843
    %v2074 = vpop.f32.mrb[0].mxu0
    %v2075 = vadd.f32 0.0, %v2074
    %v2076 = vpop.f32.mrb[0].mxu0
    %v2077 = vadd.f32 0.0, %v2076
    %2078 = vdwg.mxu0
    %2079 = vmatprep.subr.mxu0 0.0
    %2080 = vmatpush1.msra.mxu0 %v360
    %2081 = vmatprep.subr.mxu0 0.0
    %2082 = vmatpush1.msra.mxu0 %v363
    %2083 = vmatprep.subr.mxu0 0.0
    %2084 = vmatpush1.msra.mxu0 %v366
    %2085 = vmatprep.subr.mxu0 0.0
    %2086 = vmatpush1.msra.mxu0 %v369
    %2087 = vmatprep.subr.mxu0 0.0
    %2088 = vmatpush1.msra.mxu0 %v372
    %2089 = vmatprep.subr.mxu0 0.0
    %2090 = vmatpush1.msra.mxu0 %v375
    %2091 = vmatprep.subr.mxu0 0.0
    %2092 = vmatpush1.msra.mxu0 %v378
    %2093 = vmatprep.subr.mxu0 0.0
    %2094 = vmatpush1.msra.mxu0 %v381
    %2095 = vmatprep.subr.mxu0 0.0
    %2096 = vmatpush1.msra.mxu0 %v384
    %2097 = vmatprep.subr.mxu0 0.0
    %2098 = vmatpush1.msra.mxu0 %v387
    %2099 = vmatprep.subr.mxu0 0.0
    %2100 = vmatpush1.msra.mxu0 %v390
    %2101 = vmatprep.subr.mxu0 0.0
    %2102 = vmatpush1.msra.mxu0 %v393
    %2103 = vmatprep.subr.mxu0 0.0
    %2104 = vmatpush1.msra.mxu0 %v396
    %2105 = vmatprep.subr.mxu0 0.0
    %2106 = vmatpush1.msra.mxu0 %v399
    %2107 = vmatprep.subr.mxu0 0.0
    %2108 = vmatpush1.msra.mxu0 %v402
    %2109 = vmatprep.subr.mxu0 0.0
    %2110 = vmatpush1.msra.mxu0 %v405
    %2111 = vmatprep.subr.mxu0 0.0
    %2112 = vmatpush1.msra.mxu0 0.0
    %2113 = vmatprep.subr.mxu0 0.0
    %2114 = vmatpush1.msra.mxu0 0.0
    %2115 = vmatprep.subr.mxu0 0.0
    %2116 = vmatpush1.msra.mxu0 0.0
    %2117 = vmatprep.subr.mxu0 0.0
    %2118 = vmatpush1.msra.mxu0 0.0
    %2119 = vmatprep.subr.mxu0 0.0
    %2120 = vmatpush1.msra.mxu0 0.0
    %2121 = vmatprep.subr.mxu0 0.0
    %2122 = vmatpush1.msra.mxu0 0.0
    %2123 = vmatprep.subr.mxu0 0.0
    %2124 = vmatpush1.msra.mxu0 0.0
    %2125 = vmatprep.subr.mxu0 0.0
    %2126 = vmatpush1.msra.mxu0 0.0
    %2127 = vmatprep.subr.mxu0 0.0
    %2128 = vmatpush1.msra.mxu0 0.0
    %2129 = vmatprep.subr.mxu0 0.0
    %2130 = vmatpush1.msra.mxu0 0.0
    %2131 = vmatprep.subr.mxu0 0.0
    %2132 = vmatpush1.msra.mxu0 0.0
    %2133 = vmatprep.subr.mxu0 0.0
    %2134 = vmatpush1.msra.mxu0 0.0
    %2135 = vmatprep.subr.mxu0 0.0
    %2136 = vmatpush1.msra.mxu0 0.0
    %2137 = vmatprep.subr.mxu0 0.0
    %2138 = vmatpush1.msra.mxu0 0.0
    %2139 = vmatprep.subr.mxu0 0.0
    %2140 = vmatpush1.msra.mxu0 0.0
    %2141 = vmatprep.subr.mxu0 0.0
    %2142 = vmatpush1.msra.mxu0 0.0
    %2143 = vmatprep.mubr.f32.mxu0 0.0
    %2144 = vmatmul.mubr.f32.gmra.mrb[0].mxu0 %v1843
    %v2145 = vpop.f32.mrb[0].mxu0
    %v2146 = vadd.f32 0.0, %v2145
    %v2147 = vpop.f32.mrb[0].mxu0
    %2148 = vdwg.mxu0
    %v2149 = vadd.f32 %v2005, %v2075
    %v2150 = vxor.u32 %v2149, 2147483648
    %v2151 = vmul.f32 %v2150, 1.442695
    %v2152 = vpow.pop %v2151
    %v2153 = vadd.f32 %v2152, 1.0
    %v2154 = vrcp.pop %v2153
    %v2155 = vmul.f32 1.0, %v2154
    %v2156 = vadd.f32 %v2006, %v2077
    %v2157 = vxor.u32 %v2156, 2147483648
    %v2158 = vmul.f32 %v2157, 1.442695
    %v2159 = vpow.pop %v2158
    %v2160 = vadd.f32 %v2159, 1.0
    %v2161 = vrcp.pop %v2160
    %v2162 = vmul.f32 1.0, %v2161
    %v2163 = vadd.f32 %v2146, %v34
    %v2164 = vmul.f32 %v2155, %v2163
    %v2165 = vadd.f32 %v2007, %v2164
    %v2166 = vtanh.pop %v2165
    %v2167 = vsub.f32 1.0, %v2162
    %v2168 = vmul.f32 %v2167, %v2166
    %v2169 = vmul.f32 %v2162, %v1843
    %v2170 = vadd.f32 %v2168, %v2169
    %2171 = vmatprep.subr.mxu0 %v736
    %2172 = vmatpush1.msra.mxu0 %v735
    %2173 = vmatprep.subr.mxu0 %v740
    %2174 = vmatpush1.msra.mxu0 %v739
    %2175 = vmatprep.subr.mxu0 %v744
    %2176 = vmatpush1.msra.mxu0 %v743
    %2177 = vmatprep.subr.mxu0 %v748
    %2178 = vmatpush1.msra.mxu0 %v747
    %2179 = vmatprep.subr.mxu0 %v752
    %2180 = vmatpush1.msra.mxu0 %v751
    %2181 = vmatprep.subr.mxu0 %v756
    %2182 = vmatpush1.msra.mxu0 %v755
    %2183 = vmatprep.subr.mxu0 %v760
    %2184 = vmatpush1.msra.mxu0 %v759
    %2185 = vmatprep.subr.mxu0 %v764
    %2186 = vmatpush1.msra.mxu0 %v763
    %2187 = vmatprep.subr.mxu0 %v768
    %2188 = vmatpush1.msra.mxu0 %v767
    %2189 = vmatprep.subr.mxu0 %v772
    %2190 = vmatpush1.msra.mxu0 %v771
    %2191 = vmatprep.subr.mxu0 %v776
    %2192 = vmatpush1.msra.mxu0 %v775
    %2193 = vmatprep.subr.mxu0 %v780
    %2194 = vmatpush1.msra.mxu0 %v779
    %2195 = vmatprep.subr.mxu0 %v784
    %2196 = vmatpush1.msra.mxu0 %v783
    %2197 = vmatprep.subr.mxu0 %v788
    %2198 = vmatpush1.msra.mxu0 %v787
    %2199 = vmatprep.subr.mxu0 %v792
    %2200 = vmatpush1.msra.mxu0 %v791
    %2201 = vmatprep.subr.mxu0 %v796
    %2202 = vmatpush1.msra.mxu0 %v795
    %2203 = vmatprep.subr.mxu0 %v800
    %2204 = vmatpush1.msra.mxu0 %v799
    %2205 = vmatprep.subr.mxu0 %v804
    %2206 = vmatpush1.msra.mxu0 %v803
    %2207 = vmatprep.subr.mxu0 %v808
    %2208 = vmatpush1.msra.mxu0 %v807
    %2209 = vmatprep.subr.mxu0 %v812
    %2210 = vmatpush1.msra.mxu0 %v811
    %2211 = vmatprep.subr.mxu0 %v816
    %2212 = vmatpush1.msra.mxu0 %v815
    %2213 = vmatprep.subr.mxu0 %v820
    %2214 = vmatpush1.msra.mxu0 %v819
    %2215 = vmatprep.subr.mxu0 %v824
    %2216 = vmatpush1.msra.mxu0 %v823
    %2217 = vmatprep.subr.mxu0 %v828
    %2218 = vmatpush1.msra.mxu0 %v827
    %2219 = vmatprep.subr.mxu0 %v832
    %2220 = vmatpush1.msra.mxu0 %v831
    %2221 = vmatprep.subr.mxu0 %v836
    %2222 = vmatpush1.msra.mxu0 %v835
    %2223 = vmatprep.subr.mxu0 %v840
    %2224 = vmatpush1.msra.mxu0 %v839
    %2225 = vmatprep.subr.mxu0 %v844
    %2226 = vmatpush1.msra.mxu0 %v843
    %2227 = vmatprep.subr.mxu0 %v848
    %2228 = vmatpush1.msra.mxu0 %v847
    %2229 = vmatprep.subr.mxu0 %v852
    %2230 = vmatpush1.msra.mxu0 %v851
    %2231 = vmatprep.subr.mxu0 %v856
    %2232 = vmatpush1.msra.mxu0 %v855
    %2233 = vmatprep.subr.mxu0 %v860
    %2234 = vmatpush1.msra.mxu0 %v859
    %2235 = vmatprep.mubr.f32.mxu0 %v2004
    %2236 = vmatmul.mubr.f32.gmra.mrb[0].mxu0 %v1843
    %v2237 = vpop.f32.mrb[0].mxu0
    %v2238 = vadd.f32 %v41, %v2237
    %v2239 = vpop.f32.mrb[0].mxu0
    %v2240 = vadd.f32 %v45, %v2239
    %2241 = vdwg.mxu0
    %2242 = vmatprep.subr.mxu0 %v738
    %2243 = vmatpush1.msra.mxu0 %v737
    %2244 = vmatprep.subr.mxu0 %v742
    %2245 = vmatpush1.msra.mxu0 %v741
    %2246 = vmatprep.subr.mxu0 %v746
    %2247 = vmatpush1.msra.mxu0 %v745
    %2248 = vmatprep.subr.mxu0 %v750
    %2249 = vmatpush1.msra.mxu0 %v749
    %2250 = vmatprep.subr.mxu0 %v754
    %2251 = vmatpush1.msra.mxu0 %v753
    %2252 = vmatprep.subr.mxu0 %v758
    %2253 = vmatpush1.msra.mxu0 %v757
    %2254 = vmatprep.subr.mxu0 %v762
    %2255 = vmatpush1.msra.mxu0 %v761
    %2256 = vmatprep.subr.mxu0 %v766
    %2257 = vmatpush1.msra.mxu0 %v765
    %2258 = vmatprep.subr.mxu0 %v770
    %2259 = vmatpush1.msra.mxu0 %v769
    %2260 = vmatprep.subr.mxu0 %v774
    %2261 = vmatpush1.msra.mxu0 %v773
    %2262 = vmatprep.subr.mxu0 %v778
    %2263 = vmatpush1.msra.mxu0 %v777
    %2264 = vmatprep.subr.mxu0 %v782
    %2265 = vmatpush1.msra.mxu0 %v781
    %2266 = vmatprep.subr.mxu0 %v786
    %2267 = vmatpush1.msra.mxu0 %v785
    %2268 = vmatprep.subr.mxu0 %v790
    %2269 = vmatpush1.msra.mxu0 %v789
    %2270 = vmatprep.subr.mxu0 %v794
    %2271 = vmatpush1.msra.mxu0 %v793
    %2272 = vmatprep.subr.mxu0 %v798
    %2273 = vmatpush1.msra.mxu0 %v797
    %2274 = vmatprep.subr.mxu0 %v802
    %2275 = vmatpush1.msra.mxu0 %v801
    %2276 = vmatprep.subr.mxu0 %v806
    %2277 = vmatpush1.msra.mxu0 %v805
    %2278 = vmatprep.subr.mxu0 %v810
    %2279 = vmatpush1.msra.mxu0 %v809
    %2280 = vmatprep.subr.mxu0 %v814
    %2281 = vmatpush1.msra.mxu0 %v813
    %2282 = vmatprep.subr.mxu0 %v818
    %2283 = vmatpush1.msra.mxu0 %v817
    %2284 = vmatprep.subr.mxu0 %v822
    %2285 = vmatpush1.msra.mxu0 %v821
    %2286 = vmatprep.subr.mxu0 %v826
    %2287 = vmatpush1.msra.mxu0 %v825
    %2288 = vmatprep.subr.mxu0 %v830
    %2289 = vmatpush1.msra.mxu0 %v829
    %2290 = vmatprep.subr.mxu0 %v834
    %2291 = vmatpush1.msra.mxu0 %v833
    %2292 = vmatprep.subr.mxu0 %v838
    %2293 = vmatpush1.msra.mxu0 %v837
    %2294 = vmatprep.subr.mxu0 %v842
    %2295 = vmatpush1.msra.mxu0 %v841
    %2296 = vmatprep.subr.mxu0 %v846
    %2297 = vmatpush1.msra.mxu0 %v845
    %2298 = vmatprep.subr.mxu0 %v850
    %2299 = vmatpush1.msra.mxu0 %v849
    %2300 = vmatprep.subr.mxu0 %v854
    %2301 = vmatpush1.msra.mxu0 %v853
    %2302 = vmatprep.subr.mxu0 %v858
    %2303 = vmatpush1.msra.mxu0 %v857
    %2304 = vmatprep.subr.mxu0 %v862
    %2305 = vmatpush1.msra.mxu0 %v861
    %2306 = vmatprep.mubr.f32.mxu0 %v2004
    %2307 = vmatmul.mubr.f32.gmra.mrb[0].mxu0 %v1843
    %v2308 = vpop.f32.mrb[0].mxu0
    %v2309 = vadd.f32 %v49, %v2308
    %v2310 = vpop.f32.mrb[0].mxu0
    %v2311 = vadd.f32 %v53, %v2310
    %2312 = vdwg.mxu0
    %v2313 = vxor.u32 %v2238, 2147483648
    %v2314 = vmul.f32 %v2313, 1.442695
    %v2315 = vpow.pop %v2314
    %v2316 = vadd.f32 %v2315, 1.0
    %v2317 = vrcp.pop %v2316
    %v2318 = vmul.f32 1.0, %v2317
    %v2319 = vxor.u32 %v2240, 2147483648
    %v2320 = vmul.f32 %v2319, 1.442695
    %v2321 = vpow.pop %v2320
    %v2322 = vadd.f32 %v2321, 1.0
    %v2323 = vrcp.pop %v2322
    %v2324 = vmul.f32 1.0, %v2323
    %v2325 = vmul.f32 %v2318, %v2311
    %v2326 = vadd.f32 %v2309, %v2325
    %v2327 = vtanh.pop %v2326
    %v2328 = vsub.f32 1.0, %v2324
    %v2329 = vmul.f32 %v2328, %v2327
    %v2330 = vmul.f32 %v2324, %v2004
    %v2331 = vadd.f32 %v2329, %v2330
    %v2332 = vld [vmem:[#allocation2 + $0x90] sm:$0xff]
    %v2333 = vld [vmem:[#allocation2 + $0x98] sm:$0xff]
    %v2334 = vld [vmem:[#allocation2 + $0xa0] sm:$0xff]
    %2335 = vmatprep.subr.mxu0 %v359
    %2336 = vmatpush1.msra.mxu0 %v358
    %2337 = vmatprep.subr.mxu0 %v362
    %2338 = vmatpush1.msra.mxu0 %v361
    %2339 = vmatprep.subr.mxu0 %v365
    %2340 = vmatpush1.msra.mxu0 %v364
    %2341 = vmatprep.subr.mxu0 %v368
    %2342 = vmatpush1.msra.mxu0 %v367
    %2343 = vmatprep.subr.mxu0 %v371
    %2344 = vmatpush1.msra.mxu0 %v370
    %2345 = vmatprep.subr.mxu0 %v374
    %2346 = vmatpush1.msra.mxu0 %v373
    %2347 = vmatprep.subr.mxu0 %v377
    %2348 = vmatpush1.msra.mxu0 %v376
    %2349 = vmatprep.subr.mxu0 %v380
    %2350 = vmatpush1.msra.mxu0 %v379
    %2351 = vmatprep.subr.mxu0 %v383
    %2352 = vmatpush1.msra.mxu0 %v382
    %2353 = vmatprep.subr.mxu0 %v386
    %2354 = vmatpush1.msra.mxu0 %v385
    %2355 = vmatprep.subr.mxu0 %v389
    %2356 = vmatpush1.msra.mxu0 %v388
    %2357 = vmatprep.subr.mxu0 %v392
    %2358 = vmatpush1.msra.mxu0 %v391
    %2359 = vmatprep.subr.mxu0 %v395
    %2360 = vmatpush1.msra.mxu0 %v394
    %2361 = vmatprep.subr.mxu0 %v398
    %2362 = vmatpush1.msra.mxu0 %v397
    %2363 = vmatprep.subr.mxu0 %v401
    %2364 = vmatpush1.msra.mxu0 %v400
    %2365 = vmatprep.subr.mxu0 %v404
    %2366 = vmatpush1.msra.mxu0 %v403
    %2367 = vmatprep.subr.mxu0 0.0
    %2368 = vmatpush1.msra.mxu0 0.0
    %2369 = vmatprep.subr.mxu0 0.0
    %2370 = vmatpush1.msra.mxu0 0.0
    %2371 = vmatprep.subr.mxu0 0.0
    %2372 = vmatpush1.msra.mxu0 0.0
    %2373 = vmatprep.subr.mxu0 0.0
    %2374 = vmatpush1.msra.mxu0 0.0
    %2375 = vmatprep.subr.mxu0 0.0
    %2376 = vmatpush1.msra.mxu0 0.0
    %2377 = vmatprep.subr.mxu0 0.0
    %2378 = vmatpush1.msra.mxu0 0.0
    %2379 = vmatprep.subr.mxu0 0.0
    %2380 = vmatpush1.msra.mxu0 0.0
    %2381 = vmatprep.subr.mxu0 0.0
    %2382 = vmatpush1.msra.mxu0 0.0
    %2383 = vmatprep.subr.mxu0 0.0
    %2384 = vmatpush1.msra.mxu0 0.0
    %2385 = vmatprep.subr.mxu0 0.0
    %2386 = vmatpush1.msra.mxu0 0.0
    %2387 = vmatprep.subr.mxu0 0.0
    %2388 = vmatpush1.msra.mxu0 0.0
    %2389 = vmatprep.subr.mxu0 0.0
    %2390 = vmatpush1.msra.mxu0 0.0
    %2391 = vmatprep.subr.mxu0 0.0
    %2392 = vmatpush1.msra.mxu0 0.0
    %2393 = vmatprep.subr.mxu0 0.0
    %2394 = vmatpush1.msra.mxu0 0.0
    %2395 = vmatprep.subr.mxu0 0.0
    %2396 = vmatpush1.msra.mxu0 0.0
    %2397 = vmatprep.subr.mxu0 0.0
    %2398 = vmatpush1.msra.mxu0 0.0
    %2399 = vmatprep.mubr.f32.mxu0 0.0
    %2400 = vmatmul.mubr.f32.gmra.mrb[0].mxu0 %v2170
    %v2401 = vpop.f32.mrb[0].mxu0
    %v2402 = vadd.f32 0.0, %v2401
    %v2403 = vpop.f32.mrb[0].mxu0
    %v2404 = vadd.f32 0.0, %v2403
    %2405 = vdwg.mxu0
    %2406 = vmatprep.subr.mxu0 0.0
    %2407 = vmatpush1.msra.mxu0 %v360
    %2408 = vmatprep.subr.mxu0 0.0
    %2409 = vmatpush1.msra.mxu0 %v363
    %2410 = vmatprep.subr.mxu0 0.0
    %2411 = vmatpush1.msra.mxu0 %v366
    %2412 = vmatprep.subr.mxu0 0.0
    %2413 = vmatpush1.msra.mxu0 %v369
    %2414 = vmatprep.subr.mxu0 0.0
    %2415 = vmatpush1.msra.mxu0 %v372
    %2416 = vmatprep.subr.mxu0 0.0
    %2417 = vmatpush1.msra.mxu0 %v375
    %2418 = vmatprep.subr.mxu0 0.0
    %2419 = vmatpush1.msra.mxu0 %v378
    %2420 = vmatprep.subr.mxu0 0.0
    %2421 = vmatpush1.msra.mxu0 %v381
    %2422 = vmatprep.subr.mxu0 0.0
    %2423 = vmatpush1.msra.mxu0 %v384
    %2424 = vmatprep.subr.mxu0 0.0
    %2425 = vmatpush1.msra.mxu0 %v387
    %2426 = vmatprep.subr.mxu0 0.0
    %2427 = vmatpush1.msra.mxu0 %v390
    %2428 = vmatprep.subr.mxu0 0.0
    %2429 = vmatpush1.msra.mxu0 %v393
    %2430 = vmatprep.subr.mxu0 0.0
    %2431 = vmatpush1.msra.mxu0 %v396
    %2432 = vmatprep.subr.mxu0 0.0
    %2433 = vmatpush1.msra.mxu0 %v399
    %2434 = vmatprep.subr.mxu0 0.0
    %2435 = vmatpush1.msra.mxu0 %v402
    %2436 = vmatprep.subr.mxu0 0.0
    %2437 = vmatpush1.msra.mxu0 %v405
    %2438 = vmatprep.subr.mxu0 0.0
    %2439 = vmatpush1.msra.mxu0 0.0
    %2440 = vmatprep.subr.mxu0 0.0
    %2441 = vmatpush1.msra.mxu0 0.0
    %2442 = vmatprep.subr.mxu0 0.0
    %2443 = vmatpush1.msra.mxu0 0.0
    %2444 = vmatprep.subr.mxu0 0.0
    %2445 = vmatpush1.msra.mxu0 0.0
    %2446 = vmatprep.subr.mxu0 0.0
    %2447 = vmatpush1.msra.mxu0 0.0
    %2448 = vmatprep.subr.mxu0 0.0
    %2449 = vmatpush1.msra.mxu0 0.0
    %2450 = vmatprep.subr.mxu0 0.0
    %2451 = vmatpush1.msra.mxu0 0.0
    %2452 = vmatprep.subr.mxu0 0.0
    %2453 = vmatpush1.msra.mxu0 0.0
    %2454 = vmatprep.subr.mxu0 0.0
    %2455 = vmatpush1.msra.mxu0 0.0
    %2456 = vmatprep.subr.mxu0 0.0
    %2457 = vmatpush1.msra.mxu0 0.0
    %2458 = vmatprep.subr.mxu0 0.0
    %2459 = vmatpush1.msra.mxu0 0.0
    %2460 = vmatprep.subr.mxu0 0.0
    %2461 = vmatpush1.msra.mxu0 0.0
    %2462 = vmatprep.subr.mxu0 0.0
    %2463 = vmatpush1.msra.mxu0 0.0
    %2464 = vmatprep.subr.mxu0 0.0
    %2465 = vmatpush1.msra.mxu0 0.0
    %2466 = vmatprep.subr.mxu0 0.0
    %2467 = vmatpush1.msra.mxu0 0.0
    %2468 = vmatprep.subr.mxu0 0.0
    %2469 = vmatpush1.msra.mxu0 0.0
    %2470 = vmatprep.mubr.f32.mxu0 0.0
    %2471 = vmatmul.mubr.f32.gmra.mrb[0].mxu0 %v2170
    %v2472 = vpop.f32.mrb[0].mxu0
    %v2473 = vadd.f32 0.0, %v2472
    %v2474 = vpop.f32.mrb[0].mxu0
    %2475 = vdwg.mxu0
    %v2476 = vadd.f32 %v2332, %v2402
    %v2477 = vxor.u32 %v2476, 2147483648
    %v2478 = vmul.f32 %v2477, 1.442695
    %v2479 = vpow.pop %v2478
    %v2480 = vadd.f32 %v2479, 1.0
    %v2481 = vrcp.pop %v2480
    %v2482 = vmul.f32 1.0, %v2481
    %v2483 = vadd.f32 %v2333, %v2404
    %v2484 = vxor.u32 %v2483, 2147483648
    %v2485 = vmul.f32 %v2484, 1.442695
    %v2486 = vpow.pop %v2485
    %v2487 = vadd.f32 %v2486, 1.0
    %v2488 = vrcp.pop %v2487
    %v2489 = vmul.f32 1.0, %v2488
    %v2490 = vadd.f32 %v2473, %v34
    %v2491 = vmul.f32 %v2482, %v2490
    %v2492 = vadd.f32 %v2334, %v2491
    %v2493 = vtanh.pop %v2492
    %v2494 = vsub.f32 1.0, %v2489
    %v2495 = vmul.f32 %v2494, %v2493
    %v2496 = vmul.f32 %v2489, %v2170
    %v2497 = vadd.f32 %v2495, %v2496
    %2498 = vmatprep.subr.mxu0 %v736
    %2499 = vmatpush1.msra.mxu0 %v735
    %2500 = vmatprep.subr.mxu0 %v740
    %2501 = vmatpush1.msra.mxu0 %v739
    %2502 = vmatprep.subr.mxu0 %v744
    %2503 = vmatpush1.msra.mxu0 %v743
    %2504 = vmatprep.subr.mxu0 %v748
    %2505 = vmatpush1.msra.mxu0 %v747
    %2506 = vmatprep.subr.mxu0 %v752
    %2507 = vmatpush1.msra.mxu0 %v751
    %2508 = vmatprep.subr.mxu0 %v756
    %2509 = vmatpush1.msra.mxu0 %v755
    %2510 = vmatprep.subr.mxu0 %v760
    %2511 = vmatpush1.msra.mxu0 %v759
    %2512 = vmatprep.subr.mxu0 %v764
    %2513 = vmatpush1.msra.mxu0 %v763
    %2514 = vmatprep.subr.mxu0 %v768
    %2515 = vmatpush1.msra.mxu0 %v767
    %2516 = vmatprep.subr.mxu0 %v772
    %2517 = vmatpush1.msra.mxu0 %v771
    %2518 = vmatprep.subr.mxu0 %v776
    %2519 = vmatpush1.msra.mxu0 %v775
    %2520 = vmatprep.subr.mxu0 %v780
    %2521 = vmatpush1.msra.mxu0 %v779
    %2522 = vmatprep.subr.mxu0 %v784
    %2523 = vmatpush1.msra.mxu0 %v783
    %2524 = vmatprep.subr.mxu0 %v788
    %2525 = vmatpush1.msra.mxu0 %v787
    %2526 = vmatprep.subr.mxu0 %v792
    %2527 = vmatpush1.msra.mxu0 %v791
    %2528 = vmatprep.subr.mxu0 %v796
    %2529 = vmatpush1.msra.mxu0 %v795
    %2530 = vmatprep.subr.mxu0 %v800
    %2531 = vmatpush1.msra.mxu0 %v799
    %2532 = vmatprep.subr.mxu0 %v804
    %2533 = vmatpush1.msra.mxu0 %v803
    %2534 = vmatprep.subr.mxu0 %v808
    %2535 = vmatpush1.msra.mxu0 %v807
    %2536 = vmatprep.subr.mxu0 %v812
    %2537 = vmatpush1.msra.mxu0 %v811
    %2538 = vmatprep.subr.mxu0 %v816
    %2539 = vmatpush1.msra.mxu0 %v815
    %2540 = vmatprep.subr.mxu0 %v820
    %2541 = vmatpush1.msra.mxu0 %v819
    %2542 = vmatprep.subr.mxu0 %v824
    %2543 = vmatpush1.msra.mxu0 %v823
    %2544 = vmatprep.subr.mxu0 %v828
    %2545 = vmatpush1.msra.mxu0 %v827
    %2546 = vmatprep.subr.mxu0 %v832
    %2547 = vmatpush1.msra.mxu0 %v831
    %2548 = vmatprep.subr.mxu0 %v836
    %2549 = vmatpush1.msra.mxu0 %v835
    %2550 = vmatprep.subr.mxu0 %v840
    %2551 = vmatpush1.msra.mxu0 %v839
    %2552 = vmatprep.subr.mxu0 %v844
    %2553 = vmatpush1.msra.mxu0 %v843
    %2554 = vmatprep.subr.mxu0 %v848
    %2555 = vmatpush1.msra.mxu0 %v847
    %2556 = vmatprep.subr.mxu0 %v852
    %2557 = vmatpush1.msra.mxu0 %v851
    %2558 = vmatprep.subr.mxu0 %v856
    %2559 = vmatpush1.msra.mxu0 %v855
    %2560 = vmatprep.subr.mxu0 %v860
    %2561 = vmatpush1.msra.mxu0 %v859
    %2562 = vmatprep.mubr.f32.mxu0 %v2331
    %2563 = vmatmul.mubr.f32.gmra.mrb[0].mxu0 %v2170
    %v2564 = vpop.f32.mrb[0].mxu0
    %v2565 = vadd.f32 %v41, %v2564
    %v2566 = vpop.f32.mrb[0].mxu0
    %v2567 = vadd.f32 %v45, %v2566
    %2568 = vdwg.mxu0
    %2569 = vmatprep.subr.mxu0 %v738
    %2570 = vmatpush1.msra.mxu0 %v737
    %2571 = vmatprep.subr.mxu0 %v742
    %2572 = vmatpush1.msra.mxu0 %v741
    %2573 = vmatprep.subr.mxu0 %v746
    %2574 = vmatpush1.msra.mxu0 %v745
    %2575 = vmatprep.subr.mxu0 %v750
    %2576 = vmatpush1.msra.mxu0 %v749
    %2577 = vmatprep.subr.mxu0 %v754
    %2578 = vmatpush1.msra.mxu0 %v753
    %2579 = vmatprep.subr.mxu0 %v758
    %2580 = vmatpush1.msra.mxu0 %v757
    %2581 = vmatprep.subr.mxu0 %v762
    %2582 = vmatpush1.msra.mxu0 %v761
    %2583 = vmatprep.subr.mxu0 %v766
    %2584 = vmatpush1.msra.mxu0 %v765
    %2585 = vmatprep.subr.mxu0 %v770
    %2586 = vmatpush1.msra.mxu0 %v769
    %2587 = vmatprep.subr.mxu0 %v774
    %2588 = vmatpush1.msra.mxu0 %v773
    %2589 = vmatprep.subr.mxu0 %v778
    %2590 = vmatpush1.msra.mxu0 %v777
    %2591 = vmatprep.subr.mxu0 %v782
    %2592 = vmatpush1.msra.mxu0 %v781
    %2593 = vmatprep.subr.mxu0 %v786
    %2594 = vmatpush1.msra.mxu0 %v785
    %2595 = vmatprep.subr.mxu0 %v790
    %2596 = vmatpush1.msra.mxu0 %v789
    %2597 = vmatprep.subr.mxu0 %v794
    %2598 = vmatpush1.msra.mxu0 %v793
    %2599 = vmatprep.subr.mxu0 %v798
    %2600 = vmatpush1.msra.mxu0 %v797
    %2601 = vmatprep.subr.mxu0 %v802
    %2602 = vmatpush1.msra.mxu0 %v801
    %2603 = vmatprep.subr.mxu0 %v806
    %2604 = vmatpush1.msra.mxu0 %v805
    %2605 = vmatprep.subr.mxu0 %v810
    %2606 = vmatpush1.msra.mxu0 %v809
    %2607 = vmatprep.subr.mxu0 %v814
    %2608 = vmatpush1.msra.mxu0 %v813
    %2609 = vmatprep.subr.mxu0 %v818
    %2610 = vmatpush1.msra.mxu0 %v817
    %2611 = vmatprep.subr.mxu0 %v822
    %2612 = vmatpush1.msra.mxu0 %v821
    %2613 = vmatprep.subr.mxu0 %v826
    %2614 = vmatpush1.msra.mxu0 %v825
    %2615 = vmatprep.subr.mxu0 %v830
    %2616 = vmatpush1.msra.mxu0 %v829
    %2617 = vmatprep.subr.mxu0 %v834
    %2618 = vmatpush1.msra.mxu0 %v833
    %2619 = vmatprep.subr.mxu0 %v838
    %2620 = vmatpush1.msra.mxu0 %v837
    %2621 = vmatprep.subr.mxu0 %v842
    %2622 = vmatpush1.msra.mxu0 %v841
    %2623 = vmatprep.subr.mxu0 %v846
    %2624 = vmatpush1.msra.mxu0 %v845
    %2625 = vmatprep.subr.mxu0 %v850
    %2626 = vmatpush1.msra.mxu0 %v849
    %2627 = vmatprep.subr.mxu0 %v854
    %2628 = vmatpush1.msra.mxu0 %v853
    %2629 = vmatprep.subr.mxu0 %v858
    %2630 = vmatpush1.msra.mxu0 %v857
    %2631 = vmatprep.subr.mxu0 %v862
    %2632 = vmatpush1.msra.mxu0 %v861
    %2633 = vmatprep.mubr.f32.mxu0 %v2331
    %2634 = vmatmul.mubr.f32.gmra.mrb[0].mxu0 %v2170
    %v2635 = vpop.f32.mrb[0].mxu0
    %v2636 = vadd.f32 %v49, %v2635
    %v2637 = vpop.f32.mrb[0].mxu0
    %v2638 = vadd.f32 %v53, %v2637
    %2639 = vdwg.mxu0
    %v2640 = vxor.u32 %v2565, 2147483648
    %v2641 = vmul.f32 %v2640, 1.442695
    %v2642 = vpow.pop %v2641
    %v2643 = vadd.f32 %v2642, 1.0
    %v2644 = vrcp.pop %v2643
    %v2645 = vmul.f32 1.0, %v2644
    %v2646 = vxor.u32 %v2567, 2147483648
    %v2647 = vmul.f32 %v2646, 1.442695
    %v2648 = vpow.pop %v2647
    %v2649 = vadd.f32 %v2648, 1.0
    %v2650 = vrcp.pop %v2649
    %v2651 = vmul.f32 1.0, %v2650
    %v2652 = vmul.f32 %v2645, %v2638
    %v2653 = vadd.f32 %v2636, %v2652
    %v2654 = vtanh.pop %v2653
    %v2655 = vsub.f32 1.0, %v2651
    %v2656 = vmul.f32 %v2655, %v2654
    %v2657 = vmul.f32 %v2651, %v2331
    %v2658 = vadd.f32 %v2656, %v2657
    %v2659 = vld [vmem:[#allocation2 + $0xa8] sm:$0xff]
    %v2660 = vld [vmem:[#allocation2 + $0xb0] sm:$0xff]
    %v2661 = vld [vmem:[#allocation2 + $0xb8] sm:$0xff]
    %2662 = vmatprep.subr.mxu0 %v359
    %2663 = vmatpush1.msra.mxu0 %v358
    %2664 = vmatprep.subr.mxu0 %v362
    %2665 = vmatpush1.msra.mxu0 %v361
    %2666 = vmatprep.subr.mxu0 %v365
    %2667 = vmatpush1.msra.mxu0 %v364
    %2668 = vmatprep.subr.mxu0 %v368
    %2669 = vmatpush1.msra.mxu0 %v367
    %2670 = vmatprep.subr.mxu0 %v371
    %2671 = vmatpush1.msra.mxu0 %v370
    %2672 = vmatprep.subr.mxu0 %v374
    %2673 = vmatpush1.msra.mxu0 %v373
    %2674 = vmatprep.subr.mxu0 %v377
    %2675 = vmatpush1.msra.mxu0 %v376
    %2676 = vmatprep.subr.mxu0 %v380
    %2677 = vmatpush1.msra.mxu0 %v379
    %2678 = vmatprep.subr.mxu0 %v383
    %2679 = vmatpush1.msra.mxu0 %v382
    %2680 = vmatprep.subr.mxu0 %v386
    %2681 = vmatpush1.msra.mxu0 %v385
    %2682 = vmatprep.subr.mxu0 %v389
    %2683 = vmatpush1.msra.mxu0 %v388
    %2684 = vmatprep.subr.mxu0 %v392
    %2685 = vmatpush1.msra.mxu0 %v391
    %2686 = vmatprep.subr.mxu0 %v395
    %2687 = vmatpush1.msra.mxu0 %v394
    %2688 = vmatprep.subr.mxu0 %v398
    %2689 = vmatpush1.msra.mxu0 %v397
    %2690 = vmatprep.subr.mxu0 %v401
    %2691 = vmatpush1.msra.mxu0 %v400
    %2692 = vmatprep.subr.mxu0 %v404
    %2693 = vmatpush1.msra.mxu0 %v403
    %2694 = vmatprep.subr.mxu0 0.0
    %2695 = vmatpush1.msra.mxu0 0.0
    %2696 = vmatprep.subr.mxu0 0.0
    %2697 = vmatpush1.msra.mxu0 0.0
    %2698 = vmatprep.subr.mxu0 0.0
    %2699 = vmatpush1.msra.mxu0 0.0
    %2700 = vmatprep.subr.mxu0 0.0
    %2701 = vmatpush1.msra.mxu0 0.0
    %2702 = vmatprep.subr.mxu0 0.0
    %2703 = vmatpush1.msra.mxu0 0.0
    %2704 = vmatprep.subr.mxu0 0.0
    %2705 = vmatpush1.msra.mxu0 0.0
    %2706 = vmatprep.subr.mxu0 0.0
    %2707 = vmatpush1.msra.mxu0 0.0
    %2708 = vmatprep.subr.mxu0 0.0
    %2709 = vmatpush1.msra.mxu0 0.0
    %2710 = vmatprep.subr.mxu0 0.0
    %2711 = vmatpush1.msra.mxu0 0.0
    %2712 = vmatprep.subr.mxu0 0.0
    %2713 = vmatpush1.msra.mxu0 0.0
    %2714 = vmatprep.subr.mxu0 0.0
    %2715 = vmatpush1.msra.mxu0 0.0
    %2716 = vmatprep.subr.mxu0 0.0
    %2717 = vmatpush1.msra.mxu0 0.0
    %2718 = vmatprep.subr.mxu0 0.0
    %2719 = vmatpush1.msra.mxu0 0.0
    %2720 = vmatprep.subr.mxu0 0.0
    %2721 = vmatpush1.msra.mxu0 0.0
    %2722 = vmatprep.subr.mxu0 0.0
    %2723 = vmatpush1.msra.mxu0 0.0
    %2724 = vmatprep.subr.mxu0 0.0
    %2725 = vmatpush1.msra.mxu0 0.0
    %2726 = vmatprep.mubr.f32.mxu0 0.0
    %2727 = vmatmul.mubr.f32.gmra.mrb[0].mxu0 %v2497
    %v2728 = vpop.f32.mrb[0].mxu0
    %v2729 = vadd.f32 0.0, %v2728
    %v2730 = vpop.f32.mrb[0].mxu0
    %v2731 = vadd.f32 0.0, %v2730
    %2732 = vdwg.mxu0
    %2733 = vmatprep.subr.mxu0 0.0
    %2734 = vmatpush1.msra.mxu0 %v360
    %2735 = vmatprep.subr.mxu0 0.0
    %2736 = vmatpush1.msra.mxu0 %v363
    %2737 = vmatprep.subr.mxu0 0.0
    %2738 = vmatpush1.msra.mxu0 %v366
    %2739 = vmatprep.subr.mxu0 0.0
    %2740 = vmatpush1.msra.mxu0 %v369
    %2741 = vmatprep.subr.mxu0 0.0
    %2742 = vmatpush1.msra.mxu0 %v372
    %2743 = vmatprep.subr.mxu0 0.0
    %2744 = vmatpush1.msra.mxu0 %v375
    %2745 = vmatprep.subr.mxu0 0.0
    %2746 = vmatpush1.msra.mxu0 %v378
    %2747 = vmatprep.subr.mxu0 0.0
    %2748 = vmatpush1.msra.mxu0 %v381
    %2749 = vmatprep.subr.mxu0 0.0
    %2750 = vmatpush1.msra.mxu0 %v384
    %2751 = vmatprep.subr.mxu0 0.0
    %2752 = vmatpush1.msra.mxu0 %v387
    %2753 = vmatprep.subr.mxu0 0.0
    %2754 = vmatpush1.msra.mxu0 %v390
    %2755 = vmatprep.subr.mxu0 0.0
    %2756 = vmatpush1.msra.mxu0 %v393
    %2757 = vmatprep.subr.mxu0 0.0
    %2758 = vmatpush1.msra.mxu0 %v396
    %2759 = vmatprep.subr.mxu0 0.0
    %2760 = vmatpush1.msra.mxu0 %v399
    %2761 = vmatprep.subr.mxu0 0.0
    %2762 = vmatpush1.msra.mxu0 %v402
    %2763 = vmatprep.subr.mxu0 0.0
    %2764 = vmatpush1.msra.mxu0 %v405
    %2765 = vmatprep.subr.mxu0 0.0
    %2766 = vmatpush1.msra.mxu0 0.0
    %2767 = vmatprep.subr.mxu0 0.0
    %2768 = vmatpush1.msra.mxu0 0.0
    %2769 = vmatprep.subr.mxu0 0.0
    %2770 = vmatpush1.msra.mxu0 0.0
    %2771 = vmatprep.subr.mxu0 0.0
    %2772 = vmatpush1.msra.mxu0 0.0
    %2773 = vmatprep.subr.mxu0 0.0
    %2774 = vmatpush1.msra.mxu0 0.0
    %2775 = vmatprep.subr.mxu0 0.0
    %2776 = vmatpush1.msra.mxu0 0.0
    %2777 = vmatprep.subr.mxu0 0.0
    %2778 = vmatpush1.msra.mxu0 0.0
    %2779 = vmatprep.subr.mxu0 0.0
    %2780 = vmatpush1.msra.mxu0 0.0
    %2781 = vmatprep.subr.mxu0 0.0
    %2782 = vmatpush1.msra.mxu0 0.0
    %2783 = vmatprep.subr.mxu0 0.0
    %2784 = vmatpush1.msra.mxu0 0.0
    %2785 = vmatprep.subr.mxu0 0.0
    %2786 = vmatpush1.msra.mxu0 0.0
    %2787 = vmatprep.subr.mxu0 0.0
    %2788 = vmatpush1.msra.mxu0 0.0
    %2789 = vmatprep.subr.mxu0 0.0
    %2790 = vmatpush1.msra.mxu0 0.0
    %2791 = vmatprep.subr.mxu0 0.0
    %2792 = vmatpush1.msra.mxu0 0.0
    %2793 = vmatprep.subr.mxu0 0.0
    %2794 = vmatpush1.msra.mxu0 0.0
    %2795 = vmatprep.subr.mxu0 0.0
    %2796 = vmatpush1.msra.mxu0 0.0
    %2797 = vmatprep.mubr.f32.mxu0 0.0
    %2798 = vmatmul.mubr.f32.gmra.mrb[0].mxu0 %v2497
    %v2799 = vpop.f32.mrb[0].mxu0
    %v2800 = vadd.f32 0.0, %v2799
    %v2801 = vpop.f32.mrb[0].mxu0
    %2802 = vdwg.mxu0
    %v2803 = vadd.f32 %v2659, %v2729
    %v2804 = vxor.u32 %v2803, 2147483648
    %v2805 = vmul.f32 %v2804, 1.442695
    %v2806 = vpow.pop %v2805
    %v2807 = vadd.f32 %v2806, 1.0
    %v2808 = vrcp.pop %v2807
    %v2809 = vmul.f32 1.0, %v2808
    %v2810 = vadd.f32 %v2660, %v2731
    %v2811 = vxor.u32 %v2810, 2147483648
    %v2812 = vmul.f32 %v2811, 1.442695
    %v2813 = vpow.pop %v2812
    %v2814 = vadd.f32 %v2813, 1.0
    %v2815 = vrcp.pop %v2814
    %v2816 = vmul.f32 1.0, %v2815
    %v2817 = vadd.f32 %v2800, %v34
    %v2818 = vmul.f32 %v2809, %v2817
    %v2819 = vadd.f32 %v2661, %v2818
    %v2820 = vtanh.pop %v2819
    %v2821 = vsub.f32 1.0, %v2816
    %v2822 = vmul.f32 %v2821, %v2820
    %v2823 = vmul.f32 %v2816, %v2497
    %v2824 = vadd.f32 %v2822, %v2823
    %2825 = vmatprep.subr.mxu0 %v736
    %2826 = vmatpush1.msra.mxu0 %v735
    %2827 = vmatprep.subr.mxu0 %v740
    %2828 = vmatpush1.msra.mxu0 %v739
    %2829 = vmatprep.subr.mxu0 %v744
    %2830 = vmatpush1.msra.mxu0 %v743
    %2831 = vmatprep.subr.mxu0 %v748
    %2832 = vmatpush1.msra.mxu0 %v747
    %2833 = vmatprep.subr.mxu0 %v752
    %2834 = vmatpush1.msra.mxu0 %v751
    %2835 = vmatprep.subr.mxu0 %v756
    %2836 = vmatpush1.msra.mxu0 %v755
    %2837 = vmatprep.subr.mxu0 %v760
    %2838 = vmatpush1.msra.mxu0 %v759
    %2839 = vmatprep.subr.mxu0 %v764
    %2840 = vmatpush1.msra.mxu0 %v763
    %2841 = vmatprep.subr.mxu0 %v768
    %2842 = vmatpush1.msra.mxu0 %v767
    %2843 = vmatprep.subr.mxu0 %v772
    %2844 = vmatpush1.msra.mxu0 %v771
    %2845 = vmatprep.subr.mxu0 %v776
    %2846 = vmatpush1.msra.mxu0 %v775
    %2847 = vmatprep.subr.mxu0 %v780
    %2848 = vmatpush1.msra.mxu0 %v779
    %2849 = vmatprep.subr.mxu0 %v784
    %2850 = vmatpush1.msra.mxu0 %v783
    %2851 = vmatprep.subr.mxu0 %v788
    %2852 = vmatpush1.msra.mxu0 %v787
    %2853 = vmatprep.subr.mxu0 %v792
    %2854 = vmatpush1.msra.mxu0 %v791
    %2855 = vmatprep.subr.mxu0 %v796
    %2856 = vmatpush1.msra.mxu0 %v795
    %2857 = vmatprep.subr.mxu0 %v800
    %2858 = vmatpush1.msra.mxu0 %v799
    %2859 = vmatprep.subr.mxu0 %v804
    %2860 = vmatpush1.msra.mxu0 %v803
    %2861 = vmatprep.subr.mxu0 %v808
    %2862 = vmatpush1.msra.mxu0 %v807
    %2863 = vmatprep.subr.mxu0 %v812
    %2864 = vmatpush1.msra.mxu0 %v811
    %2865 = vmatprep.subr.mxu0 %v816
    %2866 = vmatpush1.msra.mxu0 %v815
    %2867 = vmatprep.subr.mxu0 %v820
    %2868 = vmatpush1.msra.mxu0 %v819
    %2869 = vmatprep.subr.mxu0 %v824
    %2870 = vmatpush1.msra.mxu0 %v823
    %2871 = vmatprep.subr.mxu0 %v828
    %2872 = vmatpush1.msra.mxu0 %v827
    %2873 = vmatprep.subr.mxu0 %v832
    %2874 = vmatpush1.msra.mxu0 %v831
    %2875 = vmatprep.subr.mxu0 %v836
    %2876 = vmatpush1.msra.mxu0 %v835
    %2877 = vmatprep.subr.mxu0 %v840
    %2878 = vmatpush1.msra.mxu0 %v839
    %2879 = vmatprep.subr.mxu0 %v844
    %2880 = vmatpush1.msra.mxu0 %v843
    %2881 = vmatprep.subr.mxu0 %v848
    %2882 = vmatpush1.msra.mxu0 %v847
    %2883 = vmatprep.subr.mxu0 %v852
    %2884 = vmatpush1.msra.mxu0 %v851
    %2885 = vmatprep.subr.mxu0 %v856
    %2886 = vmatpush1.msra.mxu0 %v855
    %2887 = vmatprep.subr.mxu0 %v860
    %2888 = vmatpush1.msra.mxu0 %v859
    %2889 = vmatprep.mubr.f32.mxu0 %v2658
    %2890 = vmatmul.mubr.f32.gmra.mrb[0].mxu0 %v2497
    %v2891 = vpop.f32.mrb[0].mxu0
    %v2892 = vadd.f32 %v41, %v2891
    %v2893 = vpop.f32.mrb[0].mxu0
    %v2894 = vadd.f32 %v45, %v2893
    %2895 = vdwg.mxu0
    %2896 = vmatprep.subr.mxu0 %v738
    %2897 = vmatpush1.msra.mxu0 %v737
    %2898 = vmatprep.subr.mxu0 %v742
    %2899 = vmatpush1.msra.mxu0 %v741
    %2900 = vmatprep.subr.mxu0 %v746
    %2901 = vmatpush1.msra.mxu0 %v745
    %2902 = vmatprep.subr.mxu0 %v750
    %2903 = vmatpush1.msra.mxu0 %v749
    %2904 = vmatprep.subr.mxu0 %v754
    %2905 = vmatpush1.msra.mxu0 %v753
    %2906 = vmatprep.subr.mxu0 %v758
    %2907 = vmatpush1.msra.mxu0 %v757
    %2908 = vmatprep.subr.mxu0 %v762
    %2909 = vmatpush1.msra.mxu0 %v761
    %2910 = vmatprep.subr.mxu0 %v766
    %2911 = vmatpush1.msra.mxu0 %v765
    %2912 = vmatprep.subr.mxu0 %v770
    %2913 = vmatpush1.msra.mxu0 %v769
    %2914 = vmatprep.subr.mxu0 %v774
    %2915 = vmatpush1.msra.mxu0 %v773
    %2916 = vmatprep.subr.mxu0 %v778
    %2917 = vmatpush1.msra.mxu0 %v777
    %2918 = vmatprep.subr.mxu0 %v782
    %2919 = vmatpush1.msra.mxu0 %v781
    %2920 = vmatprep.subr.mxu0 %v786
    %2921 = vmatpush1.msra.mxu0 %v785
    %2922 = vmatprep.subr.mxu0 %v790
    %2923 = vmatpush1.msra.mxu0 %v789
    %2924 = vmatprep.subr.mxu0 %v794
    %2925 = vmatpush1.msra.mxu0 %v793
    %2926 = vmatprep.subr.mxu0 %v798
    %2927 = vmatpush1.msra.mxu0 %v797
    %2928 = vmatprep.subr.mxu0 %v802
    %2929 = vmatpush1.msra.mxu0 %v801
    %2930 = vmatprep.subr.mxu0 %v806
    %2931 = vmatpush1.msra.mxu0 %v805
    %2932 = vmatprep.subr.mxu0 %v810
    %2933 = vmatpush1.msra.mxu0 %v809
    %2934 = vmatprep.subr.mxu0 %v814
    %2935 = vmatpush1.msra.mxu0 %v813
    %2936 = vmatprep.subr.mxu0 %v818
    %2937 = vmatpush1.msra.mxu0 %v817
    %2938 = vmatprep.subr.mxu0 %v822
    %2939 = vmatpush1.msra.mxu0 %v821
    %2940 = vmatprep.subr.mxu0 %v826
    %2941 = vmatpush1.msra.mxu0 %v825
    %2942 = vmatprep.subr.mxu0 %v830
    %2943 = vmatpush1.msra.mxu0 %v829
    %2944 = vmatprep.subr.mxu0 %v834
    %2945 = vmatpush1.msra.mxu0 %v833
    %2946 = vmatprep.subr.mxu0 %v838
    %2947 = vmatpush1.msra.mxu0 %v837
    %2948 = vmatprep.subr.mxu0 %v842
    %2949 = vmatpush1.msra.mxu0 %v841
    %2950 = vmatprep.subr.mxu0 %v846
    %2951 = vmatpush1.msra.mxu0 %v845
    %2952 = vmatprep.subr.mxu0 %v850
    %2953 = vmatpush1.msra.mxu0 %v849
    %2954 = vmatprep.subr.mxu0 %v854
    %2955 = vmatpush1.msra.mxu0 %v853
    %2956 = vmatprep.subr.mxu0 %v858
    %2957 = vmatpush1.msra.mxu0 %v857
    %2958 = vmatprep.subr.mxu0 %v862
    %2959 = vmatpush1.msra.mxu0 %v861
    %2960 = vmatprep.mubr.f32.mxu0 %v2658
    %2961 = vmatmul.mubr.f32.gmra.mrb[0].mxu0 %v2497
    %v2962 = vpop.f32.mrb[0].mxu0
    %v2963 = vadd.f32 %v49, %v2962
    %v2964 = vpop.f32.mrb[0].mxu0
    %v2965 = vadd.f32 %v53, %v2964
    %2966 = vdwg.mxu0
    %v2967 = vxor.u32 %v2892, 2147483648
    %v2968 = vmul.f32 %v2967, 1.442695
    %v2969 = vpow.pop %v2968
    %v2970 = vadd.f32 %v2969, 1.0
    %v2971 = vrcp.pop %v2970
    %v2972 = vmul.f32 1.0, %v2971
    %v2973 = vxor.u32 %v2894, 2147483648
    %v2974 = vmul.f32 %v2973, 1.442695
    %v2975 = vpow.pop %v2974
    %v2976 = vadd.f32 %v2975, 1.0
    %v2977 = vrcp.pop %v2976
    %v2978 = vmul.f32 1.0, %v2977
    %v2979 = vmul.f32 %v2972, %v2965
    %v2980 = vadd.f32 %v2963, %v2979
    %v2981 = vtanh.pop %v2980
    %v2982 = vsub.f32 1.0, %v2978
    %v2983 = vmul.f32 %v2982, %v2981
    %v2984 = vmul.f32 %v2978, %v2658
    %v2985 = vadd.f32 %v2983, %v2984
    %2986 = vmatprep.subr.mxu0 %v736
    %2987 = vmatpush1.msra.mxu0 %v735
    %2988 = vmatprep.subr.mxu0 %v740
    %2989 = vmatpush1.msra.mxu0 %v739
    %2990 = vmatprep.subr.mxu0 %v744
    %2991 = vmatpush1.msra.mxu0 %v743
    %2992 = vmatprep.subr.mxu0 %v748
    %2993 = vmatpush1.msra.mxu0 %v747
    %2994 = vmatprep.subr.mxu0 %v752
    %2995 = vmatpush1.msra.mxu0 %v751
    %2996 = vmatprep.subr.mxu0 %v756
    %2997 = vmatpush1.msra.mxu0 %v755
    %2998 = vmatprep.subr.mxu0 %v760
    %2999 = vmatpush1.msra.mxu0 %v759
    %3000 = vmatprep.subr.mxu0 %v764
    %3001 = vmatpush1.msra.mxu0 %v763
    %3002 = vmatprep.subr.mxu0 %v768
    %3003 = vmatpush1.msra.mxu0 %v767
    %3004 = vmatprep.subr.mxu0 %v772
    %3005 = vmatpush1.msra.mxu0 %v771
    %3006 = vmatprep.subr.mxu0 %v776
    %3007 = vmatpush1.msra.mxu0 %v775
    %3008 = vmatprep.subr.mxu0 %v780
    %3009 = vmatpush1.msra.mxu0 %v779
    %3010 = vmatprep.subr.mxu0 %v784
    %3011 = vmatpush1.msra.mxu0 %v783
    %3012 = vmatprep.subr.mxu0 %v788
    %3013 = vmatpush1.msra.mxu0 %v787
    %3014 = vmatprep.subr.mxu0 %v792
    %3015 = vmatpush1.msra.mxu0 %v791
    %3016 = vmatprep.subr.mxu0 %v796
    %3017 = vmatpush1.msra.mxu0 %v795
    %3018 = vmatprep.subr.mxu0 %v800
    %3019 = vmatpush1.msra.mxu0 %v799
    %3020 = vmatprep.subr.mxu0 %v804
    %3021 = vmatpush1.msra.mxu0 %v803
    %3022 = vmatprep.subr.mxu0 %v808
    %3023 = vmatpush1.msra.mxu0 %v807
    %3024 = vmatprep.subr.mxu0 %v812
    %3025 = vmatpush1.msra.mxu0 %v811
    %3026 = vmatprep.subr.mxu0 %v816
    %3027 = vmatpush1.msra.mxu0 %v815
    %3028 = vmatprep.subr.mxu0 %v820
    %3029 = vmatpush1.msra.mxu0 %v819
    %3030 = vmatprep.subr.mxu0 %v824
    %3031 = vmatpush1.msra.mxu0 %v823
    %3032 = vmatprep.subr.mxu0 %v828
    %3033 = vmatpush1.msra.mxu0 %v827
    %3034 = vmatprep.subr.mxu0 %v832
    %3035 = vmatpush1.msra.mxu0 %v831
    %3036 = vmatprep.subr.mxu0 %v836
    %3037 = vmatpush1.msra.mxu0 %v835
    %3038 = vmatprep.subr.mxu0 %v840
    %3039 = vmatpush1.msra.mxu0 %v839
    %3040 = vmatprep.subr.mxu0 %v844
    %3041 = vmatpush1.msra.mxu0 %v843
    %3042 = vmatprep.subr.mxu0 %v848
    %3043 = vmatpush1.msra.mxu0 %v847
    %3044 = vmatprep.subr.mxu0 %v852
    %3045 = vmatpush1.msra.mxu0 %v851
    %3046 = vmatprep.subr.mxu0 %v856
    %3047 = vmatpush1.msra.mxu0 %v855
    %3048 = vmatprep.subr.mxu0 %v860
    %3049 = vmatpush1.msra.mxu0 %v859
    %3050 = vmatprep.mubr.f32.mxu0 %v2985
    %3051 = vmatmul.mubr.f32.gmra.mrb[0].mxu0 %v2824
    %v3052 = vpop.f32.mrb[0].mxu0
    %v3053 = vadd.f32 %v41, %v3052
    %v3054 = vpop.f32.mrb[0].mxu0
    %v3055 = vadd.f32 %v45, %v3054
    %3056 = vdwg.mxu0
    %3057 = vmatprep.subr.mxu0 %v738
    %3058 = vmatpush1.msra.mxu0 %v737
    %3059 = vmatprep.subr.mxu0 %v742
    %3060 = vmatpush1.msra.mxu0 %v741
    %3061 = vmatprep.subr.mxu0 %v746
    %3062 = vmatpush1.msra.mxu0 %v745
    %3063 = vmatprep.subr.mxu0 %v750
    %3064 = vmatpush1.msra.mxu0 %v749
    %3065 = vmatprep.subr.mxu0 %v754
    %3066 = vmatpush1.msra.mxu0 %v753
    %3067 = vmatprep.subr.mxu0 %v758
    %3068 = vmatpush1.msra.mxu0 %v757
    %3069 = vmatprep.subr.mxu0 %v762
    %3070 = vmatpush1.msra.mxu0 %v761
    %3071 = vmatprep.subr.mxu0 %v766
    %3072 = vmatpush1.msra.mxu0 %v765
    %3073 = vmatprep.subr.mxu0 %v770
    %3074 = vmatpush1.msra.mxu0 %v769
    %3075 = vmatprep.subr.mxu0 %v774
    %3076 = vmatpush1.msra.mxu0 %v773
    %3077 = vmatprep.subr.mxu0 %v778
    %3078 = vmatpush1.msra.mxu0 %v777
    %3079 = vmatprep.subr.mxu0 %v782
    %3080 = vmatpush1.msra.mxu0 %v781
    %3081 = vmatprep.subr.mxu0 %v786
    %3082 = vmatpush1.msra.mxu0 %v785
    %3083 = vmatprep.subr.mxu0 %v790
    %3084 = vmatpush1.msra.mxu0 %v789
    %3085 = vmatprep.subr.mxu0 %v794
    %3086 = vmatpush1.msra.mxu0 %v793
    %3087 = vmatprep.subr.mxu0 %v798
    %3088 = vmatpush1.msra.mxu0 %v797
    %3089 = vmatprep.subr.mxu0 %v802
    %3090 = vmatpush1.msra.mxu0 %v801
    %3091 = vmatprep.subr.mxu0 %v806
    %3092 = vmatpush1.msra.mxu0 %v805
    %3093 = vmatprep.subr.mxu0 %v810
    %3094 = vmatpush1.msra.mxu0 %v809
    %3095 = vmatprep.subr.mxu0 %v814
    %3096 = vmatpush1.msra.mxu0 %v813
    %3097 = vmatprep.subr.mxu0 %v818
    %3098 = vmatpush1.msra.mxu0 %v817
    %3099 = vmatprep.subr.mxu0 %v822
    %3100 = vmatpush1.msra.mxu0 %v821
    %3101 = vmatprep.subr.mxu0 %v826
    %3102 = vmatpush1.msra.mxu0 %v825
    %3103 = vmatprep.subr.mxu0 %v830
    %3104 = vmatpush1.msra.mxu0 %v829
    %3105 = vmatprep.subr.mxu0 %v834
    %3106 = vmatpush1.msra.mxu0 %v833
    %3107 = vmatprep.subr.mxu0 %v838
    %3108 = vmatpush1.msra.mxu0 %v837
    %3109 = vmatprep.subr.mxu0 %v842
    %3110 = vmatpush1.msra.mxu0 %v841
    %3111 = vmatprep.subr.mxu0 %v846
    %3112 = vmatpush1.msra.mxu0 %v845
    %3113 = vmatprep.subr.mxu0 %v850
    %3114 = vmatpush1.msra.mxu0 %v849
    %3115 = vmatprep.subr.mxu0 %v854
    %3116 = vmatpush1.msra.mxu0 %v853
    %3117 = vmatprep.subr.mxu0 %v858
    %3118 = vmatpush1.msra.mxu0 %v857
    %3119 = vmatprep.subr.mxu0 %v862
    %3120 = vmatpush1.msra.mxu0 %v861
    %3121 = vmatprep.mubr.f32.mxu0 %v2985
    %3122 = vmatmul.mubr.f32.gmra.mrb[0].mxu0 %v2824
    %v3123 = vpop.f32.mrb[0].mxu0
    %v3124 = vadd.f32 %v49, %v3123
    %v3125 = vpop.f32.mrb[0].mxu0
    %v3126 = vadd.f32 %v53, %v3125
    %3127 = vdwg.mxu0
    %v3128 = vxor.u32 %v3053, 2147483648
    %v3129 = vmul.f32 %v3128, 1.442695
    %v3130 = vpow.pop %v3129
    %v3131 = vadd.f32 %v3130, 1.0
    %v3132 = vrcp.pop %v3131
    %v3133 = vmul.f32 1.0, %v3132
    %v3134 = vxor.u32 %v3055, 2147483648
    %v3135 = vmul.f32 %v3134, 1.442695
    %v3136 = vpow.pop %v3135
    %v3137 = vadd.f32 %v3136, 1.0
    %v3138 = vrcp.pop %v3137
    %v3139 = vmul.f32 1.0, %v3138
    %v3140 = vmul.f32 %v3133, %v3126
    %v3141 = vadd.f32 %v3124, %v3140
    %v3142 = vtanh.pop %v3141
    %v3143 = vsub.f32 1.0, %v3139
    %v3144 = vmul.f32 %v3143, %v3142
    %v3145 = vmul.f32 %v3139, %v2985
    %v3146 = vadd.f32 %v3144, %v3145
    %3147 = vst [vmem:[%s5] sm:$0xff] %v2824
    %s3148 = scalar_lea.vmem %s5, 8
    %3149 = vst [vmem:[%s3148] sm:$0xff] %v3146
    %v3150 = vmax.f32 %v3146, 0.0
    %v3151 = vld [vmem:[%s3 + $0x3] ss:$0 sm:$0xff]
    %v3152 = vmul.f32 %v3150, %v3151
    %3153 = vadd.xlane.f32.xlu0 %v3152
    %v3154 = vpop.xlane.xlu0 %3153
    %v3155 = vld [vmem:[%s3 + $0x4] ss:$0 sm:$0xff]
    %v3156 = vadd.f32 %v3154, %v3155
    %vm3157 = vcmask 1024
    %3158 = vst.msk [vmem:[%s4] sm:$0x3] %vm3157, %v3156
    // Predicated region
    $region22: #{grunet_forward.1} parent=1 // pred_check
      _
    $region23: #{grunet_forward.1} parent=1 // pred_check_branch
      %3160 = sbr.rel (0) target = $region25
    $region24: #{grunet_forward.1} parent=1 // pred_region
      _
    $region25: #{grunet_forward.1} parent=1 // pred_fallthru
      _
    // Predicated region
    $region26: #{grunet_forward.1} parent=1 // pred_check
      _
    $region27: #{grunet_forward.1} parent=1 // pred_check_branch
      %3162 = sbr.rel (0) target = $region29
    $region28: #{grunet_forward.1} parent=1 // pred_region
      _
    $region29: #{grunet_forward.1} parent=1 // pred_fallthru
      _
    // Predicated region
    $region30: #{grunet_forward.1} parent=1 // pred_check
      _
    $region31: #{grunet_forward.1} parent=1 // pred_check_branch
      %3164 = sbr.rel (0) target = $region33
    $region32: #{grunet_forward.1} parent=1 // pred_region
      _
    $region33: #{grunet_forward.1} parent=1 // pred_fallthru
      _
    // Predicated region
    $region34: #{grunet_forward.1} parent=1 // pred_check
      _
    $region35: #{grunet_forward.1} parent=1 // pred_check_branch
      %3166 = sbr.rel (0) target = $region37
    $region36: #{grunet_forward.1} parent=1 // pred_region
      _
    $region37: #{grunet_forward.1} parent=1 // pred_fallthru
      _
    %3167 = vsyncpa [#allocation4], 1

</llo_original>
